<compile_context>
chip_gen: v7x
topology: tpu7x:2x2x1
jax: 0.10.0
libtpu: 0.0.40
codegen_flags: <defaults>
</compile_context>

<pallas_src>
import functools
import math

import jax
import jax.numpy as jnp
from jax.experimental import pallas as pl
from jax.experimental.pallas import tpu as pltpu


def _cdiv(a, b):
    return -(-a // b)


def _round_up(a, b):
    return _cdiv(a, b) * b


def _sinusoidal_pe(length, d_model):
    """ESPnet-style PositionalEncoding table, shape (length, d_model), f32."""
    pos = jnp.arange(length, dtype=jnp.float32)[:, None]
    div = jnp.exp(
        jnp.arange(0, d_model, 2, dtype=jnp.float32) * -(math.log(10000.0) / d_model)
    )
    pe = jnp.zeros((length, d_model), jnp.float32)
    pe = pe.at[:, 0::2].set(jnp.sin(pos * div))
    pe = pe.at[:, 1::2].set(jnp.cos(pos * div))
    return pe


# ---------------------------------------------------------------------------
# Pallas kernels
# ---------------------------------------------------------------------------
def _conv1_vpu_kernel(p_ref, m_ref, w1_ref, b1_ref, o_ref):
    """conv1 (+ReLU) computed as kt*kf VPU broadcast-MACs, written straight into
    the conv2-ready operand layout.

    p_ref: (1, TR, 9) f32  raw-input patches for each conv2 operand row
    m_ref: (TR, 1)  f32  zero-mask realizing conv2's causal left padding
    w1_ref: (9, D) f32,  b1_ref: (1, D) f32
    o_ref: (1, TR, D) bf16
    """
    x = p_ref[0]
    w1 = w1_ref[...]
    acc = jnp.zeros((x.shape[0], w1.shape[1]), jnp.float32) + b1_ref[...]
    for k in range(w1.shape[0]):                       # K = 9, static unroll, VPU only
        acc = acc + x[:, k:k + 1] * w1[k:k + 1, :]
    acc = jnp.maximum(acc, 0.0) * m_ref[...]
    o_ref[0] = acc.astype(o_ref.dtype)


def _conv2_linear_pe_kernel(a_ref, w2_ref, b2_ref, wl_ref, bl_ref, pe_ref, o_ref,
                            *, xscale):
    """Fused conv2 + ReLU + Linear + *sqrt(D) + PositionalEncoding.

    a_ref : (1, F2, TT, K2) bf16   conv2-ready operand, K2 = kt*kf*D
    w2_ref: (K2, D) bf16,  b2_ref: (1, D) f32
    wl_ref: (F2, D, D) bf16 (Linear weight permuted per output freq), bl_ref: (1, D) f32
    pe_ref: (TT, D) f32 (shared over batch),  o_ref: (1, TT, D) f32
    """
    tt, d = o_ref.shape[1], o_ref.shape[2]
    w2 = w2_ref[...]
    b2 = b2_ref[...]
    z = jnp.zeros((tt, d), jnp.float32)
    for f2 in range(a_ref.shape[1]):                   # static unroll over output freqs
        a = a_ref[0, f2]                                            # (TT, K2) bf16
        acc = jnp.dot(a, w2, preferred_element_type=jnp.float32)    # conv2 on the MXU
        y = jnp.maximum(acc + b2, 0.0).astype(wl_ref.dtype)         # ReLU, bf16
        z = z + jnp.dot(y, wl_ref[f2], preferred_element_type=jnp.float32)
    z = (z + bl_ref[...]) * xscale + pe_ref[...]
    o_ref[0] = z.astype(o_ref.dtype)


# ---------------------------------------------------------------------------
# Wrapper
# ---------------------------------------------------------------------------
def causal_conv2d_subsampling(x, x_mask, params, kernel_size, *,
                              time_tile=64, row_tile=2048):
    """Forward pass of CausalConv2dSubsampling.

    x: (B, T, F_in) float32, x_mask: (B, 1, T) bool or None.
    Returns (out (B, T'', D), mask') matching the PyTorch semantics (eval mode).
    """
    kt, kf = kernel_size
    assert (kt, kf) == (3, 3), "kernel written for the standard (3, 3) subsampling"
    p = kt - 1
    bsz, t_in, f_in = x.shape
    d = params["w1"].shape[0]

    f1 = (f_in - kf) // 2 + 1
    f2 = (f1 - kf) // 2 + 1
    t1 = (t_in + 2 * p - kt) // 2 + 1 - p          # frames PyTorch keeps after conv1
    t2 = (t1 + 2 * p - kt) // 2 + 1 - p            # frames PyTorch keeps after conv2
    assert t1 > 0 and t2 > 0, "input too short for two stride-2 causal convs"
    assert params["w_lin"].shape == (d, d * f2)

    k1 = kt * kf                                   # conv1 contraction (VPU)
    k2 = kt * kf * d                               # conv2 contraction (MXU)
    tt2 = min(_round_up(time_tile, 8), _round_up(t2, 8))   # output-time tile
    n_t = _cdiv(t2, tt2)
    tf = n_t * tt2                                 # output frames actually produced
    r1 = f2 * tf * kt * kf                         # conv2 operand rows per batch
    tra = min(_round_up(row_tile, 8), r1)          # conv1 row tile
    n_a = _cdiv(r1, tra)

    # ---- host prep: layout-only work on the small raw input and tiny weights ----
    # Left-pad-only causal handling: pad 3*(kt-1) on the left (conv1 pad seen through
    # the stride-2 conv2 receptive field) and just enough zeros on the right so every
    # strided slice below is in bounds.
    need = 4 * (tf - 1) + 3 * p + 1
    rpad = max(0, need - (t_in + 3 * p))
    xpp = jnp.pad(x, ((0, 0), (3 * p, rpad), (0, 0)))

    # Raw-input patches for every conv2 operand row r = (f2, j, dt, df), K = conv1 taps.
    # value = xpp[b, 4*j + 2*dt + dt1, 4*f2 + 2*df + df1]
    slabs = []
    for dt in range(kt):
        for df in range(kf):
            for dt1 in range(kt):
                for df1 in range(kf):
                    t0 = 2 * dt + dt1
                    f0 = 2 * df + df1
                    slabs.append(jax.lax.slice(
                        xpp, (0, t0, f0),
                        (bsz, t0 + 4 * (tf - 1) + 1, f0 + 4 * (f2 - 1) + 1),
                        (1, 4, 4)))
    p1 = jnp.stack(slabs, axis=-1).reshape(bsz, tf, f2, kt, kf, kt, kf)
    p1 = jnp.transpose(p1, (0, 2, 1, 3, 4, 5, 6)).reshape(bsz, r1, k1)

    # conv2's causal left padding: operand rows with 2*j + dt < kt-1 must be zero.
    jj = jnp.arange(tf, dtype=jnp.int32)[:, None, None]
    dd = jnp.arange(kt, dtype=jnp.int32)[None, :, None]
    valid = (2 * jj + dd >= p).astype(jnp.float32)            # (tf, kt, 1)
    maskcol = jnp.broadcast_to(valid, (tf, kt, kf))
    maskcol = jnp.broadcast_to(maskcol[None], (f2, tf, kt, kf)).reshape(r1, 1)

    # Weight repacks (one-time, tiny): fold PyTorch's NCHW conv layout and the
    # transpose(1,2)/view before the Linear into the weights themselves.
    w1mat = jnp.transpose(params["w1"], (2, 3, 1, 0)).reshape(k1, d).astype(jnp.float32)
    b1r = params["b1"].reshape(1, d).astype(jnp.float32)
    w2r = jnp.transpose(params["w2"], (2, 3, 1, 0)).reshape(k2, d).astype(jnp.bfloat16)
    b2r = params["b2"].reshape(1, d).astype(jnp.float32)
    wlb = jnp.transpose(params["w_lin"].reshape(d, d, f2), (2, 1, 0)).astype(jnp.bfloat16)
    blr = params["b_lin"].reshape(1, d).astype(jnp.float32)
    pe = _sinusoidal_pe(tf, d)                     # (tf, D) shared over batch
    xscale = math.sqrt(d)

    cparams = pltpu.CompilerParams(
        dimension_semantics=("parallel", "parallel"),
        vmem_limit_bytes=64 * 1024 * 1024)

    # ---- kernel A: conv1 (+ReLU) -> conv2-ready bf16 operand, row-tiled ----
    o1 = pl.pallas_call(
        _conv1_vpu_kernel,
        out_shape=jax.ShapeDtypeStruct((bsz, r1, d), jnp.bfloat16),
        grid=(bsz, n_a),
        in_specs=[
            pl.BlockSpec((1, tra, k1), lambda b, t: (b, t, 0)),
            pl.BlockSpec((tra, 1), lambda b, t: (t, 0)),
            pl.BlockSpec((k1, d), lambda b, t: (0, 0)),
            pl.BlockSpec((1, d), lambda b, t: (0, 0)),
        ],
        out_specs=pl.BlockSpec((1, tra, d), lambda b, t: (b, t, 0)),
        compiler_params=cparams,
    )(p1, maskcol, w1mat, b1r)

    a1 = o1.reshape(bsz, f2, tf, k2)               # contiguous reshape: no HBM pass

    # ---- kernel B: conv2 + ReLU + Linear + *sqrt(D) + PE, time-tiled ----
    out = pl.pallas_call(
        functools.partial(_conv2_linear_pe_kernel, xscale=xscale),
        out_shape=jax.ShapeDtypeStruct((bsz, t2, d), jnp.float32),
        grid=(bsz, n_t),
        in_specs=[
            pl.BlockSpec((1, f2, tt2, k2), lambda b, t: (b, 0, t, 0)),
            pl.BlockSpec((k2, d), lambda b, t: (0, 0)),
            pl.BlockSpec((1, d), lambda b, t: (0, 0)),
            pl.BlockSpec((f2, d, d), lambda b, t: (0, 0, 0)),
            pl.BlockSpec((1, d), lambda b, t: (0, 0)),
            pl.BlockSpec((tt2, d), lambda b, t: (t, 0)),
        ],
        out_specs=pl.BlockSpec((1, tt2, d), lambda b, t: (b, t, 0)),
        compiler_params=cparams,
    )(a1, w2r, b2r, wlb, blr, pe)

    if x_mask is None:
        return out, None
    return out, x_mask[:, :, :-2:2][:, :, :-2:2]


# ---------------------------------------------------------------------------
# Pure-JAX reference (correctness check only)
# ---------------------------------------------------------------------------
def _reference_forward(x, x_mask, params, kernel_size):
    kt, kf = kernel_size
    xi = x[:, None, :, :]  # NCHW

    def conv(z, w, b):
        y = jax.lax.conv_general_dilated(
            z, w, window_strides=(2, 2),
            padding=((kt - 1, kt - 1), (0, 0)),
            dimension_numbers=("NCHW", "OIHW", "NCHW"),
            precision=jax.lax.Precision.HIGHEST)
        return jnp.maximum(y + b[None, :, None, None], 0.0)

    y = conv(xi, params["w1"], params["b1"])
    y = y[:, :, :-(kt - 1), :]
    y = conv(y, params["w2"], params["b2"])
    y = y[:, :, :-(kt - 1), :]
    b_, c, t, f = y.shape
    y = jnp.transpose(y, (0, 2, 1, 3)).reshape(b_, t, c * f)
    y = jnp.dot(y, params["w_lin"].T, precision=jax.lax.Precision.HIGHEST) + params["b_lin"]
    y = y * math.sqrt(c) + _sinusoidal_pe(t, c)[None]
    mask = None if x_mask is None else x_mask[:, :, :-2:2][:, :, :-2:2]
    return y, mask


if __name__ == "__main__":
    B, T, F_in = 2, 16, 16        # in_channels (freq bins) = 16
    D = 32                        # out_channels / d_model
    kernel_size = (3, 3)
    kt, kf = kernel_size

    key = jax.random.PRNGKey(0)
    k_x, k_w1, k_b1, k_w2, k_b2, k_wl, k_bl = jax.random.split(key, 7)
    x = jax.random.normal(k_x, (B, T, F_in), jnp.float32)
    x_mask = jnp.ones((B, 1, T), dtype=bool)

    F1 = (F_in - kf) // 2 + 1
    F2 = (F1 - kf) // 2 + 1
    lin_in = D * (((F_in - 1) // 2 - 1) // 2)   # Linear in-features from __init__
    assert lin_in == D * F2

    params = dict(
        w1=0.2 * jax.random.normal(k_w1, (D, 1, kt, kf), jnp.float32),
        b1=0.1 * jax.random.normal(k_b1, (D,), jnp.float32),
        w2=0.1 * jax.random.normal(k_w2, (D, D, kt, kf), jnp.float32),
        b2=0.1 * jax.random.normal(k_b2, (D,), jnp.float32),
        w_lin=0.1 * jax.random.normal(k_wl, (D, lin_in), jnp.float32),
        b_lin=0.1 * jax.random.normal(k_bl, (D,), jnp.float32),
    )

    fwd = jax.jit(functools.partial(causal_conv2d_subsampling, kernel_size=kernel_size))
    out, mask = fwd(x, x_mask, params)
    jax.block_until_ready(out)

    ref_out, ref_mask = _reference_forward(x, x_mask, params, kernel_size)
    assert out.shape == ref_out.shape, (out.shape, ref_out.shape)
    assert mask.shape == ref_mask.shape and bool(jnp.all(mask == ref_mask))
    err = float(jnp.max(jnp.abs(out - ref_out)))
    # bf16 activations/weights on the MXU (f32 accumulation): expect ~1e-2 absolute
    # deviation from the f32 HIGHEST-precision reference.
    assert bool(jnp.allclose(out, ref_out, rtol=5e-2, atol=1e-1)), f"max abs err {err}"
    print("KERNEL_OK")
</pallas_src>

<mosaic_0001>
module attributes {stable_mosaic.version = 11 : i64} {
  func.func @_conv1_vpu_kernel(%arg0: i32, %arg1: i32, %arg2: memref<1x216x9xf32, #tpu.memory_space<vmem>>, %arg3: memref<216x1xf32, #tpu.memory_space<vmem>>, %arg4: memref<9x32xf32, #tpu.memory_space<vmem>>, %arg5: memref<1x32xf32, #tpu.memory_space<vmem>>, %arg6: memref<1x216x32xbf16, #tpu.memory_space<vmem>>) attributes {dimension_semantics = [#tpu.dimension_semantics<parallel>, #tpu.dimension_semantics<parallel>], iteration_bounds = array<i64: 2, 1>, scalar_prefetch = 0 : i64, scratch_operands = 0 : i64, tpu.core_type = #tpu.core_type<tc>, window_params = [{transform_indices = @transform_0, window_bounds = array<i64: 1, 216, 9>}, {transform_indices = @transform_1, window_bounds = array<i64: 216, 1>}, {pipeline_mode = #tpu.pipeline_mode<synchronous>, transform_indices = @transform_2, window_bounds = array<i64: 9, 32>}, {pipeline_mode = #tpu.pipeline_mode<synchronous>, transform_indices = @transform_3, window_bounds = array<i64: 1, 32>}, {transform_indices = @transform_4, window_bounds = array<i64: 1, 216, 32>}]} {
    %c0 = arith.constant 0 : index
    %c0_0 = arith.constant 0 : index
    %c0_1 = arith.constant 0 : index
    %0 = vector.load %arg2[%c0, %c0_0, %c0_1] : memref<1x216x9xf32, #tpu.memory_space<vmem>>, vector<1x216x9xf32>
    %1 = vector.shape_cast %0 : vector<1x216x9xf32> to vector<216x9xf32>
    %c0_2 = arith.constant 0 : index
    %c0_3 = arith.constant 0 : index
    %2 = vector.load %arg4[%c0_2, %c0_3] : memref<9x32xf32, #tpu.memory_space<vmem>>, vector<9x32xf32>
    %cst = arith.constant 0.000000e+00 : f32
    %3 = vector.broadcast %cst : f32 to vector<216x32xf32>
    %c0_4 = arith.constant 0 : index
    %c0_5 = arith.constant 0 : index
    %4 = vector.load %arg5[%c0_4, %c0_5] : memref<1x32xf32, #tpu.memory_space<vmem>>, vector<1x32xf32>
    %5 = vector.broadcast %4 : vector<1x32xf32> to vector<216x32xf32>
    %6 = arith.addf %3, %5 : vector<216x32xf32>
    %7 = vector.extract_strided_slice %1 {offsets = [0, 0], sizes = [216, 1], strides = [1, 1]} : vector<216x9xf32> to vector<216x1xf32>
    %8 = vector.extract_strided_slice %2 {offsets = [0, 0], sizes = [1, 32], strides = [1, 1]} : vector<9x32xf32> to vector<1x32xf32>
    %9 = vector.broadcast %7 : vector<216x1xf32> to vector<216x32xf32>
    %10 = vector.broadcast %8 : vector<1x32xf32> to vector<216x32xf32>
    %11 = arith.mulf %9, %10 : vector<216x32xf32>
    %12 = arith.addf %6, %11 : vector<216x32xf32>
    %13 = vector.extract_strided_slice %1 {offsets = [0, 1], sizes = [216, 1], strides = [1, 1]} : vector<216x9xf32> to vector<216x1xf32>
    %14 = vector.extract_strided_slice %2 {offsets = [1, 0], sizes = [1, 32], strides = [1, 1]} : vector<9x32xf32> to vector<1x32xf32>
    %15 = vector.broadcast %13 : vector<216x1xf32> to vector<216x32xf32>
    %16 = vector.broadcast %14 : vector<1x32xf32> to vector<216x32xf32>
    %17 = arith.mulf %15, %16 : vector<216x32xf32>
    %18 = arith.addf %12, %17 : vector<216x32xf32>
    %19 = vector.extract_strided_slice %1 {offsets = [0, 2], sizes = [216, 1], strides = [1, 1]} : vector<216x9xf32> to vector<216x1xf32>
    %20 = vector.extract_strided_slice %2 {offsets = [2, 0], sizes = [1, 32], strides = [1, 1]} : vector<9x32xf32> to vector<1x32xf32>
    %21 = vector.broadcast %19 : vector<216x1xf32> to vector<216x32xf32>
    %22 = vector.broadcast %20 : vector<1x32xf32> to vector<216x32xf32>
    %23 = arith.mulf %21, %22 : vector<216x32xf32>
    %24 = arith.addf %18, %23 : vector<216x32xf32>
    %25 = vector.extract_strided_slice %1 {offsets = [0, 3], sizes = [216, 1], strides = [1, 1]} : vector<216x9xf32> to vector<216x1xf32>
    %26 = vector.extract_strided_slice %2 {offsets = [3, 0], sizes = [1, 32], strides = [1, 1]} : vector<9x32xf32> to vector<1x32xf32>
    %27 = vector.broadcast %25 : vector<216x1xf32> to vector<216x32xf32>
    %28 = vector.broadcast %26 : vector<1x32xf32> to vector<216x32xf32>
    %29 = arith.mulf %27, %28 : vector<216x32xf32>
    %30 = arith.addf %24, %29 : vector<216x32xf32>
    %31 = vector.extract_strided_slice %1 {offsets = [0, 4], sizes = [216, 1], strides = [1, 1]} : vector<216x9xf32> to vector<216x1xf32>
    %32 = vector.extract_strided_slice %2 {offsets = [4, 0], sizes = [1, 32], strides = [1, 1]} : vector<9x32xf32> to vector<1x32xf32>
    %33 = vector.broadcast %31 : vector<216x1xf32> to vector<216x32xf32>
    %34 = vector.broadcast %32 : vector<1x32xf32> to vector<216x32xf32>
    %35 = arith.mulf %33, %34 : vector<216x32xf32>
    %36 = arith.addf %30, %35 : vector<216x32xf32>
    %37 = vector.extract_strided_slice %1 {offsets = [0, 5], sizes = [216, 1], strides = [1, 1]} : vector<216x9xf32> to vector<216x1xf32>
    %38 = vector.extract_strided_slice %2 {offsets = [5, 0], sizes = [1, 32], strides = [1, 1]} : vector<9x32xf32> to vector<1x32xf32>
    %39 = vector.broadcast %37 : vector<216x1xf32> to vector<216x32xf32>
    %40 = vector.broadcast %38 : vector<1x32xf32> to vector<216x32xf32>
    %41 = arith.mulf %39, %40 : vector<216x32xf32>
    %42 = arith.addf %36, %41 : vector<216x32xf32>
    %43 = vector.extract_strided_slice %1 {offsets = [0, 6], sizes = [216, 1], strides = [1, 1]} : vector<216x9xf32> to vector<216x1xf32>
    %44 = vector.extract_strided_slice %2 {offsets = [6, 0], sizes = [1, 32], strides = [1, 1]} : vector<9x32xf32> to vector<1x32xf32>
    %45 = vector.broadcast %43 : vector<216x1xf32> to vector<216x32xf32>
    %46 = vector.broadcast %44 : vector<1x32xf32> to vector<216x32xf32>
    %47 = arith.mulf %45, %46 : vector<216x32xf32>
    %48 = arith.addf %42, %47 : vector<216x32xf32>
    %49 = vector.extract_strided_slice %1 {offsets = [0, 7], sizes = [216, 1], strides = [1, 1]} : vector<216x9xf32> to vector<216x1xf32>
    %50 = vector.extract_strided_slice %2 {offsets = [7, 0], sizes = [1, 32], strides = [1, 1]} : vector<9x32xf32> to vector<1x32xf32>
    %51 = vector.broadcast %49 : vector<216x1xf32> to vector<216x32xf32>
    %52 = vector.broadcast %50 : vector<1x32xf32> to vector<216x32xf32>
    %53 = arith.mulf %51, %52 : vector<216x32xf32>
    %54 = arith.addf %48, %53 : vector<216x32xf32>
    %55 = vector.extract_strided_slice %1 {offsets = [0, 8], sizes = [216, 1], strides = [1, 1]} : vector<216x9xf32> to vector<216x1xf32>
    %56 = vector.extract_strided_slice %2 {offsets = [8, 0], sizes = [1, 32], strides = [1, 1]} : vector<9x32xf32> to vector<1x32xf32>
    %57 = vector.broadcast %55 : vector<216x1xf32> to vector<216x32xf32>
    %58 = vector.broadcast %56 : vector<1x32xf32> to vector<216x32xf32>
    %59 = arith.mulf %57, %58 : vector<216x32xf32>
    %60 = arith.addf %54, %59 : vector<216x32xf32>
    %cst_6 = arith.constant 0.000000e+00 : f32
    %61 = vector.broadcast %cst_6 : f32 to vector<216x32xf32>
    %62 = arith.maximumf %60, %61 : vector<216x32xf32>
    %c0_7 = arith.constant 0 : index
    %c0_8 = arith.constant 0 : index
    %63 = vector.load %arg3[%c0_7, %c0_8] : memref<216x1xf32, #tpu.memory_space<vmem>>, vector<216x1xf32>
    %64 = vector.broadcast %63 : vector<216x1xf32> to vector<216x32xf32>
    %65 = arith.mulf %62, %64 : vector<216x32xf32>
    %66 = arith.truncf %65 : vector<216x32xf32> to vector<216x32xbf16>
    %c0_9 = arith.constant 0 : index
    %c0_10 = arith.constant 0 : index
    %c0_11 = arith.constant 0 : index
    %67 = vector.load %arg6[%c0_9, %c0_10, %c0_11] : memref<1x216x32xbf16, #tpu.memory_space<vmem>>, vector<1x216x32xbf16>
    %68 = vector.shape_cast %67 : vector<1x216x32xbf16> to vector<216x32xbf16>
    %69 = vector.shape_cast %66 : vector<216x32xbf16> to vector<1x216x32xbf16>
    tpu.vector_store %arg6[%c0_9, %c0_10, %c0_11], %69 {strides = array<i32>} : memref<1x216x32xbf16, #tpu.memory_space<vmem>>, vector<1x216x32xbf16>,
    return
  }
  func.func @transform_0(%arg0: i32, %arg1: i32) -> (i32, i32, i32) {
    %c0_i32 = arith.constant 0 : i32
    %c0_i32_0 = arith.constant 0 : i32
    return %arg0, %arg1, %c0_i32 : i32, i32, i32
  }
  func.func @transform_1(%arg0: i32, %arg1: i32) -> (i32, i32) {
    %c0_i32 = arith.constant 0 : i32
    %c0_i32_0 = arith.constant 0 : i32
    return %arg1, %c0_i32 : i32, i32
  }
  func.func @transform_2(%arg0: i32, %arg1: i32) -> (i32, i32) {
    %c0_i32 = arith.constant 0 : i32
    %c0_i32_0 = arith.constant 0 : i32
    %c0_i32_1 = arith.constant 0 : i32
    return %c0_i32, %c0_i32_0 : i32, i32
  }
  func.func @transform_3(%arg0: i32, %arg1: i32) -> (i32, i32) {
    %c0_i32 = arith.constant 0 : i32
    %c0_i32_0 = arith.constant 0 : i32
    %c0_i32_1 = arith.constant 0 : i32
    return %c0_i32, %c0_i32_0 : i32, i32
  }
  func.func @transform_4(%arg0: i32, %arg1: i32) -> (i32, i32, i32) {
    %c0_i32 = arith.constant 0 : i32
    %c0_i32_0 = arith.constant 0 : i32
    return %arg0, %arg1, %c0_i32 : i32, i32, i32
  }
}

module attributes {stable_mosaic.version = 11 : i64} {
  func.func @_conv2_linear_pe_kernel(%arg0: i32, %arg1: i32, %arg2: memref<1x3x8x288xbf16, #tpu.memory_space<vmem>>, %arg3: memref<288x32xbf16, #tpu.memory_space<vmem>>, %arg4: memref<1x32xf32, #tpu.memory_space<vmem>>, %arg5: memref<3x32x32xbf16, #tpu.memory_space<vmem>>, %arg6: memref<1x32xf32, #tpu.memory_space<vmem>>, %arg7: memref<8x32xf32, #tpu.memory_space<vmem>>, %arg8: memref<1x8x32xf32, #tpu.memory_space<vmem>>) attributes {dimension_semantics = [#tpu.dimension_semantics<parallel>, #tpu.dimension_semantics<parallel>], iteration_bounds = array<i64: 2, 1>, scalar_prefetch = 0 : i64, scratch_operands = 0 : i64, tpu.core_type = #tpu.core_type<tc>, window_params = [{transform_indices = @transform_0, window_bounds = array<i64: 1, 3, 8, 288>}, {pipeline_mode = #tpu.pipeline_mode<synchronous>, transform_indices = @transform_1, window_bounds = array<i64: 288, 32>}, {pipeline_mode = #tpu.pipeline_mode<synchronous>, transform_indices = @transform_2, window_bounds = array<i64: 1, 32>}, {pipeline_mode = #tpu.pipeline_mode<synchronous>, transform_indices = @transform_3, window_bounds = array<i64: 3, 32, 32>}, {pipeline_mode = #tpu.pipeline_mode<synchronous>, transform_indices = @transform_4, window_bounds = array<i64: 1, 32>}, {transform_indices = @transform_5, window_bounds = array<i64: 8, 32>}, {transform_indices = @transform_6, window_bounds = array<i64: 1, 8, 32>}]} {
    %c0 = arith.constant 0 : index
    %c0_0 = arith.constant 0 : index
    %0 = vector.load %arg3[%c0, %c0_0] : memref<288x32xbf16, #tpu.memory_space<vmem>>, vector<288x32xbf16>
    %c0_1 = arith.constant 0 : index
    %c0_2 = arith.constant 0 : index
    %1 = vector.load %arg4[%c0_1, %c0_2] : memref<1x32xf32, #tpu.memory_space<vmem>>, vector<1x32xf32>
    %cst = arith.constant 0.000000e+00 : f32
    %2 = vector.broadcast %cst : f32 to vector<8x32xf32>
    %c0_3 = arith.constant 0 : index
    %c0_4 = arith.constant 0 : index
    %c0_5 = arith.constant 0 : index
    %c0_6 = arith.constant 0 : index
    %3 = vector.load %arg2[%c0_3, %c0_4, %c0_5, %c0_6] : memref<1x3x8x288xbf16, #tpu.memory_space<vmem>>, vector<1x1x8x288xbf16>
    %4 = vector.shape_cast %3 : vector<1x1x8x288xbf16> to vector<8x288xbf16>
    %cst_7 = arith.constant dense<0.000000e+00> : vector<8x32xf32>
    %5 = tpu.matmul %4, %0, %cst_7 {dimension_numbers = #tpu.dot_dimension_numbers<[1], [0], [0], [1], [0, 0, 1, 1], [], []>} : vector<8x288xbf16>, vector<288x32xbf16>, vector<8x32xf32> -> vector<8x32xf32>
    %6 = vector.broadcast %1 : vector<1x32xf32> to vector<8x32xf32>
    %7 = arith.addf %5, %6 : vector<8x32xf32>
    %cst_8 = arith.constant 0.000000e+00 : f32
    %8 = vector.broadcast %cst_8 : f32 to vector<8x32xf32>
    %9 = arith.maximumf %7, %8 : vector<8x32xf32>
    %10 = arith.truncf %9 : vector<8x32xf32> to vector<8x32xbf16>
    %c0_9 = arith.constant 0 : index
    %c0_10 = arith.constant 0 : index
    %c0_11 = arith.constant 0 : index
    %11 = vector.load %arg5[%c0_9, %c0_10, %c0_11] : memref<3x32x32xbf16, #tpu.memory_space<vmem>>, vector<1x32x32xbf16>
    %12 = vector.shape_cast %11 : vector<1x32x32xbf16> to vector<32x32xbf16>
    %cst_12 = arith.constant dense<0.000000e+00> : vector<8x32xf32>
    %13 = tpu.matmul %10, %12, %cst_12 {dimension_numbers = #tpu.dot_dimension_numbers<[1], [0], [0], [1], [0, 0, 1, 1], [], []>} : vector<8x32xbf16>, vector<32x32xbf16>, vector<8x32xf32> -> vector<8x32xf32>
    %14 = arith.addf %2, %13 : vector<8x32xf32>
    %c0_13 = arith.constant 0 : index
    %c1 = arith.constant 1 : index
    %c0_14 = arith.constant 0 : index
    %c0_15 = arith.constant 0 : index
    %15 = vector.load %arg2[%c0_13, %c1, %c0_14, %c0_15] : memref<1x3x8x288xbf16, #tpu.memory_space<vmem>>, vector<1x1x8x288xbf16>
    %16 = vector.shape_cast %15 : vector<1x1x8x288xbf16> to vector<8x288xbf16>
    %cst_16 = arith.constant dense<0.000000e+00> : vector<8x32xf32>
    %17 = tpu.matmul %16, %0, %cst_16 {dimension_numbers = #tpu.dot_dimension_numbers<[1], [0], [0], [1], [0, 0, 1, 1], [], []>} : vector<8x288xbf16>, vector<288x32xbf16>, vector<8x32xf32> -> vector<8x32xf32>
    %18 = vector.broadcast %1 : vector<1x32xf32> to vector<8x32xf32>
    %19 = arith.addf %17, %18 : vector<8x32xf32>
    %cst_17 = arith.constant 0.000000e+00 : f32
    %20 = vector.broadcast %cst_17 : f32 to vector<8x32xf32>
    %21 = arith.maximumf %19, %20 : vector<8x32xf32>
    %22 = arith.truncf %21 : vector<8x32xf32> to vector<8x32xbf16>
    %c1_18 = arith.constant 1 : index
    %c0_19 = arith.constant 0 : index
    %c0_20 = arith.constant 0 : index
    %23 = vector.load %arg5[%c1_18, %c0_19, %c0_20] : memref<3x32x32xbf16, #tpu.memory_space<vmem>>, vector<1x32x32xbf16>
    %24 = vector.shape_cast %23 : vector<1x32x32xbf16> to vector<32x32xbf16>
    %cst_21 = arith.constant dense<0.000000e+00> : vector<8x32xf32>
    %25 = tpu.matmul %22, %24, %cst_21 {dimension_numbers = #tpu.dot_dimension_numbers<[1], [0], [0], [1], [0, 0, 1, 1], [], []>} : vector<8x32xbf16>, vector<32x32xbf16>, vector<8x32xf32> -> vector<8x32xf32>
    %26 = arith.addf %14, %25 : vector<8x32xf32>
    %c0_22 = arith.constant 0 : index
    %c2 = arith.constant 2 : index
    %c0_23 = arith.constant 0 : index
    %c0_24 = arith.constant 0 : index
    %27 = vector.load %arg2[%c0_22, %c2, %c0_23, %c0_24] : memref<1x3x8x288xbf16, #tpu.memory_space<vmem>>, vector<1x1x8x288xbf16>
    %28 = vector.shape_cast %27 : vector<1x1x8x288xbf16> to vector<8x288xbf16>
    %cst_25 = arith.constant dense<0.000000e+00> : vector<8x32xf32>
    %29 = tpu.matmul %28, %0, %cst_25 {dimension_numbers = #tpu.dot_dimension_numbers<[1], [0], [0], [1], [0, 0, 1, 1], [], []>} : vector<8x288xbf16>, vector<288x32xbf16>, vector<8x32xf32> -> vector<8x32xf32>
    %30 = vector.broadcast %1 : vector<1x32xf32> to vector<8x32xf32>
    %31 = arith.addf %29, %30 : vector<8x32xf32>
    %cst_26 = arith.constant 0.000000e+00 : f32
    %32 = vector.broadcast %cst_26 : f32 to vector<8x32xf32>
    %33 = arith.maximumf %31, %32 : vector<8x32xf32>
    %34 = arith.truncf %33 : vector<8x32xf32> to vector<8x32xbf16>
    %c2_27 = arith.constant 2 : index
    %c0_28 = arith.constant 0 : index
    %c0_29 = arith.constant 0 : index
    %35 = vector.load %arg5[%c2_27, %c0_28, %c0_29] : memref<3x32x32xbf16, #tpu.memory_space<vmem>>, vector<1x32x32xbf16>
    %36 = vector.shape_cast %35 : vector<1x32x32xbf16> to vector<32x32xbf16>
    %cst_30 = arith.constant dense<0.000000e+00> : vector<8x32xf32>
    %37 = tpu.matmul %34, %36, %cst_30 {dimension_numbers = #tpu.dot_dimension_numbers<[1], [0], [0], [1], [0, 0, 1, 1], [], []>} : vector<8x32xbf16>, vector<32x32xbf16>, vector<8x32xf32> -> vector<8x32xf32>
    %38 = arith.addf %26, %37 : vector<8x32xf32>
    %c0_31 = arith.constant 0 : index
    %c0_32 = arith.constant 0 : index
    %39 = vector.load %arg6[%c0_31, %c0_32] : memref<1x32xf32, #tpu.memory_space<vmem>>, vector<1x32xf32>
    %40 = vector.broadcast %39 : vector<1x32xf32> to vector<8x32xf32>
    %41 = arith.addf %38, %40 : vector<8x32xf32>
    %cst_33 = arith.constant 5.65685415 : f32
    %42 = vector.broadcast %cst_33 : f32 to vector<8x32xf32>
    %43 = arith.mulf %41, %42 : vector<8x32xf32>
    %c0_34 = arith.constant 0 : index
    %c0_35 = arith.constant 0 : index
    %44 = vector.load %arg7[%c0_34, %c0_35] : memref<8x32xf32, #tpu.memory_space<vmem>>, vector<8x32xf32>
    %45 = arith.addf %43, %44 : vector<8x32xf32>
    %c0_36 = arith.constant 0 : index
    %c0_37 = arith.constant 0 : index
    %c0_38 = arith.constant 0 : index
    %46 = vector.load %arg8[%c0_36, %c0_37, %c0_38] : memref<1x8x32xf32, #tpu.memory_space<vmem>>, vector<1x8x32xf32>
    %47 = vector.shape_cast %46 : vector<1x8x32xf32> to vector<8x32xf32>
    %48 = vector.shape_cast %45 : vector<8x32xf32> to vector<1x8x32xf32>
    tpu.vector_store %arg8[%c0_36, %c0_37, %c0_38], %48 {strides = array<i32>} : memref<1x8x32xf32, #tpu.memory_space<vmem>>, vector<1x8x32xf32>,
    return
  }
  func.func @transform_0(%arg0: i32, %arg1: i32) -> (i32, i32, i32, i32) {
    %c0_i32 = arith.constant 0 : i32
    %c0_i32_0 = arith.constant 0 : i32
    %c0_i32_1 = arith.constant 0 : i32
    return %arg0, %c0_i32, %arg1, %c0_i32_0 : i32, i32, i32, i32
  }
  func.func @transform_1(%arg0: i32, %arg1: i32) -> (i32, i32) {
    %c0_i32 = arith.constant 0 : i32
    %c0_i32_0 = arith.constant 0 : i32
    %c0_i32_1 = arith.constant 0 : i32
    return %c0_i32, %c0_i32_0 : i32, i32
  }
  func.func @transform_2(%arg0: i32, %arg1: i32) -> (i32, i32) {
    %c0_i32 = arith.constant 0 : i32
    %c0_i32_0 = arith.constant 0 : i32
    %c0_i32_1 = arith.constant 0 : i32
    return %c0_i32, %c0_i32_0 : i32, i32
  }
  func.func @transform_3(%arg0: i32, %arg1: i32) -> (i32, i32, i32) {
    %c0_i32 = arith.constant 0 : i32
    %c0_i32_0 = arith.constant 0 : i32
    %c0_i32_1 = arith.constant 0 : i32
    %c0_i32_2 = arith.constant 0 : i32
    return %c0_i32, %c0_i32_0, %c0_i32_1 : i32, i32, i32
  }
  func.func @transform_4(%arg0: i32, %arg1: i32) -> (i32, i32) {
    %c0_i32 = arith.constant 0 : i32
    %c0_i32_0 = arith.constant 0 : i32
    %c0_i32_1 = arith.constant 0 : i32
    return %c0_i32, %c0_i32_0 : i32, i32
  }
  func.func @transform_5(%arg0: i32, %arg1: i32) -> (i32, i32) {
    %c0_i32 = arith.constant 0 : i32
    %c0_i32_0 = arith.constant 0 : i32
    return %arg1, %c0_i32 : i32, i32
  }
  func.func @transform_6(%arg0: i32, %arg1: i32) -> (i32, i32, i32) {
    %c0_i32 = arith.constant 0 : i32
    %c0_i32_0 = arith.constant 0 : i32
    return %arg0, %arg1, %c0_i32 : i32, i32, i32
  }
}

</mosaic_0001>

<llo_original>
// kernel: causal_conv2d_subsampling.2
$region0: #{causal_conv2d_subsampling.2}
  #allocation0 [shape = 'u32[]', space=smem, size = 0x4, offset = 0x4, fixed_abs, tag = 'smem constant byte address 0x4 - core index']
  #allocation1 [shape = 'u32[144,128]{1,0:T(1,128)}', space=vmem, size = 0x12000, scoped, tag = 'internal scratch']
  %s0 = inlined_call_operand.hbm [shape: f32[2,216,9], index: 0, kind: input, shape index: {}]
  %s1 = inlined_call_operand.hbm [shape: f32[216,1], index: 1, kind: input, shape index: {}]
  %s2 = inlined_call_operand.hbm [shape: f32[9,32], index: 2, kind: input, shape index: {}]
  %s3 = inlined_call_operand.hbm [shape: f32[1,32], index: 3, kind: input, shape index: {}]
  %s4 = inlined_call_operand.hbm [shape: bf16[2,216,32], index: 4, kind: output, shape index: {}]
  %s5 = sld [smem:[#allocation0]]
  $region65: #{causal_conv2d_subsampling.2} parent=0
    _
  %s7 = ssub.s32 1, %s5
  %s8 = scalar_select 0, %s7, %s5
  $region1: #{causal_conv2d_subsampling.2} parent=0
    #allocation2 [shape = 'u8[221184]{0}', space=vmem, size = 0x36000, scoped, tag = 'input window, operand 0']
    #allocation3 [shape = 's32[2]{0}', space=sflag, size = 0x8, scoped, tag = 'scoped memory for causal_conv2d_subsampling.2']
    #allocation4 [shape = 's32[2]{0}', space=sflag, size = 0x8, scoped, tag = 'scoped memory for causal_conv2d_subsampling.2']
    #allocation5 [shape = 'u8[110592]{0}', space=vmem, size = 0x1b000, scoped, tag = 'input window, operand 1, single buffered']
    #allocation6 [shape = 's32[1]{0}', space=sflag, size = 0x4, scoped, tag = 'scoped memory for causal_conv2d_subsampling.2']
    #allocation7 [shape = 'u8[8192]{0}', space=vmem, size = 0x2000, scoped, tag = 'input window, operand 2, single buffered']
    #allocation8 [shape = 'u8[512]{0}', space=vmem, size = 0x400, scoped, tag = 'input window, operand 3, single buffered']
    #allocation9 [shape = 's32[1]{0}', space=sflag, size = 0x4, scoped, tag = 'scoped memory for causal_conv2d_subsampling.2']
    #allocation10 [shape = 'u8[110592]{0}', space=vmem, size = 0x1b000, scoped, tag = 'output window, operand 0']
    %9 = vsyncpa [#allocation3], 0
    %s10 = scalar_lea.sflag [#allocation3], 1
    %11 = vsyncpa %s10, 0
    %12 = vsyncpa [#allocation6], 0
    %13 = vsyncpa [#allocation9], 0
    %14 = vsyncpa [#allocation4], 0
    %s15 = scalar_lea.sflag [#allocation4], 1
    %16 = vsyncpa %s15, 0
    loop: start=0, step=1, limit=4
    $region2: #{causal_conv2d_subsampling.2} parent=1 // loop_pre_header
      _
    $region3: #{causal_conv2d_subsampling.2} parent=1 // loop_header
      %s18 = sphi 0, %s22
      %p19 = scmp.ge.s32.totalorder %s18, 4
      %s25 = sphi 0, %s37
      %s26 = sphi 0, %s33
      %s27 = sphi 0, %s25
      %s28 = sphi 0, %s26
      %s29 = sphi 0, %s27
      %s30 = sphi 0, %s28
      %s42 = sphi 0, %s44
      %s45 = sphi 0, %s42
      %s46 = sphi 0, %s45
      %s62 = sphi 0, %s46
      %s68 = sphi 0, %s70
      %s71 = sphi 0, %s68
      %s72 = sphi 0, %s71
      %s88 = sphi 0, %s72
      %s92 = sphi 0, %s92
      %s94 = sphi 0, %s92
      %s95 = sphi 0, %s94
      %s109 = sphi 0, %s95
      %s113 = sphi 0, %s113
      %s115 = sphi 0, %s113
      %s116 = sphi 0, %s115
      %s130 = sphi 0, %s116
      %s138 = sphi 0, %s140
      %s141 = sphi 0, %s138
      %s142 = sphi 0, %s141
      %s158 = sphi 0, %s142
    $region4: #{causal_conv2d_subsampling.2} parent=1 // loop_header_branch
      %21 = sbr.rel (%p19) target = $region8
    $region5: #{causal_conv2d_subsampling.2} parent=1 // loop_body
      %s23 = ssub.s32 %s18, 1
      %s24 = ssub.s32 %s18, 2
      %s31 = sadd.s32 1, %s26
      %p32 = scmp.ge.s32.totalorder %s31, 1
      %s33 = scalar_select %p32, 0, %s31
      %s34 = sadd.s32 1, %s25
      %s35 = scalar_select %p32, %s34, %s25
      %p36 = scmp.ge.s32.totalorder %s35, 2
      %s37 = scalar_select %p36, 0, %s35
      %s38 = ssub.s32 %s25, %s37
      %s39 = ssub.s32 %s26, %s33
      %s40 = sor.u32 %s38, %s39
      %p41 = scmp.eq.s32.totalorder %s40, 0
      %s43 = sadd.s32 %s42, 1
      %s44 = scalar_select %p41, %s42, %s43
      %p47 = pneg %p41
      %p48 = scmp.eq.s32.totalorder %s18, 1
      %p49 = por %p47, %p48
      %p50 = scmp.ne.s32.totalorder %s42, %s45
      %p51 = scmp.eq.s32.totalorder %s18, 0
      %p52 = por %p50, %p51
      %p53 = scmp.ne.s32.totalorder %s42, %s45
      %p54 = scmp.eq.s32.totalorder %s23, 1
      %p55 = por %p53, %p54
      %p56 = scmp.ne.s32.totalorder %s45, %s46
      %p57 = scmp.eq.s32.totalorder %s23, 0
      %p58 = por %p56, %p57
      %p59 = scmp.ne.s32.totalorder %s45, %s46
      %p60 = scmp.eq.s32.totalorder %s24, 1
      %p61 = por %p59, %p60
      %p63 = scmp.ne.s32.totalorder %s46, %s62
      %p64 = scmp.eq.s32.totalorder %s24, 0
      %p65 = por %p63, %p64
      %s66 = ssub.s32 %s26, %s33
      %p67 = scmp.eq.s32.totalorder %s66, 0
      %s69 = sadd.s32 %s68, 1
      %s70 = scalar_select %p67, %s68, %s69
      %p73 = pneg %p67
      %p74 = scmp.eq.s32.totalorder %s18, 1
      %p75 = por %p73, %p74
      %p76 = scmp.ne.s32.totalorder %s68, %s71
      %p77 = scmp.eq.s32.totalorder %s18, 0
      %p78 = por %p76, %p77
      %p79 = scmp.ne.s32.totalorder %s68, %s71
      %p80 = scmp.eq.s32.totalorder %s23, 1
      %p81 = por %p79, %p80
      %p82 = scmp.ne.s32.totalorder %s71, %s72
      %p83 = scmp.eq.s32.totalorder %s23, 0
      %p84 = por %p82, %p83
      %p85 = scmp.ne.s32.totalorder %s71, %s72
      %p86 = scmp.eq.s32.totalorder %s24, 1
      %p87 = por %p85, %p86
      %p89 = scmp.ne.s32.totalorder %s72, %s88
      %p90 = scmp.eq.s32.totalorder %s24, 0
      %p91 = por %p89, %p90
      %s93 = sadd.s32 %s92, 1
      %p96 = scmp.eq.s32.totalorder %s18, 1
      %p97 = scmp.ne.s32.totalorder %s92, %s94
      %p98 = scmp.eq.s32.totalorder %s18, 0
      %p99 = por %p97, %p98
      %p100 = scmp.ne.s32.totalorder %s92, %s94
      %p101 = scmp.eq.s32.totalorder %s23, 1
      %p102 = por %p100, %p101
      %p103 = scmp.ne.s32.totalorder %s94, %s95
      %p104 = scmp.eq.s32.totalorder %s23, 0
      %p105 = por %p103, %p104
      %p106 = scmp.ne.s32.totalorder %s94, %s95
      %p107 = scmp.eq.s32.totalorder %s24, 1
      %p108 = por %p106, %p107
      %p110 = scmp.ne.s32.totalorder %s95, %s109
      %p111 = scmp.eq.s32.totalorder %s24, 0
      %p112 = por %p110, %p111
      %s114 = sadd.s32 %s113, 1
      %p117 = scmp.eq.s32.totalorder %s18, 1
      %p118 = scmp.ne.s32.totalorder %s113, %s115
      %p119 = scmp.eq.s32.totalorder %s18, 0
      %p120 = por %p118, %p119
      %p121 = scmp.ne.s32.totalorder %s113, %s115
      %p122 = scmp.eq.s32.totalorder %s23, 1
      %p123 = por %p121, %p122
      %p124 = scmp.ne.s32.totalorder %s115, %s116
      %p125 = scmp.eq.s32.totalorder %s23, 0
      %p126 = por %p124, %p125
      %p127 = scmp.ne.s32.totalorder %s115, %s116
      %p128 = scmp.eq.s32.totalorder %s24, 1
      %p129 = por %p127, %p128
      %p131 = scmp.ne.s32.totalorder %s116, %s130
      %p132 = scmp.eq.s32.totalorder %s24, 0
      %p133 = por %p131, %p132
      %s134 = ssub.s32 %s25, %s37
      %s135 = ssub.s32 %s26, %s33
      %s136 = sor.u32 %s134, %s135
      %p137 = scmp.eq.s32.totalorder %s136, 0
      %s139 = sadd.s32 %s138, 1
      %s140 = scalar_select %p137, %s138, %s139
      %p143 = pneg %p137
      %p144 = scmp.eq.s32.totalorder %s18, 1
      %p145 = por %p143, %p144
      %p146 = scmp.ne.s32.totalorder %s138, %s141
      %p147 = scmp.eq.s32.totalorder %s18, 0
      %p148 = por %p146, %p147
      %p149 = scmp.ne.s32.totalorder %s138, %s141
      %p150 = scmp.eq.s32.totalorder %s23, 1
      %p151 = por %p149, %p150
      %p152 = scmp.ne.s32.totalorder %s141, %s142
      %p153 = scmp.eq.s32.totalorder %s23, 0
      %p154 = por %p152, %p153
      %p155 = scmp.ne.s32.totalorder %s141, %s142
      %p156 = scmp.eq.s32.totalorder %s24, 1
      %p157 = por %p155, %p156
      %p159 = scmp.ne.s32.totalorder %s142, %s158
      %p160 = scmp.eq.s32.totalorder %s24, 0
      %p161 = por %p159, %p160
      %p162 = scmp.le.s32.totalorder 1, %s18
      %p163 = scmp.lt.s32.totalorder %s18, 3
      %p164 = pnand %p162, %p163
      %p165 = pneg %p164
      // Predicated region
      $region9: #{causal_conv2d_subsampling.2} parent=5 // pred_check
        _
      $region10: #{causal_conv2d_subsampling.2} parent=5 // pred_check_branch
        %167 = sbr.rel (%p164) target = $region12
      $region11: #{causal_conv2d_subsampling.2} parent=5 // pred_region
        %s168 = ssub.s32 %s18, 1
        // Predicated region
        $region13: #{causal_conv2d_subsampling.2} parent=11 // pred_check
          %p169 = pneg %p84
        $region14: #{causal_conv2d_subsampling.2} parent=11 // pred_check_branch
          %171 = sbr.rel (%p169) target = $region16
        $region15: #{causal_conv2d_subsampling.2} parent=11 // pred_region
          %s172 = smul.u32 27, %s28
          %s174 = ssub.s32 3456, 3456
          %175 = vsyncadd [#allocation6], %s174
          %s176 = smul.addr %s172, 128
          %s177 = scalar_lea.hbm %s1, %s176
          %s178 = sshll.u32 [#allocation5], 4
          %s179 = int_to_ptr.vmem [resolvable:$true] %s178
          %184 = dma.hbm_to_vmem [thread:$0]  %s177, 3456, %s179, [#allocation6], 128, 128, 8
        $region16: #{causal_conv2d_subsampling.2} parent=11 // pred_fallthru
          _
        // Predicated region
        $region17: #{causal_conv2d_subsampling.2} parent=11 // pred_check
          %p185 = pneg %p105
        $region18: #{causal_conv2d_subsampling.2} parent=11 // pred_check_branch
          %187 = sbr.rel (%p185) target = $region20
        $region19: #{causal_conv2d_subsampling.2} parent=11 // pred_region
          %s189 = ssub.s32 256, 256
          %190 = vsyncadd [#allocation6], %s189
          %s191 = sshll.u32 [#allocation7], 4
          %s192 = int_to_ptr.vmem [resolvable:$true] %s191
          %197 = dma.hbm_to_vmem [thread:$0]  %s2, 256, %s192, [#allocation6], 128, 128, 8
        $region20: #{causal_conv2d_subsampling.2} parent=11 // pred_fallthru
          _
        // Predicated region
        $region21: #{causal_conv2d_subsampling.2} parent=11 // pred_check
          %p198 = pneg %p126
        $region22: #{causal_conv2d_subsampling.2} parent=11 // pred_check_branch
          %200 = sbr.rel (%p198) target = $region24
        $region23: #{causal_conv2d_subsampling.2} parent=11 // pred_region
          %s202 = ssub.s32 16, 16
          %203 = vsyncadd [#allocation9], %s202
          %s205 = sshll.u32 [#allocation8], 4
          %s206 = int_to_ptr.vmem [resolvable:$true] %s205
          %208 = dma.hbm_to_vmem [thread:$0]  %s3, 16, %s206, [#allocation9]
        $region24: #{causal_conv2d_subsampling.2} parent=11 // pred_fallthru
          _
      $region12: #{causal_conv2d_subsampling.2} parent=5 // pred_fallthru
        _
      %p209 = scmp.lt.s32.totalorder %s18, 2
      // Predicated region
      $region25: #{causal_conv2d_subsampling.2} parent=5 // pred_check
        %p210 = pneg %p209
      $region26: #{causal_conv2d_subsampling.2} parent=5 // pred_check_branch
        %212 = sbr.rel (%p210) target = $region28
      $region27: #{causal_conv2d_subsampling.2} parent=5 // pred_region
        // Predicated region
        $region29: #{causal_conv2d_subsampling.2} parent=27 // pred_check
          %p213 = pneg %p52
        $region30: #{causal_conv2d_subsampling.2} parent=27 // pred_check_branch
          %215 = sbr.rel (%p213) target = $region32
        $region31: #{causal_conv2d_subsampling.2} parent=27 // pred_region
          %s216 = sand.u32 %s42, 1
          %s217 = scalar_lea.sflag [#allocation3], %s216
          %s218 = sand.u32 %s42, 1
          %s219 = smul.addr %s218, 216
          %s220 = scalar_lea.vmem [#allocation2], %s219
          %s221 = smul.u32 27, %s26
          %s223 = ssub.s32 3456, 3456
          %224 = vsyncadd %s217, %s223
          %s225 = smul.addr %s25, 27
          %s226 = sadd.s32 %s221, %s225
          %s227 = smul.addr %s226, 128
          %s228 = scalar_lea.hbm %s0, %s227
          %s229 = sshll.u32 %s220, 4
          %s230 = int_to_ptr.vmem [resolvable:$true] %s229
          %235 = dma.hbm_to_vmem [thread:$0]  %s228, 3456, %s230, %s217, 128, 128, 8
        $region32: #{causal_conv2d_subsampling.2} parent=27 // pred_fallthru
          _
      $region28: #{causal_conv2d_subsampling.2} parent=5 // pred_fallthru
        _
      %p236 = scmp.le.s32.totalorder 1, %s18
      %p237 = scmp.lt.s32.totalorder %s18, 3
      %p238 = pnand %p236, %p237
      %p239 = pneg %p238
      // Predicated region
      $region33: #{causal_conv2d_subsampling.2} parent=5 // pred_check
        _
      $region34: #{causal_conv2d_subsampling.2} parent=5 // pred_check_branch
        %241 = sbr.rel (%p238) target = $region36
      $region35: #{causal_conv2d_subsampling.2} parent=5 // pred_region
        %s242 = ssub.s32 %s18, 1
        %s243 = sand.u32 %s45, 1
        %s244 = scalar_lea.sflag [#allocation3], %s243
        %s245 = sand.u32 %s45, 1
        %s246 = smul.addr %s245, 216
        %s247 = scalar_lea.vmem [#allocation2], %s246
        // Predicated region
        $region37: #{causal_conv2d_subsampling.2} parent=35 // pred_check
          %p248 = pneg %p58
        $region38: #{causal_conv2d_subsampling.2} parent=35 // pred_check_branch
          %250 = sbr.rel (%p248) target = $region40
        $region39: #{causal_conv2d_subsampling.2} parent=35 // pred_region
          %251 = dma.done %s244, 3456
        $region40: #{causal_conv2d_subsampling.2} parent=35 // pred_fallthru
          _
        // Predicated region
        $region41: #{causal_conv2d_subsampling.2} parent=35 // pred_check
          %p252 = pneg %p84
        $region42: #{causal_conv2d_subsampling.2} parent=35 // pred_check_branch
          %254 = sbr.rel (%p252) target = $region44
        $region43: #{causal_conv2d_subsampling.2} parent=35 // pred_region
          %255 = dma.done [#allocation6], 3456
        $region44: #{causal_conv2d_subsampling.2} parent=35 // pred_fallthru
          _
        // Predicated region
        $region45: #{causal_conv2d_subsampling.2} parent=35 // pred_check
          %p256 = pneg %p105
        $region46: #{causal_conv2d_subsampling.2} parent=35 // pred_check_branch
          %258 = sbr.rel (%p256) target = $region48
        $region47: #{causal_conv2d_subsampling.2} parent=35 // pred_region
          %259 = dma.done [#allocation6], 256
        $region48: #{causal_conv2d_subsampling.2} parent=35 // pred_fallthru
          _
        // Predicated region
        $region49: #{causal_conv2d_subsampling.2} parent=35 // pred_check
          %p260 = pneg %p126
        $region50: #{causal_conv2d_subsampling.2} parent=35 // pred_check_branch
          %262 = sbr.rel (%p260) target = $region52
        $region51: #{causal_conv2d_subsampling.2} parent=35 // pred_region
          %263 = dma.done [#allocation9], 16
        $region52: #{causal_conv2d_subsampling.2} parent=35 // pred_fallthru
          _
        %s264 = sand.u32 %s45, 1
        %s265 = scalar_lea.sflag [#allocation3], %s264
        %s266 = sand.u32 %s45, 1
        %s267 = smul.addr %s266, 216
        %s268 = scalar_lea.vmem [#allocation2], %s267
        %p269 = pneg %p58
        %p270 = pneg %p55
        %p271 = pneg %p84
        %p272 = pneg %p81
        %p273 = pneg %p105
        %p274 = pneg %p102
        %p275 = pneg %p126
        %p276 = pneg %p123
        %p277 = pneg %p154
        %p278 = pneg %p151
        %s279 = sand.u32 %s141, 1
        %s280 = scalar_lea.sflag [#allocation4], %s279
        %s281 = sand.u32 %s141, 1
        %s282 = smul.addr %s281, 108
        %s283 = scalar_lea.vmem [#allocation10], %s282
        %s284 = smul.u32 27, %s28
        %s285 = smul.u32 27, %s28
        %s286 = smul.u32 27, %s28
        %v287 = vld [vmem:[%s247] sm:$0xff]
        %v288 = vld [vmem:[%s247 + $0x8] sm:$0xff]
        %v289 = vld [vmem:[%s247 + $0x10] sm:$0xff]
        %v290 = vld [vmem:[%s247 + $0x18] sm:$0xff]
        %v291 = vld [vmem:[%s247 + $0x20] sm:$0xff]
        %v292 = vld [vmem:[%s247 + $0x28] sm:$0xff]
        %v293 = vld [vmem:[%s247 + $0x30] sm:$0xff]
        %v294 = vld [vmem:[%s247 + $0x38] sm:$0xff]
        %v295 = vld [vmem:[%s247 + $0x40] sm:$0xff]
        %v296 = vld [vmem:[%s247 + $0x48] sm:$0xff]
        %v297 = vld [vmem:[%s247 + $0x50] sm:$0xff]
        %v298 = vld [vmem:[%s247 + $0x58] sm:$0xff]
        %v299 = vld [vmem:[%s247 + $0x60] sm:$0xff]
        %v300 = vld [vmem:[%s247 + $0x68] sm:$0xff]
        %v301 = vld [vmem:[%s247 + $0x70] sm:$0xff]
        %v302 = vld [vmem:[%s247 + $0x78] sm:$0xff]
        %v303 = vld [vmem:[%s247 + $0x80] sm:$0xff]
        %v304 = vld [vmem:[%s247 + $0x88] sm:$0xff]
        %v305 = vld [vmem:[%s247 + $0x90] sm:$0xff]
        %v306 = vld [vmem:[%s247 + $0x98] sm:$0xff]
        %v307 = vld [vmem:[%s247 + $0xa0] sm:$0xff]
        %v308 = vld [vmem:[%s247 + $0xa8] sm:$0xff]
        %v309 = vld [vmem:[%s247 + $0xb0] sm:$0xff]
        %v310 = vld [vmem:[%s247 + $0xb8] sm:$0xff]
        %v311 = vld [vmem:[%s247 + $0xc0] sm:$0xff]
        %v312 = vld [vmem:[%s247 + $0xc8] sm:$0xff]
        %v313 = vld [vmem:[%s247 + $0xd0] sm:$0xff]
        %v314 = vld [vmem:[#allocation7] sm:$0xff]
        %v315 = vld [vmem:[#allocation7 + $0x8] sm:$0x1]
        %v316 = vld [vmem:[#allocation8] sm:$0x1]
        %v318 = vlaneseq
        %v319 = vshrl.u32 %v318, 7
        %v320 = vsub.s32 0, %v319
        %v321 = vrot.slane %v316, %v320
        %v323 = vadd.f32 %v321, 0.0
        %325 = vset.pattern.permute.xlu0 0
        %326 = vperm.xlu0 %325, %v287
        %v327 = vpop.permute.xlu0 %326
        %330 = vset.pattern.permute.xlu0 0
        %331 = vperm.xlu0 %330, %v288
        %v332 = vpop.permute.xlu0 %331
        %335 = vset.pattern.permute.xlu0 0
        %336 = vperm.xlu0 %335, %v289
        %v337 = vpop.permute.xlu0 %336
        %340 = vset.pattern.permute.xlu0 0
        %341 = vperm.xlu0 %340, %v290
        %v342 = vpop.permute.xlu0 %341
        %345 = vset.pattern.permute.xlu0 0
        %346 = vperm.xlu0 %345, %v291
        %v347 = vpop.permute.xlu0 %346
        %350 = vset.pattern.permute.xlu0 0
        %351 = vperm.xlu0 %350, %v292
        %v352 = vpop.permute.xlu0 %351
        %355 = vset.pattern.permute.xlu0 0
        %356 = vperm.xlu0 %355, %v293
        %v357 = vpop.permute.xlu0 %356
        %360 = vset.pattern.permute.xlu0 0
        %361 = vperm.xlu0 %360, %v294
        %v362 = vpop.permute.xlu0 %361
        %365 = vset.pattern.permute.xlu0 0
        %366 = vperm.xlu0 %365, %v295
        %v367 = vpop.permute.xlu0 %366
        %370 = vset.pattern.permute.xlu0 0
        %371 = vperm.xlu0 %370, %v296
        %v372 = vpop.permute.xlu0 %371
        %375 = vset.pattern.permute.xlu0 0
        %376 = vperm.xlu0 %375, %v297
        %v377 = vpop.permute.xlu0 %376
        %380 = vset.pattern.permute.xlu0 0
        %381 = vperm.xlu0 %380, %v298
        %v382 = vpop.permute.xlu0 %381
        %385 = vset.pattern.permute.xlu0 0
        %386 = vperm.xlu0 %385, %v299
        %v387 = vpop.permute.xlu0 %386
        %390 = vset.pattern.permute.xlu0 0
        %391 = vperm.xlu0 %390, %v300
        %v392 = vpop.permute.xlu0 %391
        %395 = vset.pattern.permute.xlu0 0
        %396 = vperm.xlu0 %395, %v301
        %v397 = vpop.permute.xlu0 %396
        %400 = vset.pattern.permute.xlu0 0
        %401 = vperm.xlu0 %400, %v302
        %v402 = vpop.permute.xlu0 %401
        %405 = vset.pattern.permute.xlu0 0
        %406 = vperm.xlu0 %405, %v303
        %v407 = vpop.permute.xlu0 %406
        %410 = vset.pattern.permute.xlu0 0
        %411 = vperm.xlu0 %410, %v304
        %v412 = vpop.permute.xlu0 %411
        %415 = vset.pattern.permute.xlu0 0
        %416 = vperm.xlu0 %415, %v305
        %v417 = vpop.permute.xlu0 %416
        %420 = vset.pattern.permute.xlu0 0
        %421 = vperm.xlu0 %420, %v306
        %v422 = vpop.permute.xlu0 %421
        %425 = vset.pattern.permute.xlu0 0
        %426 = vperm.xlu0 %425, %v307
        %v427 = vpop.permute.xlu0 %426
        %430 = vset.pattern.permute.xlu0 0
        %431 = vperm.xlu0 %430, %v308
        %v432 = vpop.permute.xlu0 %431
        %435 = vset.pattern.permute.xlu0 0
        %436 = vperm.xlu0 %435, %v309
        %v437 = vpop.permute.xlu0 %436
        %440 = vset.pattern.permute.xlu0 0
        %441 = vperm.xlu0 %440, %v310
        %v442 = vpop.permute.xlu0 %441
        %445 = vset.pattern.permute.xlu0 0
        %446 = vperm.xlu0 %445, %v311
        %v447 = vpop.permute.xlu0 %446
        %450 = vset.pattern.permute.xlu0 0
        %451 = vperm.xlu0 %450, %v312
        %v452 = vpop.permute.xlu0 %451
        %455 = vset.pattern.permute.xlu0 0
        %456 = vperm.xlu0 %455, %v313
        %v457 = vpop.permute.xlu0 %456
        %v459 = vlaneseq
        %v460 = vshrl.u32 %v459, 7
        %v461 = vsub.s32 0, %v460
        %v462 = vrot.slane %v314, %v461
        %v463 = vmul.f32 %v327, %v462
        %v464 = vmul.f32 %v332, %v462
        %v465 = vmul.f32 %v337, %v462
        %v466 = vmul.f32 %v342, %v462
        %v467 = vmul.f32 %v347, %v462
        %v468 = vmul.f32 %v352, %v462
        %v469 = vmul.f32 %v357, %v462
        %v470 = vmul.f32 %v362, %v462
        %v471 = vmul.f32 %v367, %v462
        %v472 = vmul.f32 %v372, %v462
        %v473 = vmul.f32 %v377, %v462
        %v474 = vmul.f32 %v382, %v462
        %v475 = vmul.f32 %v387, %v462
        %v476 = vmul.f32 %v392, %v462
        %v477 = vmul.f32 %v397, %v462
        %v478 = vmul.f32 %v402, %v462
        %v479 = vmul.f32 %v407, %v462
        %v480 = vmul.f32 %v412, %v462
        %v481 = vmul.f32 %v417, %v462
        %v482 = vmul.f32 %v422, %v462
        %v483 = vmul.f32 %v427, %v462
        %v484 = vmul.f32 %v432, %v462
        %v485 = vmul.f32 %v437, %v462
        %v486 = vmul.f32 %v442, %v462
        %v487 = vmul.f32 %v447, %v462
        %v488 = vmul.f32 %v452, %v462
        %v489 = vmul.f32 %v457, %v462
        %v490 = vadd.f32 %v323, %v463
        %v491 = vadd.f32 %v323, %v464
        %v492 = vadd.f32 %v323, %v465
        %v493 = vadd.f32 %v323, %v466
        %v494 = vadd.f32 %v323, %v467
        %v495 = vadd.f32 %v323, %v468
        %v496 = vadd.f32 %v323, %v469
        %v497 = vadd.f32 %v323, %v470
        %v498 = vadd.f32 %v323, %v471
        %v499 = vadd.f32 %v323, %v472
        %v500 = vadd.f32 %v323, %v473
        %v501 = vadd.f32 %v323, %v474
        %v502 = vadd.f32 %v323, %v475
        %v503 = vadd.f32 %v323, %v476
        %v504 = vadd.f32 %v323, %v477
        %v505 = vadd.f32 %v323, %v478
        %v506 = vadd.f32 %v323, %v479
        %v507 = vadd.f32 %v323, %v480
        %v508 = vadd.f32 %v323, %v481
        %v509 = vadd.f32 %v323, %v482
        %v510 = vadd.f32 %v323, %v483
        %v511 = vadd.f32 %v323, %v484
        %v512 = vadd.f32 %v323, %v485
        %v513 = vadd.f32 %v323, %v486
        %v514 = vadd.f32 %v323, %v487
        %v515 = vadd.f32 %v323, %v488
        %v516 = vadd.f32 %v323, %v489
        %517 = vset.pattern.permute.xlu0 1
        %518 = vperm.xlu0 %517, %v287
        %v519 = vpop.permute.xlu0 %518
        %521 = vset.pattern.permute.xlu0 1
        %522 = vperm.xlu0 %521, %v288
        %v523 = vpop.permute.xlu0 %522
        %525 = vset.pattern.permute.xlu0 1
        %526 = vperm.xlu0 %525, %v289
        %v527 = vpop.permute.xlu0 %526
        %529 = vset.pattern.permute.xlu0 1
        %530 = vperm.xlu0 %529, %v290
        %v531 = vpop.permute.xlu0 %530
        %533 = vset.pattern.permute.xlu0 1
        %534 = vperm.xlu0 %533, %v291
        %v535 = vpop.permute.xlu0 %534
        %537 = vset.pattern.permute.xlu0 1
        %538 = vperm.xlu0 %537, %v292
        %v539 = vpop.permute.xlu0 %538
        %541 = vset.pattern.permute.xlu0 1
        %542 = vperm.xlu0 %541, %v293
        %v543 = vpop.permute.xlu0 %542
        %545 = vset.pattern.permute.xlu0 1
        %546 = vperm.xlu0 %545, %v294
        %v547 = vpop.permute.xlu0 %546
        %549 = vset.pattern.permute.xlu0 1
        %550 = vperm.xlu0 %549, %v295
        %v551 = vpop.permute.xlu0 %550
        %553 = vset.pattern.permute.xlu0 1
        %554 = vperm.xlu0 %553, %v296
        %v555 = vpop.permute.xlu0 %554
        %557 = vset.pattern.permute.xlu0 1
        %558 = vperm.xlu0 %557, %v297
        %v559 = vpop.permute.xlu0 %558
        %561 = vset.pattern.permute.xlu0 1
        %562 = vperm.xlu0 %561, %v298
        %v563 = vpop.permute.xlu0 %562
        %565 = vset.pattern.permute.xlu0 1
        %566 = vperm.xlu0 %565, %v299
        %v567 = vpop.permute.xlu0 %566
        %569 = vset.pattern.permute.xlu0 1
        %570 = vperm.xlu0 %569, %v300
        %v571 = vpop.permute.xlu0 %570
        %573 = vset.pattern.permute.xlu0 1
        %574 = vperm.xlu0 %573, %v301
        %v575 = vpop.permute.xlu0 %574
        %577 = vset.pattern.permute.xlu0 1
        %578 = vperm.xlu0 %577, %v302
        %v579 = vpop.permute.xlu0 %578
        %581 = vset.pattern.permute.xlu0 1
        %582 = vperm.xlu0 %581, %v303
        %v583 = vpop.permute.xlu0 %582
        %585 = vset.pattern.permute.xlu0 1
        %586 = vperm.xlu0 %585, %v304
        %v587 = vpop.permute.xlu0 %586
        %589 = vset.pattern.permute.xlu0 1
        %590 = vperm.xlu0 %589, %v305
        %v591 = vpop.permute.xlu0 %590
        %593 = vset.pattern.permute.xlu0 1
        %594 = vperm.xlu0 %593, %v306
        %v595 = vpop.permute.xlu0 %594
        %597 = vset.pattern.permute.xlu0 1
        %598 = vperm.xlu0 %597, %v307
        %v599 = vpop.permute.xlu0 %598
        %601 = vset.pattern.permute.xlu0 1
        %602 = vperm.xlu0 %601, %v308
        %v603 = vpop.permute.xlu0 %602
        %605 = vset.pattern.permute.xlu0 1
        %606 = vperm.xlu0 %605, %v309
        %v607 = vpop.permute.xlu0 %606
        %609 = vset.pattern.permute.xlu0 1
        %610 = vperm.xlu0 %609, %v310
        %v611 = vpop.permute.xlu0 %610
        %613 = vset.pattern.permute.xlu0 1
        %614 = vperm.xlu0 %613, %v311
        %v615 = vpop.permute.xlu0 %614
        %617 = vset.pattern.permute.xlu0 1
        %618 = vperm.xlu0 %617, %v312
        %v619 = vpop.permute.xlu0 %618
        %621 = vset.pattern.permute.xlu0 1
        %622 = vperm.xlu0 %621, %v313
        %v623 = vpop.permute.xlu0 %622
        %v625 = vlaneseq
        %v626 = vshrl.u32 %v625, 7
        %v627 = vsub.s32 1, %v626
        %v628 = vrot.slane %v314, %v627
        %v629 = vmul.f32 %v519, %v628
        %v630 = vmul.f32 %v523, %v628
        %v631 = vmul.f32 %v527, %v628
        %v632 = vmul.f32 %v531, %v628
        %v633 = vmul.f32 %v535, %v628
        %v634 = vmul.f32 %v539, %v628
        %v635 = vmul.f32 %v543, %v628
        %v636 = vmul.f32 %v547, %v628
        %v637 = vmul.f32 %v551, %v628
        %v638 = vmul.f32 %v555, %v628
        %v639 = vmul.f32 %v559, %v628
        %v640 = vmul.f32 %v563, %v628
        %v641 = vmul.f32 %v567, %v628
        %v642 = vmul.f32 %v571, %v628
        %v643 = vmul.f32 %v575, %v628
        %v644 = vmul.f32 %v579, %v628
        %v645 = vmul.f32 %v583, %v628
        %v646 = vmul.f32 %v587, %v628
        %v647 = vmul.f32 %v591, %v628
        %v648 = vmul.f32 %v595, %v628
        %v649 = vmul.f32 %v599, %v628
        %v650 = vmul.f32 %v603, %v628
        %v651 = vmul.f32 %v607, %v628
        %v652 = vmul.f32 %v611, %v628
        %v653 = vmul.f32 %v615, %v628
        %v654 = vmul.f32 %v619, %v628
        %v655 = vmul.f32 %v623, %v628
        %v656 = vadd.f32 %v490, %v629
        %v657 = vadd.f32 %v491, %v630
        %v658 = vadd.f32 %v492, %v631
        %v659 = vadd.f32 %v493, %v632
        %v660 = vadd.f32 %v494, %v633
        %v661 = vadd.f32 %v495, %v634
        %v662 = vadd.f32 %v496, %v635
        %v663 = vadd.f32 %v497, %v636
        %v664 = vadd.f32 %v498, %v637
        %v665 = vadd.f32 %v499, %v638
        %v666 = vadd.f32 %v500, %v639
        %v667 = vadd.f32 %v501, %v640
        %v668 = vadd.f32 %v502, %v641
        %v669 = vadd.f32 %v503, %v642
        %v670 = vadd.f32 %v504, %v643
        %v671 = vadd.f32 %v505, %v644
        %v672 = vadd.f32 %v506, %v645
        %v673 = vadd.f32 %v507, %v646
        %v674 = vadd.f32 %v508, %v647
        %v675 = vadd.f32 %v509, %v648
        %v676 = vadd.f32 %v510, %v649
        %v677 = vadd.f32 %v511, %v650
        %v678 = vadd.f32 %v512, %v651
        %v679 = vadd.f32 %v513, %v652
        %v680 = vadd.f32 %v514, %v653
        %v681 = vadd.f32 %v515, %v654
        %v682 = vadd.f32 %v516, %v655
        %683 = vset.pattern.permute.xlu0 2
        %684 = vperm.xlu0 %683, %v287
        %v685 = vpop.permute.xlu0 %684
        %687 = vset.pattern.permute.xlu0 2
        %688 = vperm.xlu0 %687, %v288
        %v689 = vpop.permute.xlu0 %688
        %691 = vset.pattern.permute.xlu0 2
        %692 = vperm.xlu0 %691, %v289
        %v693 = vpop.permute.xlu0 %692
        %695 = vset.pattern.permute.xlu0 2
        %696 = vperm.xlu0 %695, %v290
        %v697 = vpop.permute.xlu0 %696
        %699 = vset.pattern.permute.xlu0 2
        %700 = vperm.xlu0 %699, %v291
        %v701 = vpop.permute.xlu0 %700
        %703 = vset.pattern.permute.xlu0 2
        %704 = vperm.xlu0 %703, %v292
        %v705 = vpop.permute.xlu0 %704
        %707 = vset.pattern.permute.xlu0 2
        %708 = vperm.xlu0 %707, %v293
        %v709 = vpop.permute.xlu0 %708
        %711 = vset.pattern.permute.xlu0 2
        %712 = vperm.xlu0 %711, %v294
        %v713 = vpop.permute.xlu0 %712
        %715 = vset.pattern.permute.xlu0 2
        %716 = vperm.xlu0 %715, %v295
        %v717 = vpop.permute.xlu0 %716
        %719 = vset.pattern.permute.xlu0 2
        %720 = vperm.xlu0 %719, %v296
        %v721 = vpop.permute.xlu0 %720
        %723 = vset.pattern.permute.xlu0 2
        %724 = vperm.xlu0 %723, %v297
        %v725 = vpop.permute.xlu0 %724
        %727 = vset.pattern.permute.xlu0 2
        %728 = vperm.xlu0 %727, %v298
        %v729 = vpop.permute.xlu0 %728
        %731 = vset.pattern.permute.xlu0 2
        %732 = vperm.xlu0 %731, %v299
        %v733 = vpop.permute.xlu0 %732
        %735 = vset.pattern.permute.xlu0 2
        %736 = vperm.xlu0 %735, %v300
        %v737 = vpop.permute.xlu0 %736
        %739 = vset.pattern.permute.xlu0 2
        %740 = vperm.xlu0 %739, %v301
        %v741 = vpop.permute.xlu0 %740
        %743 = vset.pattern.permute.xlu0 2
        %744 = vperm.xlu0 %743, %v302
        %v745 = vpop.permute.xlu0 %744
        %747 = vset.pattern.permute.xlu0 2
        %748 = vperm.xlu0 %747, %v303
        %v749 = vpop.permute.xlu0 %748
        %751 = vset.pattern.permute.xlu0 2
        %752 = vperm.xlu0 %751, %v304
        %v753 = vpop.permute.xlu0 %752
        %755 = vset.pattern.permute.xlu0 2
        %756 = vperm.xlu0 %755, %v305
        %v757 = vpop.permute.xlu0 %756
        %759 = vset.pattern.permute.xlu0 2
        %760 = vperm.xlu0 %759, %v306
        %v761 = vpop.permute.xlu0 %760
        %763 = vset.pattern.permute.xlu0 2
        %764 = vperm.xlu0 %763, %v307
        %v765 = vpop.permute.xlu0 %764
        %767 = vset.pattern.permute.xlu0 2
        %768 = vperm.xlu0 %767, %v308
        %v769 = vpop.permute.xlu0 %768
        %771 = vset.pattern.permute.xlu0 2
        %772 = vperm.xlu0 %771, %v309
        %v773 = vpop.permute.xlu0 %772
        %775 = vset.pattern.permute.xlu0 2
        %776 = vperm.xlu0 %775, %v310
        %v777 = vpop.permute.xlu0 %776
        %779 = vset.pattern.permute.xlu0 2
        %780 = vperm.xlu0 %779, %v311
        %v781 = vpop.permute.xlu0 %780
        %783 = vset.pattern.permute.xlu0 2
        %784 = vperm.xlu0 %783, %v312
        %v785 = vpop.permute.xlu0 %784
        %787 = vset.pattern.permute.xlu0 2
        %788 = vperm.xlu0 %787, %v313
        %v789 = vpop.permute.xlu0 %788
        %v791 = vlaneseq
        %v792 = vshrl.u32 %v791, 7
        %v793 = vsub.s32 2, %v792
        %v794 = vrot.slane %v314, %v793
        %v795 = vmul.f32 %v685, %v794
        %v796 = vmul.f32 %v689, %v794
        %v797 = vmul.f32 %v693, %v794
        %v798 = vmul.f32 %v697, %v794
        %v799 = vmul.f32 %v701, %v794
        %v800 = vmul.f32 %v705, %v794
        %v801 = vmul.f32 %v709, %v794
        %v802 = vmul.f32 %v713, %v794
        %v803 = vmul.f32 %v717, %v794
        %v804 = vmul.f32 %v721, %v794
        %v805 = vmul.f32 %v725, %v794
        %v806 = vmul.f32 %v729, %v794
        %v807 = vmul.f32 %v733, %v794
        %v808 = vmul.f32 %v737, %v794
        %v809 = vmul.f32 %v741, %v794
        %v810 = vmul.f32 %v745, %v794
        %v811 = vmul.f32 %v749, %v794
        %v812 = vmul.f32 %v753, %v794
        %v813 = vmul.f32 %v757, %v794
        %v814 = vmul.f32 %v761, %v794
        %v815 = vmul.f32 %v765, %v794
        %v816 = vmul.f32 %v769, %v794
        %v817 = vmul.f32 %v773, %v794
        %v818 = vmul.f32 %v777, %v794
        %v819 = vmul.f32 %v781, %v794
        %v820 = vmul.f32 %v785, %v794
        %v821 = vmul.f32 %v789, %v794
        %v822 = vadd.f32 %v656, %v795
        %v823 = vadd.f32 %v657, %v796
        %v824 = vadd.f32 %v658, %v797
        %v825 = vadd.f32 %v659, %v798
        %v826 = vadd.f32 %v660, %v799
        %v827 = vadd.f32 %v661, %v800
        %v828 = vadd.f32 %v662, %v801
        %v829 = vadd.f32 %v663, %v802
        %v830 = vadd.f32 %v664, %v803
        %v831 = vadd.f32 %v665, %v804
        %v832 = vadd.f32 %v666, %v805
        %v833 = vadd.f32 %v667, %v806
        %v834 = vadd.f32 %v668, %v807
        %v835 = vadd.f32 %v669, %v808
        %v836 = vadd.f32 %v670, %v809
        %v837 = vadd.f32 %v671, %v810
        %v838 = vadd.f32 %v672, %v811
        %v839 = vadd.f32 %v673, %v812
        %v840 = vadd.f32 %v674, %v813
        %v841 = vadd.f32 %v675, %v814
        %v842 = vadd.f32 %v676, %v815
        %v843 = vadd.f32 %v677, %v816
        %v844 = vadd.f32 %v678, %v817
        %v845 = vadd.f32 %v679, %v818
        %v846 = vadd.f32 %v680, %v819
        %v847 = vadd.f32 %v681, %v820
        %v848 = vadd.f32 %v682, %v821
        %849 = vset.pattern.permute.xlu0 3
        %850 = vperm.xlu0 %849, %v287
        %v851 = vpop.permute.xlu0 %850
        %853 = vset.pattern.permute.xlu0 3
        %854 = vperm.xlu0 %853, %v288
        %v855 = vpop.permute.xlu0 %854
        %857 = vset.pattern.permute.xlu0 3
        %858 = vperm.xlu0 %857, %v289
        %v859 = vpop.permute.xlu0 %858
        %861 = vset.pattern.permute.xlu0 3
        %862 = vperm.xlu0 %861, %v290
        %v863 = vpop.permute.xlu0 %862
        %865 = vset.pattern.permute.xlu0 3
        %866 = vperm.xlu0 %865, %v291
        %v867 = vpop.permute.xlu0 %866
        %869 = vset.pattern.permute.xlu0 3
        %870 = vperm.xlu0 %869, %v292
        %v871 = vpop.permute.xlu0 %870
        %873 = vset.pattern.permute.xlu0 3
        %874 = vperm.xlu0 %873, %v293
        %v875 = vpop.permute.xlu0 %874
        %877 = vset.pattern.permute.xlu0 3
        %878 = vperm.xlu0 %877, %v294
        %v879 = vpop.permute.xlu0 %878
        %881 = vset.pattern.permute.xlu0 3
        %882 = vperm.xlu0 %881, %v295
        %v883 = vpop.permute.xlu0 %882
        %885 = vset.pattern.permute.xlu0 3
        %886 = vperm.xlu0 %885, %v296
        %v887 = vpop.permute.xlu0 %886
        %889 = vset.pattern.permute.xlu0 3
        %890 = vperm.xlu0 %889, %v297
        %v891 = vpop.permute.xlu0 %890
        %893 = vset.pattern.permute.xlu0 3
        %894 = vperm.xlu0 %893, %v298
        %v895 = vpop.permute.xlu0 %894
        %897 = vset.pattern.permute.xlu0 3
        %898 = vperm.xlu0 %897, %v299
        %v899 = vpop.permute.xlu0 %898
        %901 = vset.pattern.permute.xlu0 3
        %902 = vperm.xlu0 %901, %v300
        %v903 = vpop.permute.xlu0 %902
        %905 = vset.pattern.permute.xlu0 3
        %906 = vperm.xlu0 %905, %v301
        %v907 = vpop.permute.xlu0 %906
        %909 = vset.pattern.permute.xlu0 3
        %910 = vperm.xlu0 %909, %v302
        %v911 = vpop.permute.xlu0 %910
        %913 = vset.pattern.permute.xlu0 3
        %914 = vperm.xlu0 %913, %v303
        %v915 = vpop.permute.xlu0 %914
        %917 = vset.pattern.permute.xlu0 3
        %918 = vperm.xlu0 %917, %v304
        %v919 = vpop.permute.xlu0 %918
        %921 = vset.pattern.permute.xlu0 3
        %922 = vperm.xlu0 %921, %v305
        %v923 = vpop.permute.xlu0 %922
        %925 = vset.pattern.permute.xlu0 3
        %926 = vperm.xlu0 %925, %v306
        %v927 = vpop.permute.xlu0 %926
        %929 = vset.pattern.permute.xlu0 3
        %930 = vperm.xlu0 %929, %v307
        %v931 = vpop.permute.xlu0 %930
        %933 = vset.pattern.permute.xlu0 3
        %934 = vperm.xlu0 %933, %v308
        %v935 = vpop.permute.xlu0 %934
        %937 = vset.pattern.permute.xlu0 3
        %938 = vperm.xlu0 %937, %v309
        %v939 = vpop.permute.xlu0 %938
        %941 = vset.pattern.permute.xlu0 3
        %942 = vperm.xlu0 %941, %v310
        %v943 = vpop.permute.xlu0 %942
        %945 = vset.pattern.permute.xlu0 3
        %946 = vperm.xlu0 %945, %v311
        %v947 = vpop.permute.xlu0 %946
        %949 = vset.pattern.permute.xlu0 3
        %950 = vperm.xlu0 %949, %v312
        %v951 = vpop.permute.xlu0 %950
        %953 = vset.pattern.permute.xlu0 3
        %954 = vperm.xlu0 %953, %v313
        %v955 = vpop.permute.xlu0 %954
        %v957 = vlaneseq
        %v958 = vshrl.u32 %v957, 7
        %v959 = vsub.s32 3, %v958
        %v960 = vrot.slane %v314, %v959
        %v961 = vmul.f32 %v851, %v960
        %v962 = vmul.f32 %v855, %v960
        %v963 = vmul.f32 %v859, %v960
        %v964 = vmul.f32 %v863, %v960
        %v965 = vmul.f32 %v867, %v960
        %v966 = vmul.f32 %v871, %v960
        %v967 = vmul.f32 %v875, %v960
        %v968 = vmul.f32 %v879, %v960
        %v969 = vmul.f32 %v883, %v960
        %v970 = vmul.f32 %v887, %v960
        %v971 = vmul.f32 %v891, %v960
        %v972 = vmul.f32 %v895, %v960
        %v973 = vmul.f32 %v899, %v960
        %v974 = vmul.f32 %v903, %v960
        %v975 = vmul.f32 %v907, %v960
        %v976 = vmul.f32 %v911, %v960
        %v977 = vmul.f32 %v915, %v960
        %v978 = vmul.f32 %v919, %v960
        %v979 = vmul.f32 %v923, %v960
        %v980 = vmul.f32 %v927, %v960
        %v981 = vmul.f32 %v931, %v960
        %v982 = vmul.f32 %v935, %v960
        %v983 = vmul.f32 %v939, %v960
        %v984 = vmul.f32 %v943, %v960
        %v985 = vmul.f32 %v947, %v960
        %v986 = vmul.f32 %v951, %v960
        %v987 = vmul.f32 %v955, %v960
        %v988 = vadd.f32 %v822, %v961
        %v989 = vadd.f32 %v823, %v962
        %v990 = vadd.f32 %v824, %v963
        %v991 = vadd.f32 %v825, %v964
        %v992 = vadd.f32 %v826, %v965
        %v993 = vadd.f32 %v827, %v966
        %v994 = vadd.f32 %v828, %v967
        %v995 = vadd.f32 %v829, %v968
        %v996 = vadd.f32 %v830, %v969
        %v997 = vadd.f32 %v831, %v970
        %v998 = vadd.f32 %v832, %v971
        %v999 = vadd.f32 %v833, %v972
        %v1000 = vadd.f32 %v834, %v973
        %v1001 = vadd.f32 %v835, %v974
        %v1002 = vadd.f32 %v836, %v975
        %v1003 = vadd.f32 %v837, %v976
        %v1004 = vadd.f32 %v838, %v977
        %v1005 = vadd.f32 %v839, %v978
        %v1006 = vadd.f32 %v840, %v979
        %v1007 = vadd.f32 %v841, %v980
        %v1008 = vadd.f32 %v842, %v981
        %v1009 = vadd.f32 %v843, %v982
        %v1010 = vadd.f32 %v844, %v983
        %v1011 = vadd.f32 %v845, %v984
        %v1012 = vadd.f32 %v846, %v985
        %v1013 = vadd.f32 %v847, %v986
        %v1014 = vadd.f32 %v848, %v987
        %1015 = vset.pattern.permute.xlu0 4
        %1016 = vperm.xlu0 %1015, %v287
        %v1017 = vpop.permute.xlu0 %1016
        %1019 = vset.pattern.permute.xlu0 4
        %1020 = vperm.xlu0 %1019, %v288
        %v1021 = vpop.permute.xlu0 %1020
        %1023 = vset.pattern.permute.xlu0 4
        %1024 = vperm.xlu0 %1023, %v289
        %v1025 = vpop.permute.xlu0 %1024
        %1027 = vset.pattern.permute.xlu0 4
        %1028 = vperm.xlu0 %1027, %v290
        %v1029 = vpop.permute.xlu0 %1028
        %1031 = vset.pattern.permute.xlu0 4
        %1032 = vperm.xlu0 %1031, %v291
        %v1033 = vpop.permute.xlu0 %1032
        %1035 = vset.pattern.permute.xlu0 4
        %1036 = vperm.xlu0 %1035, %v292
        %v1037 = vpop.permute.xlu0 %1036
        %1039 = vset.pattern.permute.xlu0 4
        %1040 = vperm.xlu0 %1039, %v293
        %v1041 = vpop.permute.xlu0 %1040
        %1043 = vset.pattern.permute.xlu0 4
        %1044 = vperm.xlu0 %1043, %v294
        %v1045 = vpop.permute.xlu0 %1044
        %1047 = vset.pattern.permute.xlu0 4
        %1048 = vperm.xlu0 %1047, %v295
        %v1049 = vpop.permute.xlu0 %1048
        %1051 = vset.pattern.permute.xlu0 4
        %1052 = vperm.xlu0 %1051, %v296
        %v1053 = vpop.permute.xlu0 %1052
        %1055 = vset.pattern.permute.xlu0 4
        %1056 = vperm.xlu0 %1055, %v297
        %v1057 = vpop.permute.xlu0 %1056
        %1059 = vset.pattern.permute.xlu0 4
        %1060 = vperm.xlu0 %1059, %v298
        %v1061 = vpop.permute.xlu0 %1060
        %1063 = vset.pattern.permute.xlu0 4
        %1064 = vperm.xlu0 %1063, %v299
        %v1065 = vpop.permute.xlu0 %1064
        %1067 = vset.pattern.permute.xlu0 4
        %1068 = vperm.xlu0 %1067, %v300
        %v1069 = vpop.permute.xlu0 %1068
        %1071 = vset.pattern.permute.xlu0 4
        %1072 = vperm.xlu0 %1071, %v301
        %v1073 = vpop.permute.xlu0 %1072
        %1075 = vset.pattern.permute.xlu0 4
        %1076 = vperm.xlu0 %1075, %v302
        %v1077 = vpop.permute.xlu0 %1076
        %1079 = vset.pattern.permute.xlu0 4
        %1080 = vperm.xlu0 %1079, %v303
        %v1081 = vpop.permute.xlu0 %1080
        %1083 = vset.pattern.permute.xlu0 4
        %1084 = vperm.xlu0 %1083, %v304
        %v1085 = vpop.permute.xlu0 %1084
        %1087 = vset.pattern.permute.xlu0 4
        %1088 = vperm.xlu0 %1087, %v305
        %v1089 = vpop.permute.xlu0 %1088
        %1091 = vset.pattern.permute.xlu0 4
        %1092 = vperm.xlu0 %1091, %v306
        %v1093 = vpop.permute.xlu0 %1092
        %1095 = vset.pattern.permute.xlu0 4
        %1096 = vperm.xlu0 %1095, %v307
        %v1097 = vpop.permute.xlu0 %1096
        %1099 = vset.pattern.permute.xlu0 4
        %1100 = vperm.xlu0 %1099, %v308
        %v1101 = vpop.permute.xlu0 %1100
        %1103 = vset.pattern.permute.xlu0 4
        %1104 = vperm.xlu0 %1103, %v309
        %v1105 = vpop.permute.xlu0 %1104
        %1107 = vset.pattern.permute.xlu0 4
        %1108 = vperm.xlu0 %1107, %v310
        %v1109 = vpop.permute.xlu0 %1108
        %1111 = vset.pattern.permute.xlu0 4
        %1112 = vperm.xlu0 %1111, %v311
        %v1113 = vpop.permute.xlu0 %1112
        %1115 = vset.pattern.permute.xlu0 4
        %1116 = vperm.xlu0 %1115, %v312
        %v1117 = vpop.permute.xlu0 %1116
        %1119 = vset.pattern.permute.xlu0 4
        %1120 = vperm.xlu0 %1119, %v313
        %v1121 = vpop.permute.xlu0 %1120
        %v1123 = vlaneseq
        %v1124 = vshrl.u32 %v1123, 7
        %v1125 = vsub.s32 4, %v1124
        %v1126 = vrot.slane %v314, %v1125
        %v1127 = vmul.f32 %v1017, %v1126
        %v1128 = vmul.f32 %v1021, %v1126
        %v1129 = vmul.f32 %v1025, %v1126
        %v1130 = vmul.f32 %v1029, %v1126
        %v1131 = vmul.f32 %v1033, %v1126
        %v1132 = vmul.f32 %v1037, %v1126
        %v1133 = vmul.f32 %v1041, %v1126
        %v1134 = vmul.f32 %v1045, %v1126
        %v1135 = vmul.f32 %v1049, %v1126
        %v1136 = vmul.f32 %v1053, %v1126
        %v1137 = vmul.f32 %v1057, %v1126
        %v1138 = vmul.f32 %v1061, %v1126
        %v1139 = vmul.f32 %v1065, %v1126
        %v1140 = vmul.f32 %v1069, %v1126
        %v1141 = vmul.f32 %v1073, %v1126
        %v1142 = vmul.f32 %v1077, %v1126
        %v1143 = vmul.f32 %v1081, %v1126
        %v1144 = vmul.f32 %v1085, %v1126
        %v1145 = vmul.f32 %v1089, %v1126
        %v1146 = vmul.f32 %v1093, %v1126
        %v1147 = vmul.f32 %v1097, %v1126
        %v1148 = vmul.f32 %v1101, %v1126
        %v1149 = vmul.f32 %v1105, %v1126
        %v1150 = vmul.f32 %v1109, %v1126
        %v1151 = vmul.f32 %v1113, %v1126
        %v1152 = vmul.f32 %v1117, %v1126
        %v1153 = vmul.f32 %v1121, %v1126
        %v1154 = vadd.f32 %v988, %v1127
        %v1155 = vadd.f32 %v989, %v1128
        %v1156 = vadd.f32 %v990, %v1129
        %v1157 = vadd.f32 %v991, %v1130
        %v1158 = vadd.f32 %v992, %v1131
        %v1159 = vadd.f32 %v993, %v1132
        %v1160 = vadd.f32 %v994, %v1133
        %v1161 = vadd.f32 %v995, %v1134
        %v1162 = vadd.f32 %v996, %v1135
        %v1163 = vadd.f32 %v997, %v1136
        %v1164 = vadd.f32 %v998, %v1137
        %v1165 = vadd.f32 %v999, %v1138
        %v1166 = vadd.f32 %v1000, %v1139
        %v1167 = vadd.f32 %v1001, %v1140
        %v1168 = vadd.f32 %v1002, %v1141
        %v1169 = vadd.f32 %v1003, %v1142
        %v1170 = vadd.f32 %v1004, %v1143
        %v1171 = vadd.f32 %v1005, %v1144
        %v1172 = vadd.f32 %v1006, %v1145
        %v1173 = vadd.f32 %v1007, %v1146
        %v1174 = vadd.f32 %v1008, %v1147
        %v1175 = vadd.f32 %v1009, %v1148
        %v1176 = vadd.f32 %v1010, %v1149
        %v1177 = vadd.f32 %v1011, %v1150
        %v1178 = vadd.f32 %v1012, %v1151
        %v1179 = vadd.f32 %v1013, %v1152
        %v1180 = vadd.f32 %v1014, %v1153
        %1181 = vset.pattern.permute.xlu0 5
        %1182 = vperm.xlu0 %1181, %v287
        %v1183 = vpop.permute.xlu0 %1182
        %1185 = vset.pattern.permute.xlu0 5
        %1186 = vperm.xlu0 %1185, %v288
        %v1187 = vpop.permute.xlu0 %1186
        %1189 = vset.pattern.permute.xlu0 5
        %1190 = vperm.xlu0 %1189, %v289
        %v1191 = vpop.permute.xlu0 %1190
        %1193 = vset.pattern.permute.xlu0 5
        %1194 = vperm.xlu0 %1193, %v290
        %v1195 = vpop.permute.xlu0 %1194
        %1197 = vset.pattern.permute.xlu0 5
        %1198 = vperm.xlu0 %1197, %v291
        %v1199 = vpop.permute.xlu0 %1198
        %1201 = vset.pattern.permute.xlu0 5
        %1202 = vperm.xlu0 %1201, %v292
        %v1203 = vpop.permute.xlu0 %1202
        %1205 = vset.pattern.permute.xlu0 5
        %1206 = vperm.xlu0 %1205, %v293
        %v1207 = vpop.permute.xlu0 %1206
        %1209 = vset.pattern.permute.xlu0 5
        %1210 = vperm.xlu0 %1209, %v294
        %v1211 = vpop.permute.xlu0 %1210
        %1213 = vset.pattern.permute.xlu0 5
        %1214 = vperm.xlu0 %1213, %v295
        %v1215 = vpop.permute.xlu0 %1214
        %1217 = vset.pattern.permute.xlu0 5
        %1218 = vperm.xlu0 %1217, %v296
        %v1219 = vpop.permute.xlu0 %1218
        %1221 = vset.pattern.permute.xlu0 5
        %1222 = vperm.xlu0 %1221, %v297
        %v1223 = vpop.permute.xlu0 %1222
        %1225 = vset.pattern.permute.xlu0 5
        %1226 = vperm.xlu0 %1225, %v298
        %v1227 = vpop.permute.xlu0 %1226
        %1229 = vset.pattern.permute.xlu0 5
        %1230 = vperm.xlu0 %1229, %v299
        %v1231 = vpop.permute.xlu0 %1230
        %1233 = vset.pattern.permute.xlu0 5
        %1234 = vperm.xlu0 %1233, %v300
        %v1235 = vpop.permute.xlu0 %1234
        %1237 = vset.pattern.permute.xlu0 5
        %1238 = vperm.xlu0 %1237, %v301
        %v1239 = vpop.permute.xlu0 %1238
        %1241 = vset.pattern.permute.xlu0 5
        %1242 = vperm.xlu0 %1241, %v302
        %v1243 = vpop.permute.xlu0 %1242
        %1245 = vset.pattern.permute.xlu0 5
        %1246 = vperm.xlu0 %1245, %v303
        %v1247 = vpop.permute.xlu0 %1246
        %1249 = vset.pattern.permute.xlu0 5
        %1250 = vperm.xlu0 %1249, %v304
        %v1251 = vpop.permute.xlu0 %1250
        %1253 = vset.pattern.permute.xlu0 5
        %1254 = vperm.xlu0 %1253, %v305
        %v1255 = vpop.permute.xlu0 %1254
        %1257 = vset.pattern.permute.xlu0 5
        %1258 = vperm.xlu0 %1257, %v306
        %v1259 = vpop.permute.xlu0 %1258
        %1261 = vset.pattern.permute.xlu0 5
        %1262 = vperm.xlu0 %1261, %v307
        %v1263 = vpop.permute.xlu0 %1262
        %1265 = vset.pattern.permute.xlu0 5
        %1266 = vperm.xlu0 %1265, %v308
        %v1267 = vpop.permute.xlu0 %1266
        %1269 = vset.pattern.permute.xlu0 5
        %1270 = vperm.xlu0 %1269, %v309
        %v1271 = vpop.permute.xlu0 %1270
        %1273 = vset.pattern.permute.xlu0 5
        %1274 = vperm.xlu0 %1273, %v310
        %v1275 = vpop.permute.xlu0 %1274
        %1277 = vset.pattern.permute.xlu0 5
        %1278 = vperm.xlu0 %1277, %v311
        %v1279 = vpop.permute.xlu0 %1278
        %1281 = vset.pattern.permute.xlu0 5
        %1282 = vperm.xlu0 %1281, %v312
        %v1283 = vpop.permute.xlu0 %1282
        %1285 = vset.pattern.permute.xlu0 5
        %1286 = vperm.xlu0 %1285, %v313
        %v1287 = vpop.permute.xlu0 %1286
        %v1289 = vlaneseq
        %v1290 = vshrl.u32 %v1289, 7
        %v1291 = vsub.s32 5, %v1290
        %v1292 = vrot.slane %v314, %v1291
        %v1293 = vmul.f32 %v1183, %v1292
        %v1294 = vmul.f32 %v1187, %v1292
        %v1295 = vmul.f32 %v1191, %v1292
        %v1296 = vmul.f32 %v1195, %v1292
        %v1297 = vmul.f32 %v1199, %v1292
        %v1298 = vmul.f32 %v1203, %v1292
        %v1299 = vmul.f32 %v1207, %v1292
        %v1300 = vmul.f32 %v1211, %v1292
        %v1301 = vmul.f32 %v1215, %v1292
        %v1302 = vmul.f32 %v1219, %v1292
        %v1303 = vmul.f32 %v1223, %v1292
        %v1304 = vmul.f32 %v1227, %v1292
        %v1305 = vmul.f32 %v1231, %v1292
        %v1306 = vmul.f32 %v1235, %v1292
        %v1307 = vmul.f32 %v1239, %v1292
        %v1308 = vmul.f32 %v1243, %v1292
        %v1309 = vmul.f32 %v1247, %v1292
        %v1310 = vmul.f32 %v1251, %v1292
        %v1311 = vmul.f32 %v1255, %v1292
        %v1312 = vmul.f32 %v1259, %v1292
        %v1313 = vmul.f32 %v1263, %v1292
        %v1314 = vmul.f32 %v1267, %v1292
        %v1315 = vmul.f32 %v1271, %v1292
        %v1316 = vmul.f32 %v1275, %v1292
        %v1317 = vmul.f32 %v1279, %v1292
        %v1318 = vmul.f32 %v1283, %v1292
        %v1319 = vmul.f32 %v1287, %v1292
        %v1320 = vadd.f32 %v1154, %v1293
        %v1321 = vadd.f32 %v1155, %v1294
        %v1322 = vadd.f32 %v1156, %v1295
        %v1323 = vadd.f32 %v1157, %v1296
        %v1324 = vadd.f32 %v1158, %v1297
        %v1325 = vadd.f32 %v1159, %v1298
        %v1326 = vadd.f32 %v1160, %v1299
        %v1327 = vadd.f32 %v1161, %v1300
        %v1328 = vadd.f32 %v1162, %v1301
        %v1329 = vadd.f32 %v1163, %v1302
        %v1330 = vadd.f32 %v1164, %v1303
        %v1331 = vadd.f32 %v1165, %v1304
        %v1332 = vadd.f32 %v1166, %v1305
        %v1333 = vadd.f32 %v1167, %v1306
        %v1334 = vadd.f32 %v1168, %v1307
        %v1335 = vadd.f32 %v1169, %v1308
        %v1336 = vadd.f32 %v1170, %v1309
        %v1337 = vadd.f32 %v1171, %v1310
        %v1338 = vadd.f32 %v1172, %v1311
        %v1339 = vadd.f32 %v1173, %v1312
        %v1340 = vadd.f32 %v1174, %v1313
        %v1341 = vadd.f32 %v1175, %v1314
        %v1342 = vadd.f32 %v1176, %v1315
        %v1343 = vadd.f32 %v1177, %v1316
        %v1344 = vadd.f32 %v1178, %v1317
        %v1345 = vadd.f32 %v1179, %v1318
        %v1346 = vadd.f32 %v1180, %v1319
        %1347 = vset.pattern.permute.xlu0 6
        %1348 = vperm.xlu0 %1347, %v287
        %v1349 = vpop.permute.xlu0 %1348
        %1351 = vset.pattern.permute.xlu0 6
        %1352 = vperm.xlu0 %1351, %v288
        %v1353 = vpop.permute.xlu0 %1352
        %1355 = vset.pattern.permute.xlu0 6
        %1356 = vperm.xlu0 %1355, %v289
        %v1357 = vpop.permute.xlu0 %1356
        %1359 = vset.pattern.permute.xlu0 6
        %1360 = vperm.xlu0 %1359, %v290
        %v1361 = vpop.permute.xlu0 %1360
        %1363 = vset.pattern.permute.xlu0 6
        %1364 = vperm.xlu0 %1363, %v291
        %v1365 = vpop.permute.xlu0 %1364
        %1367 = vset.pattern.permute.xlu0 6
        %1368 = vperm.xlu0 %1367, %v292
        %v1369 = vpop.permute.xlu0 %1368
        %1371 = vset.pattern.permute.xlu0 6
        %1372 = vperm.xlu0 %1371, %v293
        %v1373 = vpop.permute.xlu0 %1372
        %1375 = vset.pattern.permute.xlu0 6
        %1376 = vperm.xlu0 %1375, %v294
        %v1377 = vpop.permute.xlu0 %1376
        %1379 = vset.pattern.permute.xlu0 6
        %1380 = vperm.xlu0 %1379, %v295
        %v1381 = vpop.permute.xlu0 %1380
        %1383 = vset.pattern.permute.xlu0 6
        %1384 = vperm.xlu0 %1383, %v296
        %v1385 = vpop.permute.xlu0 %1384
        %1387 = vset.pattern.permute.xlu0 6
        %1388 = vperm.xlu0 %1387, %v297
        %v1389 = vpop.permute.xlu0 %1388
        %1391 = vset.pattern.permute.xlu0 6
        %1392 = vperm.xlu0 %1391, %v298
        %v1393 = vpop.permute.xlu0 %1392
        %1395 = vset.pattern.permute.xlu0 6
        %1396 = vperm.xlu0 %1395, %v299
        %v1397 = vpop.permute.xlu0 %1396
        %1399 = vset.pattern.permute.xlu0 6
        %1400 = vperm.xlu0 %1399, %v300
        %v1401 = vpop.permute.xlu0 %1400
        %1403 = vset.pattern.permute.xlu0 6
        %1404 = vperm.xlu0 %1403, %v301
        %v1405 = vpop.permute.xlu0 %1404
        %1407 = vset.pattern.permute.xlu0 6
        %1408 = vperm.xlu0 %1407, %v302
        %v1409 = vpop.permute.xlu0 %1408
        %1411 = vset.pattern.permute.xlu0 6
        %1412 = vperm.xlu0 %1411, %v303
        %v1413 = vpop.permute.xlu0 %1412
        %1415 = vset.pattern.permute.xlu0 6
        %1416 = vperm.xlu0 %1415, %v304
        %v1417 = vpop.permute.xlu0 %1416
        %1419 = vset.pattern.permute.xlu0 6
        %1420 = vperm.xlu0 %1419, %v305
        %v1421 = vpop.permute.xlu0 %1420
        %1423 = vset.pattern.permute.xlu0 6
        %1424 = vperm.xlu0 %1423, %v306
        %v1425 = vpop.permute.xlu0 %1424
        %1427 = vset.pattern.permute.xlu0 6
        %1428 = vperm.xlu0 %1427, %v307
        %v1429 = vpop.permute.xlu0 %1428
        %1431 = vset.pattern.permute.xlu0 6
        %1432 = vperm.xlu0 %1431, %v308
        %v1433 = vpop.permute.xlu0 %1432
        %1435 = vset.pattern.permute.xlu0 6
        %1436 = vperm.xlu0 %1435, %v309
        %v1437 = vpop.permute.xlu0 %1436
        %1439 = vset.pattern.permute.xlu0 6
        %1440 = vperm.xlu0 %1439, %v310
        %v1441 = vpop.permute.xlu0 %1440
        %1443 = vset.pattern.permute.xlu0 6
        %1444 = vperm.xlu0 %1443, %v311
        %v1445 = vpop.permute.xlu0 %1444
        %1447 = vset.pattern.permute.xlu0 6
        %1448 = vperm.xlu0 %1447, %v312
        %v1449 = vpop.permute.xlu0 %1448
        %1451 = vset.pattern.permute.xlu0 6
        %1452 = vperm.xlu0 %1451, %v313
        %v1453 = vpop.permute.xlu0 %1452
        %v1455 = vlaneseq
        %v1456 = vshrl.u32 %v1455, 7
        %v1457 = vsub.s32 6, %v1456
        %v1458 = vrot.slane %v314, %v1457
        %v1459 = vmul.f32 %v1349, %v1458
        %v1460 = vmul.f32 %v1353, %v1458
        %v1461 = vmul.f32 %v1357, %v1458
        %v1462 = vmul.f32 %v1361, %v1458
        %v1463 = vmul.f32 %v1365, %v1458
        %v1464 = vmul.f32 %v1369, %v1458
        %v1465 = vmul.f32 %v1373, %v1458
        %v1466 = vmul.f32 %v1377, %v1458
        %v1467 = vmul.f32 %v1381, %v1458
        %v1468 = vmul.f32 %v1385, %v1458
        %v1469 = vmul.f32 %v1389, %v1458
        %v1470 = vmul.f32 %v1393, %v1458
        %v1471 = vmul.f32 %v1397, %v1458
        %v1472 = vmul.f32 %v1401, %v1458
        %v1473 = vmul.f32 %v1405, %v1458
        %v1474 = vmul.f32 %v1409, %v1458
        %v1475 = vmul.f32 %v1413, %v1458
        %v1476 = vmul.f32 %v1417, %v1458
        %v1477 = vmul.f32 %v1421, %v1458
        %v1478 = vmul.f32 %v1425, %v1458
        %v1479 = vmul.f32 %v1429, %v1458
        %v1480 = vmul.f32 %v1433, %v1458
        %v1481 = vmul.f32 %v1437, %v1458
        %v1482 = vmul.f32 %v1441, %v1458
        %v1483 = vmul.f32 %v1445, %v1458
        %v1484 = vmul.f32 %v1449, %v1458
        %v1485 = vmul.f32 %v1453, %v1458
        %v1486 = vadd.f32 %v1320, %v1459
        %v1487 = vadd.f32 %v1321, %v1460
        %v1488 = vadd.f32 %v1322, %v1461
        %v1489 = vadd.f32 %v1323, %v1462
        %v1490 = vadd.f32 %v1324, %v1463
        %v1491 = vadd.f32 %v1325, %v1464
        %v1492 = vadd.f32 %v1326, %v1465
        %v1493 = vadd.f32 %v1327, %v1466
        %v1494 = vadd.f32 %v1328, %v1467
        %v1495 = vadd.f32 %v1329, %v1468
        %v1496 = vadd.f32 %v1330, %v1469
        %v1497 = vadd.f32 %v1331, %v1470
        %v1498 = vadd.f32 %v1332, %v1471
        %v1499 = vadd.f32 %v1333, %v1472
        %v1500 = vadd.f32 %v1334, %v1473
        %v1501 = vadd.f32 %v1335, %v1474
        %v1502 = vadd.f32 %v1336, %v1475
        %v1503 = vadd.f32 %v1337, %v1476
        %v1504 = vadd.f32 %v1338, %v1477
        %v1505 = vadd.f32 %v1339, %v1478
        %v1506 = vadd.f32 %v1340, %v1479
        %v1507 = vadd.f32 %v1341, %v1480
        %v1508 = vadd.f32 %v1342, %v1481
        %v1509 = vadd.f32 %v1343, %v1482
        %v1510 = vadd.f32 %v1344, %v1483
        %v1511 = vadd.f32 %v1345, %v1484
        %v1512 = vadd.f32 %v1346, %v1485
        %1513 = vset.pattern.permute.xlu0 7
        %1514 = vperm.xlu0 %1513, %v287
        %v1515 = vpop.permute.xlu0 %1514
        %1517 = vset.pattern.permute.xlu0 7
        %1518 = vperm.xlu0 %1517, %v288
        %v1519 = vpop.permute.xlu0 %1518
        %1521 = vset.pattern.permute.xlu0 7
        %1522 = vperm.xlu0 %1521, %v289
        %v1523 = vpop.permute.xlu0 %1522
        %1525 = vset.pattern.permute.xlu0 7
        %1526 = vperm.xlu0 %1525, %v290
        %v1527 = vpop.permute.xlu0 %1526
        %1529 = vset.pattern.permute.xlu0 7
        %1530 = vperm.xlu0 %1529, %v291
        %v1531 = vpop.permute.xlu0 %1530
        %1533 = vset.pattern.permute.xlu0 7
        %1534 = vperm.xlu0 %1533, %v292
        %v1535 = vpop.permute.xlu0 %1534
        %1537 = vset.pattern.permute.xlu0 7
        %1538 = vperm.xlu0 %1537, %v293
        %v1539 = vpop.permute.xlu0 %1538
        %1541 = vset.pattern.permute.xlu0 7
        %1542 = vperm.xlu0 %1541, %v294
        %v1543 = vpop.permute.xlu0 %1542
        %1545 = vset.pattern.permute.xlu0 7
        %1546 = vperm.xlu0 %1545, %v295
        %v1547 = vpop.permute.xlu0 %1546
        %1549 = vset.pattern.permute.xlu0 7
        %1550 = vperm.xlu0 %1549, %v296
        %v1551 = vpop.permute.xlu0 %1550
        %1553 = vset.pattern.permute.xlu0 7
        %1554 = vperm.xlu0 %1553, %v297
        %v1555 = vpop.permute.xlu0 %1554
        %1557 = vset.pattern.permute.xlu0 7
        %1558 = vperm.xlu0 %1557, %v298
        %v1559 = vpop.permute.xlu0 %1558
        %1561 = vset.pattern.permute.xlu0 7
        %1562 = vperm.xlu0 %1561, %v299
        %v1563 = vpop.permute.xlu0 %1562
        %1565 = vset.pattern.permute.xlu0 7
        %1566 = vperm.xlu0 %1565, %v300
        %v1567 = vpop.permute.xlu0 %1566
        %1569 = vset.pattern.permute.xlu0 7
        %1570 = vperm.xlu0 %1569, %v301
        %v1571 = vpop.permute.xlu0 %1570
        %1573 = vset.pattern.permute.xlu0 7
        %1574 = vperm.xlu0 %1573, %v302
        %v1575 = vpop.permute.xlu0 %1574
        %1577 = vset.pattern.permute.xlu0 7
        %1578 = vperm.xlu0 %1577, %v303
        %v1579 = vpop.permute.xlu0 %1578
        %1581 = vset.pattern.permute.xlu0 7
        %1582 = vperm.xlu0 %1581, %v304
        %v1583 = vpop.permute.xlu0 %1582
        %1585 = vset.pattern.permute.xlu0 7
        %1586 = vperm.xlu0 %1585, %v305
        %v1587 = vpop.permute.xlu0 %1586
        %1589 = vset.pattern.permute.xlu0 7
        %1590 = vperm.xlu0 %1589, %v306
        %v1591 = vpop.permute.xlu0 %1590
        %1593 = vset.pattern.permute.xlu0 7
        %1594 = vperm.xlu0 %1593, %v307
        %v1595 = vpop.permute.xlu0 %1594
        %1597 = vset.pattern.permute.xlu0 7
        %1598 = vperm.xlu0 %1597, %v308
        %v1599 = vpop.permute.xlu0 %1598
        %1601 = vset.pattern.permute.xlu0 7
        %1602 = vperm.xlu0 %1601, %v309
        %v1603 = vpop.permute.xlu0 %1602
        %1605 = vset.pattern.permute.xlu0 7
        %1606 = vperm.xlu0 %1605, %v310
        %v1607 = vpop.permute.xlu0 %1606
        %1609 = vset.pattern.permute.xlu0 7
        %1610 = vperm.xlu0 %1609, %v311
        %v1611 = vpop.permute.xlu0 %1610
        %1613 = vset.pattern.permute.xlu0 7
        %1614 = vperm.xlu0 %1613, %v312
        %v1615 = vpop.permute.xlu0 %1614
        %1617 = vset.pattern.permute.xlu0 7
        %1618 = vperm.xlu0 %1617, %v313
        %v1619 = vpop.permute.xlu0 %1618
        %v1621 = vlaneseq
        %v1622 = vshrl.u32 %v1621, 7
        %v1623 = vsub.s32 7, %v1622
        %v1624 = vrot.slane %v314, %v1623
        %v1625 = vmul.f32 %v1515, %v1624
        %v1626 = vmul.f32 %v1519, %v1624
        %v1627 = vmul.f32 %v1523, %v1624
        %v1628 = vmul.f32 %v1527, %v1624
        %v1629 = vmul.f32 %v1531, %v1624
        %v1630 = vmul.f32 %v1535, %v1624
        %v1631 = vmul.f32 %v1539, %v1624
        %v1632 = vmul.f32 %v1543, %v1624
        %v1633 = vmul.f32 %v1547, %v1624
        %v1634 = vmul.f32 %v1551, %v1624
        %v1635 = vmul.f32 %v1555, %v1624
        %v1636 = vmul.f32 %v1559, %v1624
        %v1637 = vmul.f32 %v1563, %v1624
        %v1638 = vmul.f32 %v1567, %v1624
        %v1639 = vmul.f32 %v1571, %v1624
        %v1640 = vmul.f32 %v1575, %v1624
        %v1641 = vmul.f32 %v1579, %v1624
        %v1642 = vmul.f32 %v1583, %v1624
        %v1643 = vmul.f32 %v1587, %v1624
        %v1644 = vmul.f32 %v1591, %v1624
        %v1645 = vmul.f32 %v1595, %v1624
        %v1646 = vmul.f32 %v1599, %v1624
        %v1647 = vmul.f32 %v1603, %v1624
        %v1648 = vmul.f32 %v1607, %v1624
        %v1649 = vmul.f32 %v1611, %v1624
        %v1650 = vmul.f32 %v1615, %v1624
        %v1651 = vmul.f32 %v1619, %v1624
        %v1652 = vadd.f32 %v1486, %v1625
        %v1653 = vadd.f32 %v1487, %v1626
        %v1654 = vadd.f32 %v1488, %v1627
        %v1655 = vadd.f32 %v1489, %v1628
        %v1656 = vadd.f32 %v1490, %v1629
        %v1657 = vadd.f32 %v1491, %v1630
        %v1658 = vadd.f32 %v1492, %v1631
        %v1659 = vadd.f32 %v1493, %v1632
        %v1660 = vadd.f32 %v1494, %v1633
        %v1661 = vadd.f32 %v1495, %v1634
        %v1662 = vadd.f32 %v1496, %v1635
        %v1663 = vadd.f32 %v1497, %v1636
        %v1664 = vadd.f32 %v1498, %v1637
        %v1665 = vadd.f32 %v1499, %v1638
        %v1666 = vadd.f32 %v1500, %v1639
        %v1667 = vadd.f32 %v1501, %v1640
        %v1668 = vadd.f32 %v1502, %v1641
        %v1669 = vadd.f32 %v1503, %v1642
        %v1670 = vadd.f32 %v1504, %v1643
        %v1671 = vadd.f32 %v1505, %v1644
        %v1672 = vadd.f32 %v1506, %v1645
        %v1673 = vadd.f32 %v1507, %v1646
        %v1674 = vadd.f32 %v1508, %v1647
        %v1675 = vadd.f32 %v1509, %v1648
        %v1676 = vadd.f32 %v1510, %v1649
        %v1677 = vadd.f32 %v1511, %v1650
        %v1678 = vadd.f32 %v1512, %v1651
        %1679 = vset.pattern.permute.xlu0 8
        %1680 = vperm.xlu0 %1679, %v287
        %v1681 = vpop.permute.xlu0 %1680
        %1683 = vset.pattern.permute.xlu0 8
        %1684 = vperm.xlu0 %1683, %v288
        %v1685 = vpop.permute.xlu0 %1684
        %1687 = vset.pattern.permute.xlu0 8
        %1688 = vperm.xlu0 %1687, %v289
        %v1689 = vpop.permute.xlu0 %1688
        %1691 = vset.pattern.permute.xlu0 8
        %1692 = vperm.xlu0 %1691, %v290
        %v1693 = vpop.permute.xlu0 %1692
        %1695 = vset.pattern.permute.xlu0 8
        %1696 = vperm.xlu0 %1695, %v291
        %v1697 = vpop.permute.xlu0 %1696
        %1699 = vset.pattern.permute.xlu0 8
        %1700 = vperm.xlu0 %1699, %v292
        %v1701 = vpop.permute.xlu0 %1700
        %1703 = vset.pattern.permute.xlu0 8
        %1704 = vperm.xlu0 %1703, %v293
        %v1705 = vpop.permute.xlu0 %1704
        %1707 = vset.pattern.permute.xlu0 8
        %1708 = vperm.xlu0 %1707, %v294
        %v1709 = vpop.permute.xlu0 %1708
        %1711 = vset.pattern.permute.xlu0 8
        %1712 = vperm.xlu0 %1711, %v295
        %v1713 = vpop.permute.xlu0 %1712
        %1715 = vset.pattern.permute.xlu0 8
        %1716 = vperm.xlu0 %1715, %v296
        %v1717 = vpop.permute.xlu0 %1716
        %1719 = vset.pattern.permute.xlu0 8
        %1720 = vperm.xlu0 %1719, %v297
        %v1721 = vpop.permute.xlu0 %1720
        %1723 = vset.pattern.permute.xlu0 8
        %1724 = vperm.xlu0 %1723, %v298
        %v1725 = vpop.permute.xlu0 %1724
        %1727 = vset.pattern.permute.xlu0 8
        %1728 = vperm.xlu0 %1727, %v299
        %v1729 = vpop.permute.xlu0 %1728
        %1731 = vset.pattern.permute.xlu0 8
        %1732 = vperm.xlu0 %1731, %v300
        %v1733 = vpop.permute.xlu0 %1732
        %1735 = vset.pattern.permute.xlu0 8
        %1736 = vperm.xlu0 %1735, %v301
        %v1737 = vpop.permute.xlu0 %1736
        %1739 = vset.pattern.permute.xlu0 8
        %1740 = vperm.xlu0 %1739, %v302
        %v1741 = vpop.permute.xlu0 %1740
        %1743 = vset.pattern.permute.xlu0 8
        %1744 = vperm.xlu0 %1743, %v303
        %v1745 = vpop.permute.xlu0 %1744
        %1747 = vset.pattern.permute.xlu0 8
        %1748 = vperm.xlu0 %1747, %v304
        %v1749 = vpop.permute.xlu0 %1748
        %1751 = vset.pattern.permute.xlu0 8
        %1752 = vperm.xlu0 %1751, %v305
        %v1753 = vpop.permute.xlu0 %1752
        %1755 = vset.pattern.permute.xlu0 8
        %1756 = vperm.xlu0 %1755, %v306
        %v1757 = vpop.permute.xlu0 %1756
        %1759 = vset.pattern.permute.xlu0 8
        %1760 = vperm.xlu0 %1759, %v307
        %v1761 = vpop.permute.xlu0 %1760
        %1763 = vset.pattern.permute.xlu0 8
        %1764 = vperm.xlu0 %1763, %v308
        %v1765 = vpop.permute.xlu0 %1764
        %1767 = vset.pattern.permute.xlu0 8
        %1768 = vperm.xlu0 %1767, %v309
        %v1769 = vpop.permute.xlu0 %1768
        %1771 = vset.pattern.permute.xlu0 8
        %1772 = vperm.xlu0 %1771, %v310
        %v1773 = vpop.permute.xlu0 %1772
        %1775 = vset.pattern.permute.xlu0 8
        %1776 = vperm.xlu0 %1775, %v311
        %v1777 = vpop.permute.xlu0 %1776
        %1779 = vset.pattern.permute.xlu0 8
        %1780 = vperm.xlu0 %1779, %v312
        %v1781 = vpop.permute.xlu0 %1780
        %1783 = vset.pattern.permute.xlu0 8
        %1784 = vperm.xlu0 %1783, %v313
        %v1785 = vpop.permute.xlu0 %1784
        %v1787 = vlaneseq
        %v1788 = vshrl.u32 %v1787, 7
        %v1789 = vsub.s32 0, %v1788
        %v1790 = vrot.slane %v315, %v1789
        %v1791 = vmul.f32 %v1681, %v1790
        %v1792 = vmul.f32 %v1685, %v1790
        %v1793 = vmul.f32 %v1689, %v1790
        %v1794 = vmul.f32 %v1693, %v1790
        %v1795 = vmul.f32 %v1697, %v1790
        %v1796 = vmul.f32 %v1701, %v1790
        %v1797 = vmul.f32 %v1705, %v1790
        %v1798 = vmul.f32 %v1709, %v1790
        %v1799 = vmul.f32 %v1713, %v1790
        %v1800 = vmul.f32 %v1717, %v1790
        %v1801 = vmul.f32 %v1721, %v1790
        %v1802 = vmul.f32 %v1725, %v1790
        %v1803 = vmul.f32 %v1729, %v1790
        %v1804 = vmul.f32 %v1733, %v1790
        %v1805 = vmul.f32 %v1737, %v1790
        %v1806 = vmul.f32 %v1741, %v1790
        %v1807 = vmul.f32 %v1745, %v1790
        %v1808 = vmul.f32 %v1749, %v1790
        %v1809 = vmul.f32 %v1753, %v1790
        %v1810 = vmul.f32 %v1757, %v1790
        %v1811 = vmul.f32 %v1761, %v1790
        %v1812 = vmul.f32 %v1765, %v1790
        %v1813 = vmul.f32 %v1769, %v1790
        %v1814 = vmul.f32 %v1773, %v1790
        %v1815 = vmul.f32 %v1777, %v1790
        %v1816 = vmul.f32 %v1781, %v1790
        %v1817 = vmul.f32 %v1785, %v1790
        %v1818 = vadd.f32 %v1652, %v1791
        %v1819 = vadd.f32 %v1653, %v1792
        %v1820 = vadd.f32 %v1654, %v1793
        %v1821 = vadd.f32 %v1655, %v1794
        %v1822 = vadd.f32 %v1656, %v1795
        %v1823 = vadd.f32 %v1657, %v1796
        %v1824 = vadd.f32 %v1658, %v1797
        %v1825 = vadd.f32 %v1659, %v1798
        %v1826 = vadd.f32 %v1660, %v1799
        %v1827 = vadd.f32 %v1661, %v1800
        %v1828 = vadd.f32 %v1662, %v1801
        %v1829 = vadd.f32 %v1663, %v1802
        %v1830 = vadd.f32 %v1664, %v1803
        %v1831 = vadd.f32 %v1665, %v1804
        %v1832 = vadd.f32 %v1666, %v1805
        %v1833 = vadd.f32 %v1667, %v1806
        %v1834 = vadd.f32 %v1668, %v1807
        %v1835 = vadd.f32 %v1669, %v1808
        %v1836 = vadd.f32 %v1670, %v1809
        %v1837 = vadd.f32 %v1671, %v1810
        %v1838 = vadd.f32 %v1672, %v1811
        %v1839 = vadd.f32 %v1673, %v1812
        %v1840 = vadd.f32 %v1674, %v1813
        %v1841 = vadd.f32 %v1675, %v1814
        %v1842 = vadd.f32 %v1676, %v1815
        %v1843 = vadd.f32 %v1677, %v1816
        %v1844 = vadd.f32 %v1678, %v1817
        %v1845 = vmax.f32 %v1818, 0.0
        %v1846 = vmax.f32 %v1819, 0.0
        %v1847 = vmax.f32 %v1820, 0.0
        %v1848 = vmax.f32 %v1821, 0.0
        %v1849 = vmax.f32 %v1822, 0.0
        %v1850 = vmax.f32 %v1823, 0.0
        %v1851 = vmax.f32 %v1824, 0.0
        %v1852 = vmax.f32 %v1825, 0.0
        %v1853 = vmax.f32 %v1826, 0.0
        %v1854 = vmax.f32 %v1827, 0.0
        %v1855 = vmax.f32 %v1828, 0.0
        %v1856 = vmax.f32 %v1829, 0.0
        %v1857 = vmax.f32 %v1830, 0.0
        %v1858 = vmax.f32 %v1831, 0.0
        %v1859 = vmax.f32 %v1832, 0.0
        %v1860 = vmax.f32 %v1833, 0.0
        %v1861 = vmax.f32 %v1834, 0.0
        %v1862 = vmax.f32 %v1835, 0.0
        %v1863 = vmax.f32 %v1836, 0.0
        %v1864 = vmax.f32 %v1837, 0.0
        %v1865 = vmax.f32 %v1838, 0.0
        %v1866 = vmax.f32 %v1839, 0.0
        %v1867 = vmax.f32 %v1840, 0.0
        %v1868 = vmax.f32 %v1841, 0.0
        %v1869 = vmax.f32 %v1842, 0.0
        %v1870 = vmax.f32 %v1843, 0.0
        %v1871 = vmax.f32 %v1844, 0.0
        %v1872 = vld [vmem:[#allocation5] sm:$0xff]
        %v1873 = vld [vmem:[#allocation5 + $0x8] sm:$0xff]
        %v1874 = vld [vmem:[#allocation5 + $0x10] sm:$0xff]
        %v1875 = vld [vmem:[#allocation5 + $0x18] sm:$0xff]
        %v1876 = vld [vmem:[#allocation5 + $0x20] sm:$0xff]
        %v1877 = vld [vmem:[#allocation5 + $0x28] sm:$0xff]
        %v1878 = vld [vmem:[#allocation5 + $0x30] sm:$0xff]
        %v1879 = vld [vmem:[#allocation5 + $0x38] sm:$0xff]
        %v1880 = vld [vmem:[#allocation5 + $0x40] sm:$0xff]
        %v1881 = vld [vmem:[#allocation5 + $0x48] sm:$0xff]
        %v1882 = vld [vmem:[#allocation5 + $0x50] sm:$0xff]
        %v1883 = vld [vmem:[#allocation5 + $0x58] sm:$0xff]
        %v1884 = vld [vmem:[#allocation5 + $0x60] sm:$0xff]
        %v1885 = vld [vmem:[#allocation5 + $0x68] sm:$0xff]
        %v1886 = vld [vmem:[#allocation5 + $0x70] sm:$0xff]
        %v1887 = vld [vmem:[#allocation5 + $0x78] sm:$0xff]
        %v1888 = vld [vmem:[#allocation5 + $0x80] sm:$0xff]
        %v1889 = vld [vmem:[#allocation5 + $0x88] sm:$0xff]
        %v1890 = vld [vmem:[#allocation5 + $0x90] sm:$0xff]
        %v1891 = vld [vmem:[#allocation5 + $0x98] sm:$0xff]
        %v1892 = vld [vmem:[#allocation5 + $0xa0] sm:$0xff]
        %v1893 = vld [vmem:[#allocation5 + $0xa8] sm:$0xff]
        %v1894 = vld [vmem:[#allocation5 + $0xb0] sm:$0xff]
        %v1895 = vld [vmem:[#allocation5 + $0xb8] sm:$0xff]
        %v1896 = vld [vmem:[#allocation5 + $0xc0] sm:$0xff]
        %v1897 = vld [vmem:[#allocation5 + $0xc8] sm:$0xff]
        %v1898 = vld [vmem:[#allocation5 + $0xd0] sm:$0xff]
        %1900 = vset.pattern.permute.xlu0 0
        %1901 = vperm.xlu0 %1900, %v1872
        %v1902 = vpop.permute.xlu0 %1901
        %1905 = vset.pattern.permute.xlu0 0
        %1906 = vperm.xlu0 %1905, %v1873
        %v1907 = vpop.permute.xlu0 %1906
        %1910 = vset.pattern.permute.xlu0 0
        %1911 = vperm.xlu0 %1910, %v1874
        %v1912 = vpop.permute.xlu0 %1911
        %1915 = vset.pattern.permute.xlu0 0
        %1916 = vperm.xlu0 %1915, %v1875
        %v1917 = vpop.permute.xlu0 %1916
        %1920 = vset.pattern.permute.xlu0 0
        %1921 = vperm.xlu0 %1920, %v1876
        %v1922 = vpop.permute.xlu0 %1921
        %1925 = vset.pattern.permute.xlu0 0
        %1926 = vperm.xlu0 %1925, %v1877
        %v1927 = vpop.permute.xlu0 %1926
        %1930 = vset.pattern.permute.xlu0 0
        %1931 = vperm.xlu0 %1930, %v1878
        %v1932 = vpop.permute.xlu0 %1931
        %1935 = vset.pattern.permute.xlu0 0
        %1936 = vperm.xlu0 %1935, %v1879
        %v1937 = vpop.permute.xlu0 %1936
        %1940 = vset.pattern.permute.xlu0 0
        %1941 = vperm.xlu0 %1940, %v1880
        %v1942 = vpop.permute.xlu0 %1941
        %1945 = vset.pattern.permute.xlu0 0
        %1946 = vperm.xlu0 %1945, %v1881
        %v1947 = vpop.permute.xlu0 %1946
        %1950 = vset.pattern.permute.xlu0 0
        %1951 = vperm.xlu0 %1950, %v1882
        %v1952 = vpop.permute.xlu0 %1951
        %1955 = vset.pattern.permute.xlu0 0
        %1956 = vperm.xlu0 %1955, %v1883
        %v1957 = vpop.permute.xlu0 %1956
        %1960 = vset.pattern.permute.xlu0 0
        %1961 = vperm.xlu0 %1960, %v1884
        %v1962 = vpop.permute.xlu0 %1961
        %1965 = vset.pattern.permute.xlu0 0
        %1966 = vperm.xlu0 %1965, %v1885
        %v1967 = vpop.permute.xlu0 %1966
        %1970 = vset.pattern.permute.xlu0 0
        %1971 = vperm.xlu0 %1970, %v1886
        %v1972 = vpop.permute.xlu0 %1971
        %1975 = vset.pattern.permute.xlu0 0
        %1976 = vperm.xlu0 %1975, %v1887
        %v1977 = vpop.permute.xlu0 %1976
        %1980 = vset.pattern.permute.xlu0 0
        %1981 = vperm.xlu0 %1980, %v1888
        %v1982 = vpop.permute.xlu0 %1981
        %1985 = vset.pattern.permute.xlu0 0
        %1986 = vperm.xlu0 %1985, %v1889
        %v1987 = vpop.permute.xlu0 %1986
        %1990 = vset.pattern.permute.xlu0 0
        %1991 = vperm.xlu0 %1990, %v1890
        %v1992 = vpop.permute.xlu0 %1991
        %1995 = vset.pattern.permute.xlu0 0
        %1996 = vperm.xlu0 %1995, %v1891
        %v1997 = vpop.permute.xlu0 %1996
        %2000 = vset.pattern.permute.xlu0 0
        %2001 = vperm.xlu0 %2000, %v1892
        %v2002 = vpop.permute.xlu0 %2001
        %2005 = vset.pattern.permute.xlu0 0
        %2006 = vperm.xlu0 %2005, %v1893
        %v2007 = vpop.permute.xlu0 %2006
        %2010 = vset.pattern.permute.xlu0 0
        %2011 = vperm.xlu0 %2010, %v1894
        %v2012 = vpop.permute.xlu0 %2011
        %2015 = vset.pattern.permute.xlu0 0
        %2016 = vperm.xlu0 %2015, %v1895
        %v2017 = vpop.permute.xlu0 %2016
        %2020 = vset.pattern.permute.xlu0 0
        %2021 = vperm.xlu0 %2020, %v1896
        %v2022 = vpop.permute.xlu0 %2021
        %2025 = vset.pattern.permute.xlu0 0
        %2026 = vperm.xlu0 %2025, %v1897
        %v2027 = vpop.permute.xlu0 %2026
        %2030 = vset.pattern.permute.xlu0 0
        %2031 = vperm.xlu0 %2030, %v1898
        %v2032 = vpop.permute.xlu0 %2031
        %v2034 = vmul.f32 %v1845, %v1902
        %v2035 = vmul.f32 %v1846, %v1907
        %v2036 = vmul.f32 %v1847, %v1912
        %v2037 = vmul.f32 %v1848, %v1917
        %v2038 = vmul.f32 %v1849, %v1922
        %v2039 = vmul.f32 %v1850, %v1927
        %v2040 = vmul.f32 %v1851, %v1932
        %v2041 = vmul.f32 %v1852, %v1937
        %v2042 = vmul.f32 %v1853, %v1942
        %v2043 = vmul.f32 %v1854, %v1947
        %v2044 = vmul.f32 %v1855, %v1952
        %v2045 = vmul.f32 %v1856, %v1957
        %v2046 = vmul.f32 %v1857, %v1962
        %v2047 = vmul.f32 %v1858, %v1967
        %v2048 = vmul.f32 %v1859, %v1972
        %v2049 = vmul.f32 %v1860, %v1977
        %v2050 = vmul.f32 %v1861, %v1982
        %v2051 = vmul.f32 %v1862, %v1987
        %v2052 = vmul.f32 %v1863, %v1992
        %v2053 = vmul.f32 %v1864, %v1997
        %v2054 = vmul.f32 %v1865, %v2002
        %v2055 = vmul.f32 %v1866, %v2007
        %v2056 = vmul.f32 %v1867, %v2012
        %v2057 = vmul.f32 %v1868, %v2017
        %v2058 = vmul.f32 %v1869, %v2022
        %v2059 = vmul.f32 %v1870, %v2027
        %v2060 = vmul.f32 %v1871, %v2032
        %v2061 = vpack.c.bf16 %v2035, %v2034
        %v2062 = vpack.c.bf16 %v2037, %v2036
        %v2063 = vpack.c.bf16 %v2039, %v2038
        %v2064 = vpack.c.bf16 %v2041, %v2040
        %v2065 = vpack.c.bf16 %v2043, %v2042
        %v2066 = vpack.c.bf16 %v2045, %v2044
        %v2067 = vpack.c.bf16 %v2047, %v2046
        %v2068 = vpack.c.bf16 %v2049, %v2048
        %v2069 = vpack.c.bf16 %v2051, %v2050
        %v2070 = vpack.c.bf16 %v2053, %v2052
        %v2071 = vpack.c.bf16 %v2055, %v2054
        %v2072 = vpack.c.bf16 %v2057, %v2056
        %v2073 = vpack.c.bf16 %v2059, %v2058
        %v2074 = vpack.c.bf16 %v2060, %v2060
        %v2089 = vunpack.c.l.b16 %v2061
        %v2090 = vunpack.c.h.b16 %v2061
        %v2091 = vunpack.c.l.b16 %v2062
        %v2092 = vunpack.c.h.b16 %v2062
        %v2093 = vunpack.c.l.b16 %v2063
        %v2094 = vunpack.c.h.b16 %v2063
        %v2095 = vunpack.c.l.b16 %v2064
        %v2096 = vunpack.c.h.b16 %v2064
        %v2097 = vunpack.c.l.b16 %v2065
        %v2098 = vunpack.c.h.b16 %v2065
        %v2099 = vunpack.c.l.b16 %v2066
        %v2100 = vunpack.c.h.b16 %v2066
        %v2101 = vunpack.c.l.b16 %v2067
        %v2102 = vunpack.c.h.b16 %v2067
        %v2103 = vunpack.c.l.b16 %v2068
        %v2104 = vunpack.c.h.b16 %v2068
        %v2105 = vunpack.c.l.b16 %v2069
        %v2106 = vunpack.c.h.b16 %v2069
        %v2107 = vunpack.c.l.b16 %v2070
        %v2108 = vunpack.c.h.b16 %v2070
        %v2109 = vunpack.c.l.b16 %v2071
        %v2110 = vunpack.c.h.b16 %v2071
        %v2111 = vunpack.c.l.b16 %v2072
        %v2112 = vunpack.c.h.b16 %v2072
        %v2113 = vunpack.c.l.b16 %v2073
        %v2114 = vunpack.c.h.b16 %v2073
        %v2115 = vunpack.c.l.b16 %v2074
        %v2116 = vpack.c.b16 %v2089, %v2089
        %v2117 = vpack.c.b16 %v2090, %v2090
        %v2118 = vpack.c.b16 %v2091, %v2091
        %v2119 = vpack.c.b16 %v2092, %v2092
        %v2120 = vpack.c.b16 %v2093, %v2093
        %v2121 = vpack.c.b16 %v2094, %v2094
        %v2122 = vpack.c.b16 %v2095, %v2095
        %v2123 = vpack.c.b16 %v2096, %v2096
        %v2124 = vpack.c.b16 %v2097, %v2097
        %v2125 = vpack.c.b16 %v2098, %v2098
        %v2126 = vpack.c.b16 %v2099, %v2099
        %v2127 = vpack.c.b16 %v2100, %v2100
        %v2128 = vpack.c.b16 %v2101, %v2101
        %v2129 = vpack.c.b16 %v2102, %v2102
        %v2130 = vpack.c.b16 %v2103, %v2103
        %v2131 = vpack.c.b16 %v2104, %v2104
        %v2132 = vpack.c.b16 %v2105, %v2105
        %v2133 = vpack.c.b16 %v2106, %v2106
        %v2134 = vpack.c.b16 %v2107, %v2107
        %v2135 = vpack.c.b16 %v2108, %v2108
        %v2136 = vpack.c.b16 %v2109, %v2109
        %v2137 = vpack.c.b16 %v2110, %v2110
        %v2138 = vpack.c.b16 %v2111, %v2111
        %v2139 = vpack.c.b16 %v2112, %v2112
        %v2140 = vpack.c.b16 %v2113, %v2113
        %v2141 = vpack.c.b16 %v2114, %v2114
        %v2142 = vpack.c.b16 %v2115, %v2115
        %vm2170 = vcmask 257024
        %2171 = vst.msk [vmem:[%s283] sm:$0xf] %vm2170, %v2116
        %2172 = vst.msk [vmem:[%s283 + $0x4] sm:$0xf] %vm2170, %v2117
        %2173 = vst.msk [vmem:[%s283 + $0x8] sm:$0xf] %vm2170, %v2118
        %2174 = vst.msk [vmem:[%s283 + $0xc] sm:$0xf] %vm2170, %v2119
        %2175 = vst.msk [vmem:[%s283 + $0x10] sm:$0xf] %vm2170, %v2120
        %2176 = vst.msk [vmem:[%s283 + $0x14] sm:$0xf] %vm2170, %v2121
        %2177 = vst.msk [vmem:[%s283 + $0x18] sm:$0xf] %vm2170, %v2122
        %2178 = vst.msk [vmem:[%s283 + $0x1c] sm:$0xf] %vm2170, %v2123
        %2179 = vst.msk [vmem:[%s283 + $0x20] sm:$0xf] %vm2170, %v2124
        %2180 = vst.msk [vmem:[%s283 + $0x24] sm:$0xf] %vm2170, %v2125
        %2181 = vst.msk [vmem:[%s283 + $0x28] sm:$0xf] %vm2170, %v2126
        %2182 = vst.msk [vmem:[%s283 + $0x2c] sm:$0xf] %vm2170, %v2127
        %2183 = vst.msk [vmem:[%s283 + $0x30] sm:$0xf] %vm2170, %v2128
        %2184 = vst.msk [vmem:[%s283 + $0x34] sm:$0xf] %vm2170, %v2129
        %2185 = vst.msk [vmem:[%s283 + $0x38] sm:$0xf] %vm2170, %v2130
        %2186 = vst.msk [vmem:[%s283 + $0x3c] sm:$0xf] %vm2170, %v2131
        %2187 = vst.msk [vmem:[%s283 + $0x40] sm:$0xf] %vm2170, %v2132
        %2188 = vst.msk [vmem:[%s283 + $0x44] sm:$0xf] %vm2170, %v2133
        %2189 = vst.msk [vmem:[%s283 + $0x48] sm:$0xf] %vm2170, %v2134
        %2190 = vst.msk [vmem:[%s283 + $0x4c] sm:$0xf] %vm2170, %v2135
        %2191 = vst.msk [vmem:[%s283 + $0x50] sm:$0xf] %vm2170, %v2136
        %2192 = vst.msk [vmem:[%s283 + $0x54] sm:$0xf] %vm2170, %v2137
        %2193 = vst.msk [vmem:[%s283 + $0x58] sm:$0xf] %vm2170, %v2138
        %2194 = vst.msk [vmem:[%s283 + $0x5c] sm:$0xf] %vm2170, %v2139
        %2195 = vst.msk [vmem:[%s283 + $0x60] sm:$0xf] %vm2170, %v2140
        %2196 = vst.msk [vmem:[%s283 + $0x64] sm:$0xf] %vm2170, %v2141
        %2197 = vst.msk [vmem:[%s283 + $0x68] sm:$0xf] %vm2170, %v2142
        %s2198 = sand.u32 %s141, 1
        %s2199 = scalar_lea.sflag [#allocation4], %s2198
        %s2200 = sand.u32 %s141, 1
        %s2201 = smul.addr %s2200, 108
        %s2202 = scalar_lea.vmem [#allocation10], %s2201
        // Predicated region
        $region53: #{causal_conv2d_subsampling.2} parent=35 // pred_check
          %p2203 = pneg %p151
        $region54: #{causal_conv2d_subsampling.2} parent=35 // pred_check_branch
          %2205 = sbr.rel (%p2203) target = $region56
        $region55: #{causal_conv2d_subsampling.2} parent=35 // pred_region
          %s2206 = smul.u32 27, %s28
          %s2208 = ssub.s32 1728, 1728
          %2209 = vsyncadd %s2199, %s2208
          %s2210 = smul.addr %s27, 27
          %s2211 = sadd.s32 %s2206, %s2210
          %s2212 = smul.addr %s2211, 64
          %s2213 = scalar_lea.hbm %s4, %s2212
          %s2214 = sshll.u32 %s2202, 4
          %s2215 = int_to_ptr.vmem [resolvable:$true] %s2214
          %2220 = dma.vmem_to_hbm [thread:$0]  %s2215, 1728, %s2213, %s2199, 64, 64, 4
        $region56: #{causal_conv2d_subsampling.2} parent=35 // pred_fallthru
          _
      $region36: #{causal_conv2d_subsampling.2} parent=5 // pred_fallthru
        _
      %p2221 = scmp.le.s32.totalorder 2, %s18
      // Predicated region
      $region57: #{causal_conv2d_subsampling.2} parent=5 // pred_check
        %p2222 = pneg %p2221
      $region58: #{causal_conv2d_subsampling.2} parent=5 // pred_check_branch
        %2224 = sbr.rel (%p2222) target = $region60
      $region59: #{causal_conv2d_subsampling.2} parent=5 // pred_region
        %s2225 = ssub.s32 %s18, 2
        // Predicated region
        $region61: #{causal_conv2d_subsampling.2} parent=59 // pred_check
          %p2226 = pneg %p157
        $region62: #{causal_conv2d_subsampling.2} parent=59 // pred_check_branch
          %2228 = sbr.rel (%p2226) target = $region64
        $region63: #{causal_conv2d_subsampling.2} parent=59 // pred_region
          %s2229 = sand.u32 %s142, 1
          %s2230 = scalar_lea.sflag [#allocation4], %s2229
          %s2231 = sand.u32 %s142, 1
          %s2232 = smul.addr %s2231, 108
          %s2233 = scalar_lea.vmem [#allocation10], %s2232
          %2234 = dma.done %s2230, 1728
        $region64: #{causal_conv2d_subsampling.2} parent=59 // pred_fallthru
          _
      $region60: #{causal_conv2d_subsampling.2} parent=5 // pred_fallthru
        _
    $region6: #{causal_conv2d_subsampling.2} parent=1 // loop_footer
      %s22 = sadd.s32 1, %s18
    $region7: #{causal_conv2d_subsampling.2} parent=1 // loop_footer_branch
      %17 = sbr.rel target = $region3
    $region8: #{causal_conv2d_subsampling.2} parent=1 // loop_exit
      _
    %2235 = vsyncpa [#allocation3], 1
    %s2236 = scalar_lea.sflag [#allocation3], 1
    %2237 = vsyncpa %s2236, 1
    %2238 = vsyncpa [#allocation6], 1
    %2239 = vsyncpa [#allocation9], 1
    %2240 = vsyncpa [#allocation4], 1
    %s2241 = scalar_lea.sflag [#allocation4], 1
    %2242 = vsyncpa %s2241, 1

// kernel: causal_conv2d_subsampling.3
$region0: #{causal_conv2d_subsampling.3}
  #allocation0 [shape = 'u32[]', space=smem, size = 0x4, offset = 0x4, fixed_abs, tag = 'smem constant byte address 0x4 - core index']
  #allocation1 [shape = 'u32[144,128]{1,0:T(1,128)}', space=vmem, size = 0x12000, scoped, tag = 'internal scratch']
  %s0 = inlined_call_operand.hbm [shape: bf16[2,3,8,288], index: 0, kind: input, shape index: {}]
  %s1 = inlined_call_operand.hbm [shape: bf16[288,32], index: 1, kind: input, shape index: {}]
  %s2 = inlined_call_operand.hbm [shape: f32[1,32], index: 2, kind: input, shape index: {}]
  %s3 = inlined_call_operand.hbm [shape: bf16[3,32,32], index: 3, kind: input, shape index: {}]
  %s4 = inlined_call_operand.hbm [shape: f32[1,32], index: 4, kind: input, shape index: {}]
  %s5 = inlined_call_operand.hbm [shape: f32[8,32], index: 5, kind: input, shape index: {}]
  %s6 = inlined_call_operand.hbm [shape: f32[2,3,32], index: 6, kind: output, shape index: {}]
  %s7 = sld [smem:[#allocation0]]
  $region81: #{causal_conv2d_subsampling.3} parent=0
    _
  %s9 = ssub.s32 1, %s7
  %s10 = scalar_select 0, %s9, %s7
  $region1: #{causal_conv2d_subsampling.3} parent=0
    #allocation2 [shape = 'u8[36864]{0}', space=vmem, size = 0x9000, scoped, tag = 'input window, operand 0']
    #allocation3 [shape = 's32[2]{0}', space=sflag, size = 0x8, scoped, tag = 'scoped memory for causal_conv2d_subsampling.3']
    #allocation4 [shape = 's32[2]{0}', space=sflag, size = 0x8, scoped, tag = 'scoped memory for causal_conv2d_subsampling.3']
    #allocation5 [shape = 'u8[73728]{0}', space=vmem, size = 0x12000, scoped, tag = 'input window, operand 1, single buffered']
    #allocation6 [shape = 's32[1]{0}', space=sflag, size = 0x4, scoped, tag = 'scoped memory for causal_conv2d_subsampling.3']
    #allocation7 [shape = 'u8[512]{0}', space=vmem, size = 0x400, scoped, tag = 'input window, operand 2, single buffered']
    #allocation8 [shape = 'u8[24576]{0}', space=vmem, size = 0x6000, scoped, tag = 'input window, operand 3, single buffered']
    #allocation9 [shape = 's32[1]{0}', space=sflag, size = 0x4, scoped, tag = 'scoped memory for causal_conv2d_subsampling.3']
    #allocation10 [shape = 'u8[512]{0}', space=vmem, size = 0x400, scoped, tag = 'input window, operand 4, single buffered']
    #allocation11 [shape = 'u8[4096]{0}', space=vmem, size = 0x1000, scoped, tag = 'input window, operand 5, single buffered']
    #allocation12 [shape = 's32[1]{0}', space=sflag, size = 0x4, scoped, tag = 'scoped memory for causal_conv2d_subsampling.3']
    #allocation13 [shape = 'u8[8192]{0}', space=vmem, size = 0x2000, scoped, tag = 'output window, operand 0']
    %11 = vsyncpa [#allocation3], 0
    %s12 = scalar_lea.sflag [#allocation3], 1
    %13 = vsyncpa %s12, 0
    %14 = vsyncpa [#allocation6], 0
    %15 = vsyncpa [#allocation9], 0
    %16 = vsyncpa [#allocation12], 0
    %17 = vsyncpa [#allocation4], 0
    %s18 = scalar_lea.sflag [#allocation4], 1
    %19 = vsyncpa %s18, 0
    loop: start=0, step=1, limit=4
    $region2: #{causal_conv2d_subsampling.3} parent=1 // loop_pre_header
      _
    $region3: #{causal_conv2d_subsampling.3} parent=1 // loop_header
      %s21 = sphi 0, %s25
      %p22 = scmp.ge.s32.totalorder %s21, 4
      %s28 = sphi 0, %s40
      %s29 = sphi 0, %s36
      %s30 = sphi 0, %s28
      %s31 = sphi 0, %s29
      %s32 = sphi 0, %s30
      %s33 = sphi 0, %s31
      %s45 = sphi 0, %s47
      %s48 = sphi 0, %s45
      %s49 = sphi 0, %s48
      %s65 = sphi 0, %s49
      %s69 = sphi 0, %s69
      %s71 = sphi 0, %s69
      %s72 = sphi 0, %s71
      %s86 = sphi 0, %s72
      %s90 = sphi 0, %s90
      %s92 = sphi 0, %s90
      %s93 = sphi 0, %s92
      %s107 = sphi 0, %s93
      %s111 = sphi 0, %s111
      %s113 = sphi 0, %s111
      %s114 = sphi 0, %s113
      %s128 = sphi 0, %s114
      %s132 = sphi 0, %s132
      %s134 = sphi 0, %s132
      %s135 = sphi 0, %s134
      %s149 = sphi 0, %s135
      %s155 = sphi 0, %s157
      %s158 = sphi 0, %s155
      %s159 = sphi 0, %s158
      %s175 = sphi 0, %s159
      %s183 = sphi 0, %s185
      %s186 = sphi 0, %s183
      %s187 = sphi 0, %s186
      %s203 = sphi 0, %s187
    $region4: #{causal_conv2d_subsampling.3} parent=1 // loop_header_branch
      %24 = sbr.rel (%p22) target = $region8
    $region5: #{causal_conv2d_subsampling.3} parent=1 // loop_body
      %s26 = ssub.s32 %s21, 1
      %s27 = ssub.s32 %s21, 2
      %s34 = sadd.s32 1, %s29
      %p35 = scmp.ge.s32.totalorder %s34, 1
      %s36 = scalar_select %p35, 0, %s34
      %s37 = sadd.s32 1, %s28
      %s38 = scalar_select %p35, %s37, %s28
      %p39 = scmp.ge.s32.totalorder %s38, 2
      %s40 = scalar_select %p39, 0, %s38
      %s41 = ssub.s32 %s28, %s40
      %s42 = ssub.s32 %s29, %s36
      %s43 = sor.u32 %s41, %s42
      %p44 = scmp.eq.s32.totalorder %s43, 0
      %s46 = sadd.s32 %s45, 1
      %s47 = scalar_select %p44, %s45, %s46
      %p50 = pneg %p44
      %p51 = scmp.eq.s32.totalorder %s21, 1
      %p52 = por %p50, %p51
      %p53 = scmp.ne.s32.totalorder %s45, %s48
      %p54 = scmp.eq.s32.totalorder %s21, 0
      %p55 = por %p53, %p54
      %p56 = scmp.ne.s32.totalorder %s45, %s48
      %p57 = scmp.eq.s32.totalorder %s26, 1
      %p58 = por %p56, %p57
      %p59 = scmp.ne.s32.totalorder %s48, %s49
      %p60 = scmp.eq.s32.totalorder %s26, 0
      %p61 = por %p59, %p60
      %p62 = scmp.ne.s32.totalorder %s48, %s49
      %p63 = scmp.eq.s32.totalorder %s27, 1
      %p64 = por %p62, %p63
      %p66 = scmp.ne.s32.totalorder %s49, %s65
      %p67 = scmp.eq.s32.totalorder %s27, 0
      %p68 = por %p66, %p67
      %s70 = sadd.s32 %s69, 1
      %p73 = scmp.eq.s32.totalorder %s21, 1
      %p74 = scmp.ne.s32.totalorder %s69, %s71
      %p75 = scmp.eq.s32.totalorder %s21, 0
      %p76 = por %p74, %p75
      %p77 = scmp.ne.s32.totalorder %s69, %s71
      %p78 = scmp.eq.s32.totalorder %s26, 1
      %p79 = por %p77, %p78
      %p80 = scmp.ne.s32.totalorder %s71, %s72
      %p81 = scmp.eq.s32.totalorder %s26, 0
      %p82 = por %p80, %p81
      %p83 = scmp.ne.s32.totalorder %s71, %s72
      %p84 = scmp.eq.s32.totalorder %s27, 1
      %p85 = por %p83, %p84
      %p87 = scmp.ne.s32.totalorder %s72, %s86
      %p88 = scmp.eq.s32.totalorder %s27, 0
      %p89 = por %p87, %p88
      %s91 = sadd.s32 %s90, 1
      %p94 = scmp.eq.s32.totalorder %s21, 1
      %p95 = scmp.ne.s32.totalorder %s90, %s92
      %p96 = scmp.eq.s32.totalorder %s21, 0
      %p97 = por %p95, %p96
      %p98 = scmp.ne.s32.totalorder %s90, %s92
      %p99 = scmp.eq.s32.totalorder %s26, 1
      %p100 = por %p98, %p99
      %p101 = scmp.ne.s32.totalorder %s92, %s93
      %p102 = scmp.eq.s32.totalorder %s26, 0
      %p103 = por %p101, %p102
      %p104 = scmp.ne.s32.totalorder %s92, %s93
      %p105 = scmp.eq.s32.totalorder %s27, 1
      %p106 = por %p104, %p105
      %p108 = scmp.ne.s32.totalorder %s93, %s107
      %p109 = scmp.eq.s32.totalorder %s27, 0
      %p110 = por %p108, %p109
      %s112 = sadd.s32 %s111, 1
      %p115 = scmp.eq.s32.totalorder %s21, 1
      %p116 = scmp.ne.s32.totalorder %s111, %s113
      %p117 = scmp.eq.s32.totalorder %s21, 0
      %p118 = por %p116, %p117
      %p119 = scmp.ne.s32.totalorder %s111, %s113
      %p120 = scmp.eq.s32.totalorder %s26, 1
      %p121 = por %p119, %p120
      %p122 = scmp.ne.s32.totalorder %s113, %s114
      %p123 = scmp.eq.s32.totalorder %s26, 0
      %p124 = por %p122, %p123
      %p125 = scmp.ne.s32.totalorder %s113, %s114
      %p126 = scmp.eq.s32.totalorder %s27, 1
      %p127 = por %p125, %p126
      %p129 = scmp.ne.s32.totalorder %s114, %s128
      %p130 = scmp.eq.s32.totalorder %s27, 0
      %p131 = por %p129, %p130
      %s133 = sadd.s32 %s132, 1
      %p136 = scmp.eq.s32.totalorder %s21, 1
      %p137 = scmp.ne.s32.totalorder %s132, %s134
      %p138 = scmp.eq.s32.totalorder %s21, 0
      %p139 = por %p137, %p138
      %p140 = scmp.ne.s32.totalorder %s132, %s134
      %p141 = scmp.eq.s32.totalorder %s26, 1
      %p142 = por %p140, %p141
      %p143 = scmp.ne.s32.totalorder %s134, %s135
      %p144 = scmp.eq.s32.totalorder %s26, 0
      %p145 = por %p143, %p144
      %p146 = scmp.ne.s32.totalorder %s134, %s135
      %p147 = scmp.eq.s32.totalorder %s27, 1
      %p148 = por %p146, %p147
      %p150 = scmp.ne.s32.totalorder %s135, %s149
      %p151 = scmp.eq.s32.totalorder %s27, 0
      %p152 = por %p150, %p151
      %s153 = ssub.s32 %s29, %s36
      %p154 = scmp.eq.s32.totalorder %s153, 0
      %s156 = sadd.s32 %s155, 1
      %s157 = scalar_select %p154, %s155, %s156
      %p160 = pneg %p154
      %p161 = scmp.eq.s32.totalorder %s21, 1
      %p162 = por %p160, %p161
      %p163 = scmp.ne.s32.totalorder %s155, %s158
      %p164 = scmp.eq.s32.totalorder %s21, 0
      %p165 = por %p163, %p164
      %p166 = scmp.ne.s32.totalorder %s155, %s158
      %p167 = scmp.eq.s32.totalorder %s26, 1
      %p168 = por %p166, %p167
      %p169 = scmp.ne.s32.totalorder %s158, %s159
      %p170 = scmp.eq.s32.totalorder %s26, 0
      %p171 = por %p169, %p170
      %p172 = scmp.ne.s32.totalorder %s158, %s159
      %p173 = scmp.eq.s32.totalorder %s27, 1
      %p174 = por %p172, %p173
      %p176 = scmp.ne.s32.totalorder %s159, %s175
      %p177 = scmp.eq.s32.totalorder %s27, 0
      %p178 = por %p176, %p177
      %s179 = ssub.s32 %s28, %s40
      %s180 = ssub.s32 %s29, %s36
      %s181 = sor.u32 %s179, %s180
      %p182 = scmp.eq.s32.totalorder %s181, 0
      %s184 = sadd.s32 %s183, 1
      %s185 = scalar_select %p182, %s183, %s184
      %p188 = pneg %p182
      %p189 = scmp.eq.s32.totalorder %s21, 1
      %p190 = por %p188, %p189
      %p191 = scmp.ne.s32.totalorder %s183, %s186
      %p192 = scmp.eq.s32.totalorder %s21, 0
      %p193 = por %p191, %p192
      %p194 = scmp.ne.s32.totalorder %s183, %s186
      %p195 = scmp.eq.s32.totalorder %s26, 1
      %p196 = por %p194, %p195
      %p197 = scmp.ne.s32.totalorder %s186, %s187
      %p198 = scmp.eq.s32.totalorder %s26, 0
      %p199 = por %p197, %p198
      %p200 = scmp.ne.s32.totalorder %s186, %s187
      %p201 = scmp.eq.s32.totalorder %s27, 1
      %p202 = por %p200, %p201
      %p204 = scmp.ne.s32.totalorder %s187, %s203
      %p205 = scmp.eq.s32.totalorder %s27, 0
      %p206 = por %p204, %p205
      %p207 = scmp.le.s32.totalorder 1, %s21
      %p208 = scmp.lt.s32.totalorder %s21, 3
      %p209 = pnand %p207, %p208
      %p210 = pneg %p209
      // Predicated region
      $region9: #{causal_conv2d_subsampling.3} parent=5 // pred_check
        _
      $region10: #{causal_conv2d_subsampling.3} parent=5 // pred_check_branch
        %212 = sbr.rel (%p209) target = $region12
      $region11: #{causal_conv2d_subsampling.3} parent=5 // pred_region
        %s213 = ssub.s32 %s21, 1
        // Predicated region
        $region13: #{causal_conv2d_subsampling.3} parent=11 // pred_check
          %p214 = pneg %p82
        $region14: #{causal_conv2d_subsampling.3} parent=11 // pred_check_branch
          %216 = sbr.rel (%p214) target = $region16
        $region15: #{causal_conv2d_subsampling.3} parent=11 // pred_region
          %s218 = ssub.s32 2304, 2304
          %219 = vsyncadd [#allocation6], %s218
          %s220 = sshll.u32 [#allocation5], 4
          %s221 = int_to_ptr.vmem [resolvable:$true] %s220
          %226 = dma.hbm_to_vmem [thread:$0]  %s1, 2304, %s221, [#allocation6], 64, 64, 4
        $region16: #{causal_conv2d_subsampling.3} parent=11 // pred_fallthru
          _
        // Predicated region
        $region17: #{causal_conv2d_subsampling.3} parent=11 // pred_check
          %p227 = pneg %p103
        $region18: #{causal_conv2d_subsampling.3} parent=11 // pred_check_branch
          %229 = sbr.rel (%p227) target = $region20
        $region19: #{causal_conv2d_subsampling.3} parent=11 // pred_region
          %s231 = ssub.s32 16, 16
          %232 = vsyncadd [#allocation6], %s231
          %s234 = sshll.u32 [#allocation7], 4
          %s235 = int_to_ptr.vmem [resolvable:$true] %s234
          %237 = dma.hbm_to_vmem [thread:$0]  %s2, 16, %s235, [#allocation6]
        $region20: #{causal_conv2d_subsampling.3} parent=11 // pred_fallthru
          _
        // Predicated region
        $region21: #{causal_conv2d_subsampling.3} parent=11 // pred_check
          %p238 = pneg %p124
        $region22: #{causal_conv2d_subsampling.3} parent=11 // pred_check_branch
          %240 = sbr.rel (%p238) target = $region24
        $region23: #{causal_conv2d_subsampling.3} parent=11 // pred_region
          %s242 = ssub.s32 768, 768
          %243 = vsyncadd [#allocation9], %s242
          %s244 = sshll.u32 [#allocation8], 4
          %s245 = int_to_ptr.vmem [resolvable:$true] %s244
          %250 = dma.hbm_to_vmem [thread:$0]  %s3, 768, %s245, [#allocation9], 64, 64, 4
        $region24: #{causal_conv2d_subsampling.3} parent=11 // pred_fallthru
          _
        // Predicated region
        $region25: #{causal_conv2d_subsampling.3} parent=11 // pred_check
          %p251 = pneg %p145
        $region26: #{causal_conv2d_subsampling.3} parent=11 // pred_check_branch
          %253 = sbr.rel (%p251) target = $region28
        $region27: #{causal_conv2d_subsampling.3} parent=11 // pred_region
          %s255 = ssub.s32 16, 16
          %256 = vsyncadd [#allocation9], %s255
          %s258 = sshll.u32 [#allocation10], 4
          %s259 = int_to_ptr.vmem [resolvable:$true] %s258
          %261 = dma.hbm_to_vmem [thread:$0]  %s4, 16, %s259, [#allocation9]
        $region28: #{causal_conv2d_subsampling.3} parent=11 // pred_fallthru
          _
        // Predicated region
        $region29: #{causal_conv2d_subsampling.3} parent=11 // pred_check
          %p262 = pneg %p171
        $region30: #{causal_conv2d_subsampling.3} parent=11 // pred_check_branch
          %264 = sbr.rel (%p262) target = $region32
        $region31: #{causal_conv2d_subsampling.3} parent=11 // pred_region
          %s266 = ssub.s32 128, 128
          %267 = vsyncadd [#allocation12], %s266
          %s268 = smul.addr %s31, 128
          %s269 = scalar_lea.hbm %s5, %s268
          %s271 = sshll.u32 [#allocation11], 4
          %s272 = int_to_ptr.vmem [resolvable:$true] %s271
          %274 = dma.hbm_to_vmem [thread:$0]  %s269, 128, %s272, [#allocation12]
        $region32: #{causal_conv2d_subsampling.3} parent=11 // pred_fallthru
          _
      $region12: #{causal_conv2d_subsampling.3} parent=5 // pred_fallthru
        _
      %p275 = scmp.lt.s32.totalorder %s21, 2
      // Predicated region
      $region33: #{causal_conv2d_subsampling.3} parent=5 // pred_check
        %p276 = pneg %p275
      $region34: #{causal_conv2d_subsampling.3} parent=5 // pred_check_branch
        %278 = sbr.rel (%p276) target = $region36
      $region35: #{causal_conv2d_subsampling.3} parent=5 // pred_region
        // Predicated region
        $region37: #{causal_conv2d_subsampling.3} parent=35 // pred_check
          %p279 = pneg %p55
        $region38: #{causal_conv2d_subsampling.3} parent=35 // pred_check_branch
          %281 = sbr.rel (%p279) target = $region40
        $region39: #{causal_conv2d_subsampling.3} parent=35 // pred_region
          %s282 = sand.u32 %s45, 1
          %s283 = scalar_lea.sflag [#allocation3], %s282
          %s284 = sand.u32 %s45, 1
          %s285 = smul.addr %s284, 36
          %s286 = scalar_lea.vmem [#allocation2], %s285
          %s288 = ssub.s32 576, 576
          %289 = vsyncadd %s283, %s288
          %s290 = smul.addr %s29, 3
          %s291 = smul.addr %s28, 9
          %s292 = sadd.s32 %s290, %s291
          %s293 = smul.addr %s292, 64
          %s294 = scalar_lea.hbm %s0, %s293
          %s295 = sshll.u32 %s286, 4
          %s296 = int_to_ptr.vmem [resolvable:$true] %s295
          %301 = dma.hbm_to_vmem [thread:$0]  %s294, 576, %s296, %s283, 192, 192, 12
        $region40: #{causal_conv2d_subsampling.3} parent=35 // pred_fallthru
          _
      $region36: #{causal_conv2d_subsampling.3} parent=5 // pred_fallthru
        _
      %p302 = scmp.le.s32.totalorder 1, %s21
      %p303 = scmp.lt.s32.totalorder %s21, 3
      %p304 = pnand %p302, %p303
      %p305 = pneg %p304
      // Predicated region
      $region41: #{causal_conv2d_subsampling.3} parent=5 // pred_check
        _
      $region42: #{causal_conv2d_subsampling.3} parent=5 // pred_check_branch
        %307 = sbr.rel (%p304) target = $region44
      $region43: #{causal_conv2d_subsampling.3} parent=5 // pred_region
        %s308 = ssub.s32 %s21, 1
        %s309 = sand.u32 %s48, 1
        %s310 = scalar_lea.sflag [#allocation3], %s309
        %s311 = sand.u32 %s48, 1
        %s312 = smul.addr %s311, 36
        %s313 = scalar_lea.vmem [#allocation2], %s312
        // Predicated region
        $region45: #{causal_conv2d_subsampling.3} parent=43 // pred_check
          %p314 = pneg %p61
        $region46: #{causal_conv2d_subsampling.3} parent=43 // pred_check_branch
          %316 = sbr.rel (%p314) target = $region48
        $region47: #{causal_conv2d_subsampling.3} parent=43 // pred_region
          %317 = dma.done %s310, 576
        $region48: #{causal_conv2d_subsampling.3} parent=43 // pred_fallthru
          _
        // Predicated region
        $region49: #{causal_conv2d_subsampling.3} parent=43 // pred_check
          %p318 = pneg %p82
        $region50: #{causal_conv2d_subsampling.3} parent=43 // pred_check_branch
          %320 = sbr.rel (%p318) target = $region52
        $region51: #{causal_conv2d_subsampling.3} parent=43 // pred_region
          %321 = dma.done [#allocation6], 2304
        $region52: #{causal_conv2d_subsampling.3} parent=43 // pred_fallthru
          _
        // Predicated region
        $region53: #{causal_conv2d_subsampling.3} parent=43 // pred_check
          %p322 = pneg %p103
        $region54: #{causal_conv2d_subsampling.3} parent=43 // pred_check_branch
          %324 = sbr.rel (%p322) target = $region56
        $region55: #{causal_conv2d_subsampling.3} parent=43 // pred_region
          %325 = dma.done [#allocation6], 16
        $region56: #{causal_conv2d_subsampling.3} parent=43 // pred_fallthru
          _
        // Predicated region
        $region57: #{causal_conv2d_subsampling.3} parent=43 // pred_check
          %p326 = pneg %p124
        $region58: #{causal_conv2d_subsampling.3} parent=43 // pred_check_branch
          %328 = sbr.rel (%p326) target = $region60
        $region59: #{causal_conv2d_subsampling.3} parent=43 // pred_region
          %329 = dma.done [#allocation9], 768
        $region60: #{causal_conv2d_subsampling.3} parent=43 // pred_fallthru
          _
        // Predicated region
        $region61: #{causal_conv2d_subsampling.3} parent=43 // pred_check
          %p330 = pneg %p145
        $region62: #{causal_conv2d_subsampling.3} parent=43 // pred_check_branch
          %332 = sbr.rel (%p330) target = $region64
        $region63: #{causal_conv2d_subsampling.3} parent=43 // pred_region
          %333 = dma.done [#allocation9], 16
        $region64: #{causal_conv2d_subsampling.3} parent=43 // pred_fallthru
          _
        // Predicated region
        $region65: #{causal_conv2d_subsampling.3} parent=43 // pred_check
          %p334 = pneg %p171
        $region66: #{causal_conv2d_subsampling.3} parent=43 // pred_check_branch
          %336 = sbr.rel (%p334) target = $region68
        $region67: #{causal_conv2d_subsampling.3} parent=43 // pred_region
          %337 = dma.done [#allocation12], 128
        $region68: #{causal_conv2d_subsampling.3} parent=43 // pred_fallthru
          _
        %s338 = sand.u32 %s48, 1
        %s339 = scalar_lea.sflag [#allocation3], %s338
        %s340 = sand.u32 %s48, 1
        %s341 = smul.addr %s340, 36
        %s342 = scalar_lea.vmem [#allocation2], %s341
        %p343 = pneg %p61
        %p344 = pneg %p58
        %p345 = pneg %p82
        %p346 = pneg %p79
        %p347 = pneg %p103
        %p348 = pneg %p100
        %p349 = pneg %p124
        %p350 = pneg %p121
        %p351 = pneg %p145
        %p352 = pneg %p142
        %p353 = pneg %p171
        %p354 = pneg %p168
        %p355 = pneg %p199
        %p356 = pneg %p196
        %s357 = sand.u32 %s186, 1
        %s358 = scalar_lea.sflag [#allocation4], %s357
        %s359 = sand.u32 %s186, 1
        %s360 = smul.addr %s359, 8
        %s361 = scalar_lea.vmem [#allocation13], %s360
        %s362 = smul.u32 2, %s31
        %s363 = ssub.s32 1, %s362
        %s364 = smul.u32 64, %s363
        %v366 = vld [vmem:[#allocation5] sm:$0xf]
        %v367 = vld [vmem:[#allocation5 + $0x4] sm:$0xf]
        %v368 = vld [vmem:[#allocation5 + $0x8] sm:$0xf]
        %v369 = vld [vmem:[#allocation5 + $0xc] sm:$0xf]
        %v370 = vld [vmem:[#allocation5 + $0x10] sm:$0xf]
        %v371 = vld [vmem:[#allocation5 + $0x14] sm:$0xf]
        %v372 = vld [vmem:[#allocation5 + $0x18] sm:$0xf]
        %v373 = vld [vmem:[#allocation5 + $0x1c] sm:$0xf]
        %v374 = vld [vmem:[#allocation5 + $0x20] sm:$0xf]
        %v375 = vld [vmem:[#allocation5 + $0x24] sm:$0xf]
        %v376 = vld [vmem:[#allocation5 + $0x28] sm:$0xf]
        %v377 = vld [vmem:[#allocation5 + $0x2c] sm:$0xf]
        %v378 = vld [vmem:[#allocation5 + $0x30] sm:$0xf]
        %v379 = vld [vmem:[#allocation5 + $0x34] sm:$0xf]
        %v380 = vld [vmem:[#allocation5 + $0x38] sm:$0xf]
        %v381 = vld [vmem:[#allocation5 + $0x3c] sm:$0xf]
        %v382 = vld [vmem:[#allocation5 + $0x40] sm:$0xf]
        %v383 = vld [vmem:[#allocation5 + $0x44] sm:$0xf]
        %v384 = vld [vmem:[#allocation5 + $0x48] sm:$0xf]
        %v385 = vld [vmem:[#allocation5 + $0x4c] sm:$0xf]
        %v386 = vld [vmem:[#allocation5 + $0x50] sm:$0xf]
        %v387 = vld [vmem:[#allocation5 + $0x54] sm:$0xf]
        %v388 = vld [vmem:[#allocation5 + $0x58] sm:$0xf]
        %v389 = vld [vmem:[#allocation5 + $0x5c] sm:$0xf]
        %v390 = vld [vmem:[#allocation5 + $0x60] sm:$0xf]
        %v391 = vld [vmem:[#allocation5 + $0x64] sm:$0xf]
        %v392 = vld [vmem:[#allocation5 + $0x68] sm:$0xf]
        %v393 = vld [vmem:[#allocation5 + $0x6c] sm:$0xf]
        %v394 = vld [vmem:[#allocation5 + $0x70] sm:$0xf]
        %v395 = vld [vmem:[#allocation5 + $0x74] sm:$0xf]
        %v396 = vld [vmem:[#allocation5 + $0x78] sm:$0xf]
        %v397 = vld [vmem:[#allocation5 + $0x7c] sm:$0xf]
        %v398 = vld [vmem:[#allocation5 + $0x80] sm:$0xf]
        %v399 = vld [vmem:[#allocation5 + $0x84] sm:$0xf]
        %v400 = vld [vmem:[#allocation5 + $0x88] sm:$0xf]
        %v401 = vld [vmem:[#allocation5 + $0x8c] sm:$0xf]
        %v402 = vld [vmem:[#allocation7] sm:$0x1]
        %v403 = vld [vmem:[%s313] sm:$0xff]
        %v404 = vld [vmem:[%s313 + $0x8] sm:$0xf]
        %v406 = vlaneseq
        %v407 = vshrl.u32 %v406, 7
        %v408 = vsub.s32 0, %v407
        %v409 = vrot.slane %v402, %v408
        %v413 = vunpack.c.l.b16 %v403
        %v414 = vunpack.c.h.b16 %v403
        %v415 = vunpack.c.l.b16 %v404
        %v416 = vpack.c.b16 %v413, %v413
        %v417 = vpack.c.b16 %v414, %v414
        %v418 = vpack.c.b16 %v415, %v415
        %v457 = vunpack.c.l.b16 %v366
        %v458 = vunpack.c.l.b16 %v367
        %v459 = vunpack.c.l.b16 %v368
        %v460 = vunpack.c.l.b16 %v369
        %v461 = vunpack.c.l.b16 %v370
        %v462 = vunpack.c.l.b16 %v371
        %v463 = vunpack.c.l.b16 %v372
        %v464 = vunpack.c.l.b16 %v373
        %v465 = vunpack.c.l.b16 %v374
        %v466 = vunpack.c.l.b16 %v375
        %v467 = vunpack.c.l.b16 %v376
        %v468 = vunpack.c.l.b16 %v377
        %v469 = vunpack.c.l.b16 %v378
        %v470 = vunpack.c.l.b16 %v379
        %v471 = vunpack.c.l.b16 %v380
        %v472 = vunpack.c.l.b16 %v381
        %v473 = vunpack.c.l.b16 %v382
        %v474 = vunpack.c.l.b16 %v383
        %v475 = vunpack.c.l.b16 %v384
        %v476 = vunpack.c.l.b16 %v385
        %v477 = vunpack.c.l.b16 %v386
        %v478 = vunpack.c.l.b16 %v387
        %v479 = vunpack.c.l.b16 %v388
        %v480 = vunpack.c.l.b16 %v389
        %v481 = vunpack.c.l.b16 %v390
        %v482 = vunpack.c.l.b16 %v391
        %v483 = vunpack.c.l.b16 %v392
        %v484 = vunpack.c.l.b16 %v393
        %v485 = vunpack.c.l.b16 %v394
        %v486 = vunpack.c.l.b16 %v395
        %v487 = vunpack.c.l.b16 %v396
        %v488 = vunpack.c.l.b16 %v397
        %v489 = vunpack.c.l.b16 %v398
        %v490 = vunpack.c.l.b16 %v399
        %v491 = vunpack.c.l.b16 %v400
        %v492 = vunpack.c.l.b16 %v401
        %v493 = vpack.c.b16 %v458, %v457
        %v494 = vpack.c.b16 %v460, %v459
        %v495 = vpack.c.b16 %v462, %v461
        %v496 = vpack.c.b16 %v464, %v463
        %v497 = vpack.c.b16 %v466, %v465
        %v498 = vpack.c.b16 %v468, %v467
        %v499 = vpack.c.b16 %v470, %v469
        %v500 = vpack.c.b16 %v472, %v471
        %v501 = vpack.c.b16 %v474, %v473
        %v502 = vpack.c.b16 %v476, %v475
        %v503 = vpack.c.b16 %v478, %v477
        %v504 = vpack.c.b16 %v480, %v479
        %v505 = vpack.c.b16 %v482, %v481
        %v506 = vpack.c.b16 %v484, %v483
        %v507 = vpack.c.b16 %v486, %v485
        %v508 = vpack.c.b16 %v488, %v487
        %v509 = vpack.c.b16 %v490, %v489
        %v510 = vpack.c.b16 %v492, %v491
        %vm529 = vcmask 261120
        %v531 = vsel %vm529, %v418, 0
        %533 = vmatprep.subr.bf16.mxu0 0
        %534 = vmatpush1.bf16.msra.mxu0 %v493
        %535 = vmatprep.subr.bf16.mxu0 0
        %536 = vmatpush1.bf16.msra.mxu0 %v494
        %537 = vmatprep.subr.bf16.mxu0 0
        %538 = vmatpush1.bf16.msra.mxu0 %v495
        %539 = vmatprep.subr.bf16.mxu0 0
        %540 = vmatpush1.bf16.msra.mxu0 %v496
        %541 = vmatprep.subr.bf16.mxu0 0
        %542 = vmatpush1.bf16.msra.mxu0 %v497
        %543 = vmatprep.subr.bf16.mxu0 0
        %544 = vmatpush1.bf16.msra.mxu0 %v498
        %545 = vmatprep.subr.bf16.mxu0 0
        %546 = vmatpush1.bf16.msra.mxu0 %v499
        %547 = vmatprep.subr.bf16.mxu0 0
        %548 = vmatpush1.bf16.msra.mxu0 %v500
        %549 = vmatprep.subr.bf16.mxu0 0
        %550 = vmatpush1.bf16.msra.mxu0 %v501
        %551 = vmatprep.subr.bf16.mxu0 0
        %552 = vmatpush1.bf16.msra.mxu0 %v502
        %553 = vmatprep.subr.bf16.mxu0 0
        %554 = vmatpush1.bf16.msra.mxu0 %v503
        %555 = vmatprep.subr.bf16.mxu0 0
        %556 = vmatpush1.bf16.msra.mxu0 %v504
        %557 = vmatprep.subr.bf16.mxu0 0
        %558 = vmatpush1.bf16.msra.mxu0 %v505
        %559 = vmatprep.subr.bf16.mxu0 0
        %560 = vmatpush1.bf16.msra.mxu0 %v506
        %561 = vmatprep.subr.bf16.mxu0 0
        %562 = vmatpush1.bf16.msra.mxu0 %v507
        %563 = vmatprep.subr.bf16.mxu0 0
        %564 = vmatpush1.bf16.msra.mxu0 %v508
        %565 = vmatprep.mubr.bf16.mxu0 %v417
        %566 = vmatmul.mubr.bf16.gmra.mrb[0].mxu0 %v416
        %v567 = vpop.f32.mrb[0].mxu0
        %v568 = vadd.f32 %v409, %v567
        %v569 = vpop.f32.mrb[0].mxu0
        %v570 = vpop.f32.mrb[0].mxu0
        %v571 = vpop.f32.mrb[0].mxu0
        %572 = vdwg.mxu0
        %573 = vmatprep.subr.bf16.mxu0 0
        %574 = vmatpush1.bf16.msra.mxu0 %v509
        %575 = vmatprep.subr.bf16.mxu0 0
        %576 = vmatpush1.bf16.msra.mxu0 %v510
        %577 = vmatprep.subr.bf16.mxu0 0
        %578 = vmatpush1.bf16.msra.mxu0 0
        %579 = vmatprep.subr.bf16.mxu0 0
        %580 = vmatpush1.bf16.msra.mxu0 0
        %581 = vmatprep.subr.bf16.mxu0 0
        %582 = vmatpush1.bf16.msra.mxu0 0
        %583 = vmatprep.subr.bf16.mxu0 0
        %584 = vmatpush1.bf16.msra.mxu0 0
        %585 = vmatprep.subr.bf16.mxu0 0
        %586 = vmatpush1.bf16.msra.mxu0 0
        %587 = vmatprep.subr.bf16.mxu0 0
        %588 = vmatpush1.bf16.msra.mxu0 0
        %589 = vmatprep.subr.bf16.mxu0 0
        %590 = vmatpush1.bf16.msra.mxu0 0
        %591 = vmatprep.subr.bf16.mxu0 0
        %592 = vmatpush1.bf16.msra.mxu0 0
        %593 = vmatprep.subr.bf16.mxu0 0
        %594 = vmatpush1.bf16.msra.mxu0 0
        %595 = vmatprep.subr.bf16.mxu0 0
        %596 = vmatpush1.bf16.msra.mxu0 0
        %597 = vmatprep.subr.bf16.mxu0 0
        %598 = vmatpush1.bf16.msra.mxu0 0
        %599 = vmatprep.subr.bf16.mxu0 0
        %600 = vmatpush1.bf16.msra.mxu0 0
        %601 = vmatprep.subr.bf16.mxu0 0
        %602 = vmatpush1.bf16.msra.mxu0 0
        %603 = vmatprep.subr.bf16.mxu0 0
        %604 = vmatpush1.bf16.msra.mxu0 0
        %605 = vmatprep.mubr.bf16.mxu0 0
        %606 = vmatmul.mubr.bf16.gmra.mrb[0].mxu0 %v531
        %v607 = vpop.f32.mrb[0].mxu0
        %v608 = vadd.f32 %v568, %v607
        %v609 = vpop.f32.mrb[0].mxu0
        %v610 = vpop.f32.mrb[0].mxu0
        %v611 = vpop.f32.mrb[0].mxu0
        %612 = vdwg.mxu0
        %v613 = vmax.f32 %v608, 0.0
        %v614 = vpack.c.bf16 %v613, %v613
        %v615 = vld [vmem:[#allocation8] sm:$0xf]
        %v616 = vld [vmem:[#allocation8 + $0x4] sm:$0xf]
        %v617 = vld [vmem:[#allocation8 + $0x8] sm:$0xf]
        %v618 = vld [vmem:[#allocation8 + $0xc] sm:$0xf]
        %s619 = scalar_lea.vmem %s313, 12 [#allocation2]
        %v620 = vld [vmem:[%s619] sm:$0xff]
        %v621 = vld [vmem:[%s619 + $0x8] sm:$0xf]
        %v624 = vunpack.c.l.b16 %v620
        %v625 = vunpack.c.h.b16 %v620
        %v626 = vunpack.c.l.b16 %v621
        %v627 = vpack.c.b16 %v624, %v624
        %v628 = vpack.c.b16 %v625, %v625
        %v629 = vpack.c.b16 %v626, %v626
        %v633 = vsel %vm529, %v629, 0
        %635 = vmatprep.subr.bf16.mxu0 0
        %636 = vmatpush1.bf16.msra.mxu0 %v493
        %637 = vmatprep.subr.bf16.mxu0 0
        %638 = vmatpush1.bf16.msra.mxu0 %v494
        %639 = vmatprep.subr.bf16.mxu0 0
        %640 = vmatpush1.bf16.msra.mxu0 %v495
        %641 = vmatprep.subr.bf16.mxu0 0
        %642 = vmatpush1.bf16.msra.mxu0 %v496
        %643 = vmatprep.subr.bf16.mxu0 0
        %644 = vmatpush1.bf16.msra.mxu0 %v497
        %645 = vmatprep.subr.bf16.mxu0 0
        %646 = vmatpush1.bf16.msra.mxu0 %v498
        %647 = vmatprep.subr.bf16.mxu0 0
        %648 = vmatpush1.bf16.msra.mxu0 %v499
        %649 = vmatprep.subr.bf16.mxu0 0
        %650 = vmatpush1.bf16.msra.mxu0 %v500
        %651 = vmatprep.subr.bf16.mxu0 0
        %652 = vmatpush1.bf16.msra.mxu0 %v501
        %653 = vmatprep.subr.bf16.mxu0 0
        %654 = vmatpush1.bf16.msra.mxu0 %v502
        %655 = vmatprep.subr.bf16.mxu0 0
        %656 = vmatpush1.bf16.msra.mxu0 %v503
        %657 = vmatprep.subr.bf16.mxu0 0
        %658 = vmatpush1.bf16.msra.mxu0 %v504
        %659 = vmatprep.subr.bf16.mxu0 0
        %660 = vmatpush1.bf16.msra.mxu0 %v505
        %661 = vmatprep.subr.bf16.mxu0 0
        %662 = vmatpush1.bf16.msra.mxu0 %v506
        %663 = vmatprep.subr.bf16.mxu0 0
        %664 = vmatpush1.bf16.msra.mxu0 %v507
        %665 = vmatprep.subr.bf16.mxu0 0
        %666 = vmatpush1.bf16.msra.mxu0 %v508
        %667 = vmatprep.mubr.bf16.mxu0 %v628
        %668 = vmatmul.mubr.bf16.gmra.mrb[0].mxu0 %v627
        %v669 = vpop.f32.mrb[0].mxu0
        %v670 = vadd.f32 %v409, %v669
        %v671 = vpop.f32.mrb[0].mxu0
        %v672 = vpop.f32.mrb[0].mxu0
        %v673 = vpop.f32.mrb[0].mxu0
        %674 = vdwg.mxu0
        %675 = vmatprep.subr.bf16.mxu0 0
        %676 = vmatpush1.bf16.msra.mxu0 %v509
        %677 = vmatprep.subr.bf16.mxu0 0
        %678 = vmatpush1.bf16.msra.mxu0 %v510
        %679 = vmatprep.subr.bf16.mxu0 0
        %680 = vmatpush1.bf16.msra.mxu0 0
        %681 = vmatprep.subr.bf16.mxu0 0
        %682 = vmatpush1.bf16.msra.mxu0 0
        %683 = vmatprep.subr.bf16.mxu0 0
        %684 = vmatpush1.bf16.msra.mxu0 0
        %685 = vmatprep.subr.bf16.mxu0 0
        %686 = vmatpush1.bf16.msra.mxu0 0
        %687 = vmatprep.subr.bf16.mxu0 0
        %688 = vmatpush1.bf16.msra.mxu0 0
        %689 = vmatprep.subr.bf16.mxu0 0
        %690 = vmatpush1.bf16.msra.mxu0 0
        %691 = vmatprep.subr.bf16.mxu0 0
        %692 = vmatpush1.bf16.msra.mxu0 0
        %693 = vmatprep.subr.bf16.mxu0 0
        %694 = vmatpush1.bf16.msra.mxu0 0
        %695 = vmatprep.subr.bf16.mxu0 0
        %696 = vmatpush1.bf16.msra.mxu0 0
        %697 = vmatprep.subr.bf16.mxu0 0
        %698 = vmatpush1.bf16.msra.mxu0 0
        %699 = vmatprep.subr.bf16.mxu0 0
        %700 = vmatpush1.bf16.msra.mxu0 0
        %701 = vmatprep.subr.bf16.mxu0 0
        %702 = vmatpush1.bf16.msra.mxu0 0
        %703 = vmatprep.subr.bf16.mxu0 0
        %704 = vmatpush1.bf16.msra.mxu0 0
        %705 = vmatprep.subr.bf16.mxu0 0
        %706 = vmatpush1.bf16.msra.mxu0 0
        %707 = vmatprep.mubr.bf16.mxu0 0
        %708 = vmatmul.mubr.bf16.gmra.mrb[0].mxu0 %v633
        %v709 = vpop.f32.mrb[0].mxu0
        %v710 = vadd.f32 %v670, %v709
        %v711 = vpop.f32.mrb[0].mxu0
        %v712 = vpop.f32.mrb[0].mxu0
        %v713 = vpop.f32.mrb[0].mxu0
        %714 = vdwg.mxu0
        %v715 = vmax.f32 %v710, 0.0
        %v716 = vpack.c.bf16 %v715, %v715
        %s717 = scalar_lea.vmem [#allocation8], 16
        %v718 = vld [vmem:[%s717] sm:$0xf]
        %v719 = vld [vmem:[%s717 + $0x4] sm:$0xf]
        %v720 = vld [vmem:[%s717 + $0x8] sm:$0xf]
        %v721 = vld [vmem:[%s717 + $0xc] sm:$0xf]
        %v726 = vunpack.c.l.b16 %v718
        %v727 = vunpack.c.l.b16 %v719
        %v728 = vunpack.c.l.b16 %v720
        %v729 = vunpack.c.l.b16 %v721
        %v730 = vpack.c.b16 %v727, %v726
        %v731 = vpack.c.b16 %v729, %v728
        %v735 = vsel %vm529, %v716, 0
        %737 = vmatprep.subr.bf16.mxu0 0
        %738 = vmatpush1.bf16.msra.mxu0 %v730
        %739 = vmatprep.subr.bf16.mxu0 0
        %740 = vmatpush1.bf16.msra.mxu0 %v731
        %741 = vmatprep.subr.bf16.mxu0 0
        %742 = vmatpush1.bf16.msra.mxu0 0
        %743 = vmatprep.subr.bf16.mxu0 0
        %744 = vmatpush1.bf16.msra.mxu0 0
        %745 = vmatprep.subr.bf16.mxu0 0
        %746 = vmatpush1.bf16.msra.mxu0 0
        %747 = vmatprep.subr.bf16.mxu0 0
        %748 = vmatpush1.bf16.msra.mxu0 0
        %749 = vmatprep.subr.bf16.mxu0 0
        %750 = vmatpush1.bf16.msra.mxu0 0
        %751 = vmatprep.subr.bf16.mxu0 0
        %752 = vmatpush1.bf16.msra.mxu0 0
        %753 = vmatprep.subr.bf16.mxu0 0
        %754 = vmatpush1.bf16.msra.mxu0 0
        %755 = vmatprep.subr.bf16.mxu0 0
        %756 = vmatpush1.bf16.msra.mxu0 0
        %757 = vmatprep.subr.bf16.mxu0 0
        %758 = vmatpush1.bf16.msra.mxu0 0
        %759 = vmatprep.subr.bf16.mxu0 0
        %760 = vmatpush1.bf16.msra.mxu0 0
        %761 = vmatprep.subr.bf16.mxu0 0
        %762 = vmatpush1.bf16.msra.mxu0 0
        %763 = vmatprep.subr.bf16.mxu0 0
        %764 = vmatpush1.bf16.msra.mxu0 0
        %765 = vmatprep.subr.bf16.mxu0 0
        %766 = vmatpush1.bf16.msra.mxu0 0
        %767 = vmatprep.subr.bf16.mxu0 0
        %768 = vmatpush1.bf16.msra.mxu0 0
        %769 = vmatprep.mubr.bf16.mxu0 0
        %770 = vmatmul.mubr.bf16.gmra.mrb[0].mxu0 %v735
        %v771 = vpop.f32.mrb[0].mxu0
        %v772 = vadd.f32 0.0, %v771
        %v773 = vpop.f32.mrb[0].mxu0
        %v774 = vpop.f32.mrb[0].mxu0
        %v775 = vpop.f32.mrb[0].mxu0
        %776 = vdwg.mxu0
        %v781 = vunpack.c.l.b16 %v615
        %v782 = vunpack.c.l.b16 %v616
        %v783 = vunpack.c.l.b16 %v617
        %v784 = vunpack.c.l.b16 %v618
        %v785 = vpack.c.b16 %v782, %v781
        %v786 = vpack.c.b16 %v784, %v783
        %v790 = vsel %vm529, %v614, 0
        %792 = vmatprep.subr.bf16.mxu0 0
        %793 = vmatpush1.bf16.msra.mxu0 %v785
        %794 = vmatprep.subr.bf16.mxu0 0
        %795 = vmatpush1.bf16.msra.mxu0 %v786
        %796 = vmatprep.subr.bf16.mxu0 0
        %797 = vmatpush1.bf16.msra.mxu0 0
        %798 = vmatprep.subr.bf16.mxu0 0
        %799 = vmatpush1.bf16.msra.mxu0 0
        %800 = vmatprep.subr.bf16.mxu0 0
        %801 = vmatpush1.bf16.msra.mxu0 0
        %802 = vmatprep.subr.bf16.mxu0 0
        %803 = vmatpush1.bf16.msra.mxu0 0
        %804 = vmatprep.subr.bf16.mxu0 0
        %805 = vmatpush1.bf16.msra.mxu0 0
        %806 = vmatprep.subr.bf16.mxu0 0
        %807 = vmatpush1.bf16.msra.mxu0 0
        %808 = vmatprep.subr.bf16.mxu0 0
        %809 = vmatpush1.bf16.msra.mxu0 0
        %810 = vmatprep.subr.bf16.mxu0 0
        %811 = vmatpush1.bf16.msra.mxu0 0
        %812 = vmatprep.subr.bf16.mxu0 0
        %813 = vmatpush1.bf16.msra.mxu0 0
        %814 = vmatprep.subr.bf16.mxu0 0
        %815 = vmatpush1.bf16.msra.mxu0 0
        %816 = vmatprep.subr.bf16.mxu0 0
        %817 = vmatpush1.bf16.msra.mxu0 0
        %818 = vmatprep.subr.bf16.mxu0 0
        %819 = vmatpush1.bf16.msra.mxu0 0
        %820 = vmatprep.subr.bf16.mxu0 0
        %821 = vmatpush1.bf16.msra.mxu0 0
        %822 = vmatprep.subr.bf16.mxu0 0
        %823 = vmatpush1.bf16.msra.mxu0 0
        %824 = vmatprep.mubr.bf16.mxu0 0
        %825 = vmatmul.mubr.bf16.gmra.mrb[0].mxu0 %v790
        %v826 = vpop.f32.mrb[0].mxu0
        %v827 = vadd.f32 %v772, %v826
        %v828 = vpop.f32.mrb[0].mxu0
        %v829 = vpop.f32.mrb[0].mxu0
        %v830 = vpop.f32.mrb[0].mxu0
        %831 = vdwg.mxu0
        %s832 = scalar_lea.vmem %s313, 24 [#allocation2]
        %v833 = vld [vmem:[%s832] sm:$0xff]
        %v834 = vld [vmem:[%s832 + $0x8] sm:$0xf]
        %v837 = vunpack.c.l.b16 %v833
        %v838 = vunpack.c.h.b16 %v833
        %v839 = vunpack.c.l.b16 %v834
        %v840 = vpack.c.b16 %v837, %v837
        %v841 = vpack.c.b16 %v838, %v838
        %v842 = vpack.c.b16 %v839, %v839
        %v846 = vsel %vm529, %v842, 0
        %848 = vmatprep.subr.bf16.mxu0 0
        %849 = vmatpush1.bf16.msra.mxu0 %v493
        %850 = vmatprep.subr.bf16.mxu0 0
        %851 = vmatpush1.bf16.msra.mxu0 %v494
        %852 = vmatprep.subr.bf16.mxu0 0
        %853 = vmatpush1.bf16.msra.mxu0 %v495
        %854 = vmatprep.subr.bf16.mxu0 0
        %855 = vmatpush1.bf16.msra.mxu0 %v496
        %856 = vmatprep.subr.bf16.mxu0 0
        %857 = vmatpush1.bf16.msra.mxu0 %v497
        %858 = vmatprep.subr.bf16.mxu0 0
        %859 = vmatpush1.bf16.msra.mxu0 %v498
        %860 = vmatprep.subr.bf16.mxu0 0
        %861 = vmatpush1.bf16.msra.mxu0 %v499
        %862 = vmatprep.subr.bf16.mxu0 0
        %863 = vmatpush1.bf16.msra.mxu0 %v500
        %864 = vmatprep.subr.bf16.mxu0 0
        %865 = vmatpush1.bf16.msra.mxu0 %v501
        %866 = vmatprep.subr.bf16.mxu0 0
        %867 = vmatpush1.bf16.msra.mxu0 %v502
        %868 = vmatprep.subr.bf16.mxu0 0
        %869 = vmatpush1.bf16.msra.mxu0 %v503
        %870 = vmatprep.subr.bf16.mxu0 0
        %871 = vmatpush1.bf16.msra.mxu0 %v504
        %872 = vmatprep.subr.bf16.mxu0 0
        %873 = vmatpush1.bf16.msra.mxu0 %v505
        %874 = vmatprep.subr.bf16.mxu0 0
        %875 = vmatpush1.bf16.msra.mxu0 %v506
        %876 = vmatprep.subr.bf16.mxu0 0
        %877 = vmatpush1.bf16.msra.mxu0 %v507
        %878 = vmatprep.subr.bf16.mxu0 0
        %879 = vmatpush1.bf16.msra.mxu0 %v508
        %880 = vmatprep.mubr.bf16.mxu0 %v841
        %881 = vmatmul.mubr.bf16.gmra.mrb[0].mxu0 %v840
        %v882 = vpop.f32.mrb[0].mxu0
        %v883 = vadd.f32 %v409, %v882
        %v884 = vpop.f32.mrb[0].mxu0
        %v885 = vpop.f32.mrb[0].mxu0
        %v886 = vpop.f32.mrb[0].mxu0
        %887 = vdwg.mxu0
        %888 = vmatprep.subr.bf16.mxu0 0
        %889 = vmatpush1.bf16.msra.mxu0 %v509
        %890 = vmatprep.subr.bf16.mxu0 0
        %891 = vmatpush1.bf16.msra.mxu0 %v510
        %892 = vmatprep.subr.bf16.mxu0 0
        %893 = vmatpush1.bf16.msra.mxu0 0
        %894 = vmatprep.subr.bf16.mxu0 0
        %895 = vmatpush1.bf16.msra.mxu0 0
        %896 = vmatprep.subr.bf16.mxu0 0
        %897 = vmatpush1.bf16.msra.mxu0 0
        %898 = vmatprep.subr.bf16.mxu0 0
        %899 = vmatpush1.bf16.msra.mxu0 0
        %900 = vmatprep.subr.bf16.mxu0 0
        %901 = vmatpush1.bf16.msra.mxu0 0
        %902 = vmatprep.subr.bf16.mxu0 0
        %903 = vmatpush1.bf16.msra.mxu0 0
        %904 = vmatprep.subr.bf16.mxu0 0
        %905 = vmatpush1.bf16.msra.mxu0 0
        %906 = vmatprep.subr.bf16.mxu0 0
        %907 = vmatpush1.bf16.msra.mxu0 0
        %908 = vmatprep.subr.bf16.mxu0 0
        %909 = vmatpush1.bf16.msra.mxu0 0
        %910 = vmatprep.subr.bf16.mxu0 0
        %911 = vmatpush1.bf16.msra.mxu0 0
        %912 = vmatprep.subr.bf16.mxu0 0
        %913 = vmatpush1.bf16.msra.mxu0 0
        %914 = vmatprep.subr.bf16.mxu0 0
        %915 = vmatpush1.bf16.msra.mxu0 0
        %916 = vmatprep.subr.bf16.mxu0 0
        %917 = vmatpush1.bf16.msra.mxu0 0
        %918 = vmatprep.subr.bf16.mxu0 0
        %919 = vmatpush1.bf16.msra.mxu0 0
        %920 = vmatprep.mubr.bf16.mxu0 0
        %921 = vmatmul.mubr.bf16.gmra.mrb[0].mxu0 %v846
        %v922 = vpop.f32.mrb[0].mxu0
        %v923 = vadd.f32 %v883, %v922
        %v924 = vpop.f32.mrb[0].mxu0
        %v925 = vpop.f32.mrb[0].mxu0
        %v926 = vpop.f32.mrb[0].mxu0
        %927 = vdwg.mxu0
        %v928 = vmax.f32 %v923, 0.0
        %v929 = vpack.c.bf16 %v928, %v928
        %s930 = scalar_lea.vmem [#allocation8], 32
        %v931 = vld [vmem:[%s930] sm:$0xf]
        %v932 = vld [vmem:[%s930 + $0x4] sm:$0xf]
        %v933 = vld [vmem:[%s930 + $0x8] sm:$0xf]
        %v934 = vld [vmem:[%s930 + $0xc] sm:$0xf]
        %v939 = vunpack.c.l.b16 %v931
        %v940 = vunpack.c.l.b16 %v932
        %v941 = vunpack.c.l.b16 %v933
        %v942 = vunpack.c.l.b16 %v934
        %v943 = vpack.c.b16 %v940, %v939
        %v944 = vpack.c.b16 %v942, %v941
        %v948 = vsel %vm529, %v929, 0
        %950 = vmatprep.subr.bf16.mxu0 0
        %951 = vmatpush1.bf16.msra.mxu0 %v943
        %952 = vmatprep.subr.bf16.mxu0 0
        %953 = vmatpush1.bf16.msra.mxu0 %v944
        %954 = vmatprep.subr.bf16.mxu0 0
        %955 = vmatpush1.bf16.msra.mxu0 0
        %956 = vmatprep.subr.bf16.mxu0 0
        %957 = vmatpush1.bf16.msra.mxu0 0
        %958 = vmatprep.subr.bf16.mxu0 0
        %959 = vmatpush1.bf16.msra.mxu0 0
        %960 = vmatprep.subr.bf16.mxu0 0
        %961 = vmatpush1.bf16.msra.mxu0 0
        %962 = vmatprep.subr.bf16.mxu0 0
        %963 = vmatpush1.bf16.msra.mxu0 0
        %964 = vmatprep.subr.bf16.mxu0 0
        %965 = vmatpush1.bf16.msra.mxu0 0
        %966 = vmatprep.subr.bf16.mxu0 0
        %967 = vmatpush1.bf16.msra.mxu0 0
        %968 = vmatprep.subr.bf16.mxu0 0
        %969 = vmatpush1.bf16.msra.mxu0 0
        %970 = vmatprep.subr.bf16.mxu0 0
        %971 = vmatpush1.bf16.msra.mxu0 0
        %972 = vmatprep.subr.bf16.mxu0 0
        %973 = vmatpush1.bf16.msra.mxu0 0
        %974 = vmatprep.subr.bf16.mxu0 0
        %975 = vmatpush1.bf16.msra.mxu0 0
        %976 = vmatprep.subr.bf16.mxu0 0
        %977 = vmatpush1.bf16.msra.mxu0 0
        %978 = vmatprep.subr.bf16.mxu0 0
        %979 = vmatpush1.bf16.msra.mxu0 0
        %980 = vmatprep.subr.bf16.mxu0 0
        %981 = vmatpush1.bf16.msra.mxu0 0
        %982 = vmatprep.mubr.bf16.mxu0 0
        %983 = vmatmul.mubr.bf16.gmra.mrb[0].mxu0 %v948
        %v984 = vpop.f32.mrb[0].mxu0
        %v985 = vadd.f32 0.0, %v984
        %v986 = vpop.f32.mrb[0].mxu0
        %v987 = vpop.f32.mrb[0].mxu0
        %v988 = vpop.f32.mrb[0].mxu0
        %989 = vdwg.mxu0
        %v990 = vadd.f32 %v827, %v985
        %v991 = vld [vmem:[#allocation10] sm:$0x1]
        %v993 = vlaneseq
        %v994 = vshrl.u32 %v993, 7
        %v995 = vsub.s32 0, %v994
        %v996 = vrot.slane %v991, %v995
        %v998 = vadd.f32 %v990, %v996
        %v999 = vmul.f32 %v998, 5.656854
        %v1000 = vld [vmem:[#allocation11] sm:$0xff]
        %v1001 = vadd.f32 %v999, %v1000
        %1002 = vst.msk [vmem:[%s361] sm:$0xff] %vm529, %v1001
        %s1003 = sand.u32 %s186, 1
        %s1004 = scalar_lea.sflag [#allocation4], %s1003
        %s1005 = sand.u32 %s186, 1
        %s1006 = smul.addr %s1005, 8
        %s1007 = scalar_lea.vmem [#allocation13], %s1006
        // Predicated region
        $region69: #{causal_conv2d_subsampling.3} parent=43 // pred_check
          %p1008 = pneg %p196
        $region70: #{causal_conv2d_subsampling.3} parent=43 // pred_check_branch
          %1010 = sbr.rel (%p1008) target = $region72
        $region71: #{causal_conv2d_subsampling.3} parent=43 // pred_region
          %s1011 = smul.u32 2, %s31
          %s1012 = ssub.s32 1, %s1011
          %s1013 = smul.u32 64, %s1012
          %s1015 = ssub.s32 128, %s1013
          %1016 = vsyncadd %s1004, %s1015
          %p1017 = scmp.ne.s32.totalorder 0, %s1013
          %s1018 = sadd.s32 %s1011, %s30
          %s1019 = smul.addr %s1018, 64
          %s1020 = scalar_lea.hbm %s6, %s1019
          %s1021 = smul.u32 4, %s1012
          %s1022 = sshll.u32 %s1007, 4
          %s1023 = int_to_ptr.vmem [resolvable:$true] %s1022
          %s1024 = sshll.u32 %s1021, 4
          %1028 = dma.vmem_to_hbm [thread:$0]  (%p1017), %s1023, %s1024, %s1020, %s1004, 64, 64, 4
        $region72: #{causal_conv2d_subsampling.3} parent=43 // pred_fallthru
          _
      $region44: #{causal_conv2d_subsampling.3} parent=5 // pred_fallthru
        _
      %p1029 = scmp.le.s32.totalorder 2, %s21
      // Predicated region
      $region73: #{causal_conv2d_subsampling.3} parent=5 // pred_check
        %p1030 = pneg %p1029
      $region74: #{causal_conv2d_subsampling.3} parent=5 // pred_check_branch
        %1032 = sbr.rel (%p1030) target = $region76
      $region75: #{causal_conv2d_subsampling.3} parent=5 // pred_region
        %s1033 = ssub.s32 %s21, 2
        // Predicated region
        $region77: #{causal_conv2d_subsampling.3} parent=75 // pred_check
          %p1034 = pneg %p202
        $region78: #{causal_conv2d_subsampling.3} parent=75 // pred_check_branch
          %1036 = sbr.rel (%p1034) target = $region80
        $region79: #{causal_conv2d_subsampling.3} parent=75 // pred_region
          %s1037 = sand.u32 %s187, 1
          %s1038 = scalar_lea.sflag [#allocation4], %s1037
          %s1039 = sand.u32 %s187, 1
          %s1040 = smul.addr %s1039, 8
          %s1041 = scalar_lea.vmem [#allocation13], %s1040
          %1042 = dma.done %s1038, 128
        $region80: #{causal_conv2d_subsampling.3} parent=75 // pred_fallthru
          _
      $region76: #{causal_conv2d_subsampling.3} parent=5 // pred_fallthru
        _
    $region6: #{causal_conv2d_subsampling.3} parent=1 // loop_footer
      %s25 = sadd.s32 1, %s21
    $region7: #{causal_conv2d_subsampling.3} parent=1 // loop_footer_branch
      %20 = sbr.rel target = $region3
    $region8: #{causal_conv2d_subsampling.3} parent=1 // loop_exit
      _
    %1043 = vsyncpa [#allocation3], 1
    %s1044 = scalar_lea.sflag [#allocation3], 1
    %1045 = vsyncpa %s1044, 1
    %1046 = vsyncpa [#allocation6], 1
    %1047 = vsyncpa [#allocation9], 1
    %1048 = vsyncpa [#allocation12], 1
    %1049 = vsyncpa [#allocation4], 1
    %s1050 = scalar_lea.sflag [#allocation4], 1
    %1051 = vsyncpa %s1050, 1

</llo_original>
